<compile_context>
chip_gen: v6e
topology: v6e:2x2x1
jax: 0.10.0
libtpu: 0.0.40
codegen_flags: <defaults>
</compile_context>

<pallas_src>
import functools

import jax
import jax.numpy as jnp
from jax import lax
from jax.experimental import pallas as pl
from jax.experimental.pallas import tpu as pltpu


def _spatial_attention_kernel(x_ref, nd_ref, w_ref, o_ref, halo_ref, *,
                              factor, ksize):
    """Fused SpatialAttention forward for one batch element.

    x_ref    : (1, C, H, W)        input feature map                 (VMEM)
    nd_ref   : (1, H, F*W*F)       un-pooled ndwi, rows regrouped so the
                                   F pooled source rows of output row h sit
                                   side by side along lanes            (VMEM)
    w_ref    : (3, K*K)            conv1 weights [c, ky*K + kx]        (SMEM)
    o_ref    : (1, C, H, W)        output = sigmoid(conv(sa)) * x
    halo_ref : (3, H+2P, W+2P)     zero-padded [avg, max, pooled] planes (VMEM scratch)
    """
    _, C, H, W = x_ref.shape
    F = factor
    KS = ksize
    PAD = KS // 2
    WF = W * F                                   # original ndwi row width

    xb = x_ref[0]                                # (C, H, W)

    # ---- channel-wise mean / max of x (short VPU reduction tree, C is tiny) --
    avg = jnp.mean(xb, axis=0)                   # (H, W)
    mxo = jnp.max(xb, axis=0)                    # (H, W)

    # ---- MaxPool2d(F, F) of ndwi --------------------------------------------
    # Row pool: F aligned 128-lane slices of the ref, elementwise max (VPU).
    m1 = nd_ref[0, :, 0:WF]                      # (H, W*F)
    for f in range(1, F):
        m1 = jnp.maximum(m1, nd_ref[0, :, f * WF:(f + 1) * WF])
    # Column pool: transpose (cheap XLU on a (H, W*F) tile) so the remaining
    # reduction is again over sublane groups, then transpose back.
    m2 = jnp.max(m1.T.reshape(W, F, H), axis=1)  # (W, H)
    pooled = m2.T                                # (H, W)

    # ---- zero-padded 3-channel "sa" stack for the 7x7 conv -------------------
    halo_ref[...] = jnp.zeros_like(halo_ref)
    halo_ref[0, PAD:PAD + H, PAD:PAD + W] = avg
    halo_ref[1, PAD:PAD + H, PAD:PAD + W] = mxo
    halo_ref[2, PAD:PAD + H, PAD:PAD + W] = pooled

    # ---- 7x7 conv (3 -> 1 channel, no bias): direct VPU taps -----------------
    # Weights are SMEM scalars (scalar-slot reads); one row-slab load per
    # (c, ky), lane sub-slices per kx.
    acc = jnp.zeros((H, W), jnp.float32)
    for c in range(3):
        for ky in range(KS):
            slab = halo_ref[c, ky:ky + H, :]     # (H, W + 2*PAD)
            for kx in range(KS):
                acc = acc + w_ref[c, ky * KS + kx] * slab[:, kx:kx + W]

    # ---- sigmoid gate applied to every channel of x --------------------------
    att = 1.0 / (1.0 + jnp.exp(-acc))            # exp rides the EUP slot
    o_ref[0] = xb * att[None, :, :]              # (C, H, W)


def _spatial_attention_forward(x, ndwi, weight):
    """SpatialAttention.forward(x, ndwi).

    x      : (N, C, H, W)      float32
    ndwi   : (N, 1, H*f, W*f)  float32   (f = MaxPool factor, 8 in the module)
    weight : (1, 3, K, K)      conv1 weight, PyTorch OIHW layout (K = 7, no bias)
    """
    N, C, H, W = x.shape
    _, _, HF, WF = ndwi.shape
    KS = weight.shape[-1]
    PAD = KS // 2
    assert weight.shape == (1, 3, KS, KS)
    assert HF % H == 0 and WF % W == 0 and HF // H == WF // W
    F = HF // H

    x32 = x.astype(jnp.float32)
    # Free (contiguous) view: (N, 1, H*F, W*F) -> (N, H, F*W*F).  Row h holds
    # the F source rows of the pooling window back-to-back along lanes, so the
    # in-kernel row pool is just aligned 128-lane slices.
    nd_lanes = ndwi.reshape(N, H, F * WF).astype(jnp.float32)
    w2 = weight.reshape(3, KS * KS).astype(jnp.float32)      # SMEM scalar table

    kernel = functools.partial(_spatial_attention_kernel, factor=F, ksize=KS)

    return pl.pallas_call(
        kernel,
        out_shape=jax.ShapeDtypeStruct((N, C, H, W), jnp.float32),
        grid_spec=pltpu.PrefetchScalarGridSpec(
            num_scalar_prefetch=0,
            grid=(N,),
            in_specs=[
                pl.BlockSpec((1, C, H, W), lambda n: (n, 0, 0, 0)),
                pl.BlockSpec((1, H, F * WF), lambda n: (n, 0, 0)),
                pl.BlockSpec(memory_space=pltpu.MemorySpace.SMEM),
            ],
            out_specs=pl.BlockSpec((1, C, H, W), lambda n: (n, 0, 0, 0)),
            scratch_shapes=[
                pltpu.VMEM((3, H + 2 * PAD, W + 2 * PAD), jnp.float32),
            ],
        ),
        compiler_params=pltpu.CompilerParams(
            dimension_semantics=("parallel",)),   # batch split across TCs on v7x
    )(x32, nd_lanes, w2)


spatial_attention_forward = jax.jit(_spatial_attention_forward)


def _reference_forward(x, ndwi, weight):
    """Pure-JAX reference (reduce_window + lax.conv) for the numerical check."""
    f = ndwi.shape[2] // x.shape[2]
    avg = jnp.mean(x, axis=1, keepdims=True)
    mx = jnp.max(x, axis=1, keepdims=True)
    pooled = lax.reduce_window(ndwi, -jnp.inf, lax.max,
                               window_dimensions=(1, 1, f, f),
                               window_strides=(1, 1, f, f),
                               padding="VALID")
    sa = jnp.concatenate([avg, mx, pooled], axis=1)
    conv = lax.conv_general_dilated(
        sa, weight, window_strides=(1, 1), padding="SAME",
        dimension_numbers=("NCHW", "OIHW", "NCHW"))
    return jax.nn.sigmoid(conv) * x


if __name__ == "__main__":
    key = jax.random.PRNGKey(0)
    k_x, k_n, k_w = jax.random.split(key, 3)

    N, C, H, W = 2, 4, 16, 16
    FACTOR, KSIZE = 8, 7

    x = jax.random.normal(k_x, (N, C, H, W), jnp.float32)               # NCHW, like PyTorch
    ndwi = jax.random.normal(k_n, (N, 1, H * FACTOR, W * FACTOR), jnp.float32)
    weight = jax.random.normal(k_w, (1, 3, KSIZE, KSIZE), jnp.float32) / jnp.sqrt(
        3.0 * KSIZE * KSIZE)

    out = spatial_attention_forward(x, ndwi, weight)
    out = jax.block_until_ready(out)

    ref = _reference_forward(x, ndwi, weight)
    assert out.shape == (N, C, H, W)
    assert jnp.allclose(out, ref, atol=1e-4, rtol=1e-4), float(
        jnp.max(jnp.abs(out - ref)))

    print("KERNEL_OK")
</pallas_src>

<mosaic_0001>
module attributes {stable_mosaic.version = 11 : i64} {
  func.func @_spatial_attention_kernel(%arg0: i32, %arg1: memref<1x4x16x16xf32, #tpu.memory_space<vmem>>, %arg2: memref<1x16x1024xf32, #tpu.memory_space<vmem>>, %arg3: memref<3x49xf32, #tpu.memory_space<smem>>, %arg4: memref<1x4x16x16xf32, #tpu.memory_space<vmem>>, %arg5: memref<3x22x22xf32, #tpu.memory_space<vmem>>) attributes {dimension_semantics = [#tpu.dimension_semantics<parallel>], iteration_bounds = array<i64: 2>, scalar_prefetch = 0 : i64, scratch_operands = 1 : i64, tpu.core_type = #tpu.core_type<tc>, window_params = [{transform_indices = @transform_0, window_bounds = array<i64: 1, 4, 16, 16>}, {transform_indices = @transform_1, window_bounds = array<i64: 1, 16, 1024>}, {transform_indices = @transform_2, window_bounds = array<i64: 3, 49>}, {transform_indices = @transform_3, window_bounds = array<i64: 1, 4, 16, 16>}]} {
    %c0 = arith.constant 0 : index
    %c0_0 = arith.constant 0 : index
    %c0_1 = arith.constant 0 : index
    %c0_2 = arith.constant 0 : index
    %0 = vector.load %arg1[%c0, %c0_0, %c0_1, %c0_2] : memref<1x4x16x16xf32, #tpu.memory_space<vmem>>, vector<1x4x16x16xf32>
    %1 = vector.shape_cast %0 : vector<1x4x16x16xf32> to vector<4x16x16xf32>
    %cst = arith.constant dense<0.000000e+00> : vector<16x16xf32>
    %2 = vector.multi_reduction <add>, %1, %cst [0] : vector<4x16x16xf32> to vector<16x16xf32>
    %cst_3 = arith.constant 4.000000e+00 : f32
    %3 = vector.broadcast %cst_3 : f32 to vector<16x16xf32>
    %4 = arith.divf %2, %3 : vector<16x16xf32>
    %cst_4 = arith.constant dense<0xFF800000> : vector<16x16xf32>
    %5 = vector.multi_reduction <maximumf>, %1, %cst_4 [0] : vector<4x16x16xf32> to vector<16x16xf32>
    %c0_5 = arith.constant 0 : index
    %c0_6 = arith.constant 0 : index
    %c0_7 = arith.constant 0 : index
    %6 = vector.load %arg2[%c0_5, %c0_6, %c0_7] : memref<1x16x1024xf32, #tpu.memory_space<vmem>>, vector<1x16x128xf32>
    %7 = vector.shape_cast %6 : vector<1x16x128xf32> to vector<16x128xf32>
    %c0_8 = arith.constant 0 : index
    %c0_9 = arith.constant 0 : index
    %c128 = arith.constant 128 : index
    %8 = vector.load %arg2[%c0_8, %c0_9, %c128] : memref<1x16x1024xf32, #tpu.memory_space<vmem>>, vector<1x16x128xf32>
    %9 = vector.shape_cast %8 : vector<1x16x128xf32> to vector<16x128xf32>
    %10 = arith.maximumf %7, %9 : vector<16x128xf32>
    %c0_10 = arith.constant 0 : index
    %c0_11 = arith.constant 0 : index
    %c256 = arith.constant 256 : index
    %11 = vector.load %arg2[%c0_10, %c0_11, %c256] : memref<1x16x1024xf32, #tpu.memory_space<vmem>>, vector<1x16x128xf32>
    %12 = vector.shape_cast %11 : vector<1x16x128xf32> to vector<16x128xf32>
    %13 = arith.maximumf %10, %12 : vector<16x128xf32>
    %c0_12 = arith.constant 0 : index
    %c0_13 = arith.constant 0 : index
    %c384 = arith.constant 384 : index
    %14 = vector.load %arg2[%c0_12, %c0_13, %c384] : memref<1x16x1024xf32, #tpu.memory_space<vmem>>, vector<1x16x128xf32>
    %15 = vector.shape_cast %14 : vector<1x16x128xf32> to vector<16x128xf32>
    %16 = arith.maximumf %13, %15 : vector<16x128xf32>
    %c0_14 = arith.constant 0 : index
    %c0_15 = arith.constant 0 : index
    %c512 = arith.constant 512 : index
    %17 = vector.load %arg2[%c0_14, %c0_15, %c512] : memref<1x16x1024xf32, #tpu.memory_space<vmem>>, vector<1x16x128xf32>
    %18 = vector.shape_cast %17 : vector<1x16x128xf32> to vector<16x128xf32>
    %19 = arith.maximumf %16, %18 : vector<16x128xf32>
    %c0_16 = arith.constant 0 : index
    %c0_17 = arith.constant 0 : index
    %c640 = arith.constant 640 : index
    %20 = vector.load %arg2[%c0_16, %c0_17, %c640] : memref<1x16x1024xf32, #tpu.memory_space<vmem>>, vector<1x16x128xf32>
    %21 = vector.shape_cast %20 : vector<1x16x128xf32> to vector<16x128xf32>
    %22 = arith.maximumf %19, %21 : vector<16x128xf32>
    %c0_18 = arith.constant 0 : index
    %c0_19 = arith.constant 0 : index
    %c768 = arith.constant 768 : index
    %23 = vector.load %arg2[%c0_18, %c0_19, %c768] : memref<1x16x1024xf32, #tpu.memory_space<vmem>>, vector<1x16x128xf32>
    %24 = vector.shape_cast %23 : vector<1x16x128xf32> to vector<16x128xf32>
    %25 = arith.maximumf %22, %24 : vector<16x128xf32>
    %c0_20 = arith.constant 0 : index
    %c0_21 = arith.constant 0 : index
    %c896 = arith.constant 896 : index
    %26 = vector.load %arg2[%c0_20, %c0_21, %c896] : memref<1x16x1024xf32, #tpu.memory_space<vmem>>, vector<1x16x128xf32>
    %27 = vector.shape_cast %26 : vector<1x16x128xf32> to vector<16x128xf32>
    %28 = arith.maximumf %25, %27 : vector<16x128xf32>
    %29 = tpu.transpose %28, [1, 0] : vector<16x128xf32> -> vector<128x16xf32>
    %30 = vector.shape_cast %29 : vector<128x16xf32> to vector<16x8x16xf32>
    %cst_22 = arith.constant dense<0xFF800000> : vector<16x16xf32>
    %31 = vector.multi_reduction <maximumf>, %30, %cst_22 [1] : vector<16x8x16xf32> to vector<16x16xf32>
    %32 = tpu.transpose %31, [1, 0] : vector<16x16xf32> -> vector<16x16xf32>
    %cst_23 = arith.constant 0.000000e+00 : f32
    %33 = vector.broadcast %cst_23 : f32 to vector<3x22x22xf32>
    %c0_24 = arith.constant 0 : index
    %c0_25 = arith.constant 0 : index
    %c0_26 = arith.constant 0 : index
    %34 = vector.load %arg5[%c0_24, %c0_25, %c0_26] : memref<3x22x22xf32, #tpu.memory_space<vmem>>, vector<3x22x22xf32>
    tpu.vector_store %arg5[%c0_24, %c0_25, %c0_26], %33 {strides = array<i32>} : memref<3x22x22xf32, #tpu.memory_space<vmem>>, vector<3x22x22xf32>,
    %c0_27 = arith.constant 0 : index
    %c3 = arith.constant 3 : index
    %c3_28 = arith.constant 3 : index
    %35 = vector.load %arg5[%c0_27, %c3, %c3_28] : memref<3x22x22xf32, #tpu.memory_space<vmem>>, vector<1x16x16xf32>
    %36 = vector.shape_cast %35 : vector<1x16x16xf32> to vector<16x16xf32>
    %37 = vector.shape_cast %4 : vector<16x16xf32> to vector<1x16x16xf32>
    tpu.vector_store %arg5[%c0_27, %c3, %c3_28], %37 {strides = array<i32>} : memref<3x22x22xf32, #tpu.memory_space<vmem>>, vector<1x16x16xf32>,
    %c1 = arith.constant 1 : index
    %c3_29 = arith.constant 3 : index
    %c3_30 = arith.constant 3 : index
    %38 = vector.load %arg5[%c1, %c3_29, %c3_30] : memref<3x22x22xf32, #tpu.memory_space<vmem>>, vector<1x16x16xf32>
    %39 = vector.shape_cast %38 : vector<1x16x16xf32> to vector<16x16xf32>
    %40 = vector.shape_cast %5 : vector<16x16xf32> to vector<1x16x16xf32>
    tpu.vector_store %arg5[%c1, %c3_29, %c3_30], %40 {strides = array<i32>} : memref<3x22x22xf32, #tpu.memory_space<vmem>>, vector<1x16x16xf32>,
    %c2 = arith.constant 2 : index
    %c3_31 = arith.constant 3 : index
    %c3_32 = arith.constant 3 : index
    %41 = vector.load %arg5[%c2, %c3_31, %c3_32] : memref<3x22x22xf32, #tpu.memory_space<vmem>>, vector<1x16x16xf32>
    %42 = vector.shape_cast %41 : vector<1x16x16xf32> to vector<16x16xf32>
    %43 = vector.shape_cast %32 : vector<16x16xf32> to vector<1x16x16xf32>
    tpu.vector_store %arg5[%c2, %c3_31, %c3_32], %43 {strides = array<i32>} : memref<3x22x22xf32, #tpu.memory_space<vmem>>, vector<1x16x16xf32>,
    %cst_33 = arith.constant 0.000000e+00 : f32
    %44 = vector.broadcast %cst_33 : f32 to vector<16x16xf32>
    %c0_34 = arith.constant 0 : index
    %c0_35 = arith.constant 0 : index
    %c0_36 = arith.constant 0 : index
    %45 = vector.load %arg5[%c0_34, %c0_35, %c0_36] : memref<3x22x22xf32, #tpu.memory_space<vmem>>, vector<1x16x22xf32>
    %46 = vector.shape_cast %45 : vector<1x16x22xf32> to vector<16x22xf32>
    %c0_37 = arith.constant 0 : index
    %c0_38 = arith.constant 0 : index
    %47 = memref.load %arg3[%c0_37, %c0_38] : memref<3x49xf32, #tpu.memory_space<smem>>
    %48 = vector.extract_strided_slice %46 {offsets = [0, 0], sizes = [16, 16], strides = [1, 1]} : vector<16x22xf32> to vector<16x16xf32>
    %49 = vector.broadcast %47 : f32 to vector<16x16xf32>
    %50 = arith.mulf %49, %48 : vector<16x16xf32>
    %51 = arith.addf %44, %50 : vector<16x16xf32>
    %c0_39 = arith.constant 0 : index
    %c1_40 = arith.constant 1 : index
    %52 = memref.load %arg3[%c0_39, %c1_40] : memref<3x49xf32, #tpu.memory_space<smem>>
    %53 = vector.extract_strided_slice %46 {offsets = [0, 1], sizes = [16, 16], strides = [1, 1]} : vector<16x22xf32> to vector<16x16xf32>
    %54 = vector.broadcast %52 : f32 to vector<16x16xf32>
    %55 = arith.mulf %54, %53 : vector<16x16xf32>
    %56 = arith.addf %51, %55 : vector<16x16xf32>
    %c0_41 = arith.constant 0 : index
    %c2_42 = arith.constant 2 : index
    %57 = memref.load %arg3[%c0_41, %c2_42] : memref<3x49xf32, #tpu.memory_space<smem>>
    %58 = vector.extract_strided_slice %46 {offsets = [0, 2], sizes = [16, 16], strides = [1, 1]} : vector<16x22xf32> to vector<16x16xf32>
    %59 = vector.broadcast %57 : f32 to vector<16x16xf32>
    %60 = arith.mulf %59, %58 : vector<16x16xf32>
    %61 = arith.addf %56, %60 : vector<16x16xf32>
    %c0_43 = arith.constant 0 : index
    %c3_44 = arith.constant 3 : index
    %62 = memref.load %arg3[%c0_43, %c3_44] : memref<3x49xf32, #tpu.memory_space<smem>>
    %63 = vector.extract_strided_slice %46 {offsets = [0, 3], sizes = [16, 16], strides = [1, 1]} : vector<16x22xf32> to vector<16x16xf32>
    %64 = vector.broadcast %62 : f32 to vector<16x16xf32>
    %65 = arith.mulf %64, %63 : vector<16x16xf32>
    %66 = arith.addf %61, %65 : vector<16x16xf32>
    %c0_45 = arith.constant 0 : index
    %c4 = arith.constant 4 : index
    %67 = memref.load %arg3[%c0_45, %c4] : memref<3x49xf32, #tpu.memory_space<smem>>
    %68 = vector.extract_strided_slice %46 {offsets = [0, 4], sizes = [16, 16], strides = [1, 1]} : vector<16x22xf32> to vector<16x16xf32>
    %69 = vector.broadcast %67 : f32 to vector<16x16xf32>
    %70 = arith.mulf %69, %68 : vector<16x16xf32>
    %71 = arith.addf %66, %70 : vector<16x16xf32>
    %c0_46 = arith.constant 0 : index
    %c5 = arith.constant 5 : index
    %72 = memref.load %arg3[%c0_46, %c5] : memref<3x49xf32, #tpu.memory_space<smem>>
    %73 = vector.extract_strided_slice %46 {offsets = [0, 5], sizes = [16, 16], strides = [1, 1]} : vector<16x22xf32> to vector<16x16xf32>
    %74 = vector.broadcast %72 : f32 to vector<16x16xf32>
    %75 = arith.mulf %74, %73 : vector<16x16xf32>
    %76 = arith.addf %71, %75 : vector<16x16xf32>
    %c0_47 = arith.constant 0 : index
    %c6 = arith.constant 6 : index
    %77 = memref.load %arg3[%c0_47, %c6] : memref<3x49xf32, #tpu.memory_space<smem>>
    %78 = vector.extract_strided_slice %46 {offsets = [0, 6], sizes = [16, 16], strides = [1, 1]} : vector<16x22xf32> to vector<16x16xf32>
    %79 = vector.broadcast %77 : f32 to vector<16x16xf32>
    %80 = arith.mulf %79, %78 : vector<16x16xf32>
    %81 = arith.addf %76, %80 : vector<16x16xf32>
    %c0_48 = arith.constant 0 : index
    %c1_49 = arith.constant 1 : index
    %c0_50 = arith.constant 0 : index
    %82 = vector.load %arg5[%c0_48, %c1_49, %c0_50] : memref<3x22x22xf32, #tpu.memory_space<vmem>>, vector<1x16x22xf32>
    %83 = vector.shape_cast %82 : vector<1x16x22xf32> to vector<16x22xf32>
    %c0_51 = arith.constant 0 : index
    %c7 = arith.constant 7 : index
    %84 = memref.load %arg3[%c0_51, %c7] : memref<3x49xf32, #tpu.memory_space<smem>>
    %85 = vector.extract_strided_slice %83 {offsets = [0, 0], sizes = [16, 16], strides = [1, 1]} : vector<16x22xf32> to vector<16x16xf32>
    %86 = vector.broadcast %84 : f32 to vector<16x16xf32>
    %87 = arith.mulf %86, %85 : vector<16x16xf32>
    %88 = arith.addf %81, %87 : vector<16x16xf32>
    %c0_52 = arith.constant 0 : index
    %c8 = arith.constant 8 : index
    %89 = memref.load %arg3[%c0_52, %c8] : memref<3x49xf32, #tpu.memory_space<smem>>
    %90 = vector.extract_strided_slice %83 {offsets = [0, 1], sizes = [16, 16], strides = [1, 1]} : vector<16x22xf32> to vector<16x16xf32>
    %91 = vector.broadcast %89 : f32 to vector<16x16xf32>
    %92 = arith.mulf %91, %90 : vector<16x16xf32>
    %93 = arith.addf %88, %92 : vector<16x16xf32>
    %c0_53 = arith.constant 0 : index
    %c9 = arith.constant 9 : index
    %94 = memref.load %arg3[%c0_53, %c9] : memref<3x49xf32, #tpu.memory_space<smem>>
    %95 = vector.extract_strided_slice %83 {offsets = [0, 2], sizes = [16, 16], strides = [1, 1]} : vector<16x22xf32> to vector<16x16xf32>
    %96 = vector.broadcast %94 : f32 to vector<16x16xf32>
    %97 = arith.mulf %96, %95 : vector<16x16xf32>
    %98 = arith.addf %93, %97 : vector<16x16xf32>
    %c0_54 = arith.constant 0 : index
    %c10 = arith.constant 10 : index
    %99 = memref.load %arg3[%c0_54, %c10] : memref<3x49xf32, #tpu.memory_space<smem>>
    %100 = vector.extract_strided_slice %83 {offsets = [0, 3], sizes = [16, 16], strides = [1, 1]} : vector<16x22xf32> to vector<16x16xf32>
    %101 = vector.broadcast %99 : f32 to vector<16x16xf32>
    %102 = arith.mulf %101, %100 : vector<16x16xf32>
    %103 = arith.addf %98, %102 : vector<16x16xf32>
    %c0_55 = arith.constant 0 : index
    %c11 = arith.constant 11 : index
    %104 = memref.load %arg3[%c0_55, %c11] : memref<3x49xf32, #tpu.memory_space<smem>>
    %105 = vector.extract_strided_slice %83 {offsets = [0, 4], sizes = [16, 16], strides = [1, 1]} : vector<16x22xf32> to vector<16x16xf32>
    %106 = vector.broadcast %104 : f32 to vector<16x16xf32>
    %107 = arith.mulf %106, %105 : vector<16x16xf32>
    %108 = arith.addf %103, %107 : vector<16x16xf32>
    %c0_56 = arith.constant 0 : index
    %c12 = arith.constant 12 : index
    %109 = memref.load %arg3[%c0_56, %c12] : memref<3x49xf32, #tpu.memory_space<smem>>
    %110 = vector.extract_strided_slice %83 {offsets = [0, 5], sizes = [16, 16], strides = [1, 1]} : vector<16x22xf32> to vector<16x16xf32>
    %111 = vector.broadcast %109 : f32 to vector<16x16xf32>
    %112 = arith.mulf %111, %110 : vector<16x16xf32>
    %113 = arith.addf %108, %112 : vector<16x16xf32>
    %c0_57 = arith.constant 0 : index
    %c13 = arith.constant 13 : index
    %114 = memref.load %arg3[%c0_57, %c13] : memref<3x49xf32, #tpu.memory_space<smem>>
    %115 = vector.extract_strided_slice %83 {offsets = [0, 6], sizes = [16, 16], strides = [1, 1]} : vector<16x22xf32> to vector<16x16xf32>
    %116 = vector.broadcast %114 : f32 to vector<16x16xf32>
    %117 = arith.mulf %116, %115 : vector<16x16xf32>
    %118 = arith.addf %113, %117 : vector<16x16xf32>
    %c0_58 = arith.constant 0 : index
    %c2_59 = arith.constant 2 : index
    %c0_60 = arith.constant 0 : index
    %119 = vector.load %arg5[%c0_58, %c2_59, %c0_60] : memref<3x22x22xf32, #tpu.memory_space<vmem>>, vector<1x16x22xf32>
    %120 = vector.shape_cast %119 : vector<1x16x22xf32> to vector<16x22xf32>
    %c0_61 = arith.constant 0 : index
    %c14 = arith.constant 14 : index
    %121 = memref.load %arg3[%c0_61, %c14] : memref<3x49xf32, #tpu.memory_space<smem>>
    %122 = vector.extract_strided_slice %120 {offsets = [0, 0], sizes = [16, 16], strides = [1, 1]} : vector<16x22xf32> to vector<16x16xf32>
    %123 = vector.broadcast %121 : f32 to vector<16x16xf32>
    %124 = arith.mulf %123, %122 : vector<16x16xf32>
    %125 = arith.addf %118, %124 : vector<16x16xf32>
    %c0_62 = arith.constant 0 : index
    %c15 = arith.constant 15 : index
    %126 = memref.load %arg3[%c0_62, %c15] : memref<3x49xf32, #tpu.memory_space<smem>>
    %127 = vector.extract_strided_slice %120 {offsets = [0, 1], sizes = [16, 16], strides = [1, 1]} : vector<16x22xf32> to vector<16x16xf32>
    %128 = vector.broadcast %126 : f32 to vector<16x16xf32>
    %129 = arith.mulf %128, %127 : vector<16x16xf32>
    %130 = arith.addf %125, %129 : vector<16x16xf32>
    %c0_63 = arith.constant 0 : index
    %c16 = arith.constant 16 : index
    %131 = memref.load %arg3[%c0_63, %c16] : memref<3x49xf32, #tpu.memory_space<smem>>
    %132 = vector.extract_strided_slice %120 {offsets = [0, 2], sizes = [16, 16], strides = [1, 1]} : vector<16x22xf32> to vector<16x16xf32>
    %133 = vector.broadcast %131 : f32 to vector<16x16xf32>
    %134 = arith.mulf %133, %132 : vector<16x16xf32>
    %135 = arith.addf %130, %134 : vector<16x16xf32>
    %c0_64 = arith.constant 0 : index
    %c17 = arith.constant 17 : index
    %136 = memref.load %arg3[%c0_64, %c17] : memref<3x49xf32, #tpu.memory_space<smem>>
    %137 = vector.extract_strided_slice %120 {offsets = [0, 3], sizes = [16, 16], strides = [1, 1]} : vector<16x22xf32> to vector<16x16xf32>
    %138 = vector.broadcast %136 : f32 to vector<16x16xf32>
    %139 = arith.mulf %138, %137 : vector<16x16xf32>
    %140 = arith.addf %135, %139 : vector<16x16xf32>
    %c0_65 = arith.constant 0 : index
    %c18 = arith.constant 18 : index
    %141 = memref.load %arg3[%c0_65, %c18] : memref<3x49xf32, #tpu.memory_space<smem>>
    %142 = vector.extract_strided_slice %120 {offsets = [0, 4], sizes = [16, 16], strides = [1, 1]} : vector<16x22xf32> to vector<16x16xf32>
    %143 = vector.broadcast %141 : f32 to vector<16x16xf32>
    %144 = arith.mulf %143, %142 : vector<16x16xf32>
    %145 = arith.addf %140, %144 : vector<16x16xf32>
    %c0_66 = arith.constant 0 : index
    %c19 = arith.constant 19 : index
    %146 = memref.load %arg3[%c0_66, %c19] : memref<3x49xf32, #tpu.memory_space<smem>>
    %147 = vector.extract_strided_slice %120 {offsets = [0, 5], sizes = [16, 16], strides = [1, 1]} : vector<16x22xf32> to vector<16x16xf32>
    %148 = vector.broadcast %146 : f32 to vector<16x16xf32>
    %149 = arith.mulf %148, %147 : vector<16x16xf32>
    %150 = arith.addf %145, %149 : vector<16x16xf32>
    %c0_67 = arith.constant 0 : index
    %c20 = arith.constant 20 : index
    %151 = memref.load %arg3[%c0_67, %c20] : memref<3x49xf32, #tpu.memory_space<smem>>
    %152 = vector.extract_strided_slice %120 {offsets = [0, 6], sizes = [16, 16], strides = [1, 1]} : vector<16x22xf32> to vector<16x16xf32>
    %153 = vector.broadcast %151 : f32 to vector<16x16xf32>
    %154 = arith.mulf %153, %152 : vector<16x16xf32>
    %155 = arith.addf %150, %154 : vector<16x16xf32>
    %c0_68 = arith.constant 0 : index
    %c3_69 = arith.constant 3 : index
    %c0_70 = arith.constant 0 : index
    %156 = vector.load %arg5[%c0_68, %c3_69, %c0_70] : memref<3x22x22xf32, #tpu.memory_space<vmem>>, vector<1x16x22xf32>
    %157 = vector.shape_cast %156 : vector<1x16x22xf32> to vector<16x22xf32>
    %c0_71 = arith.constant 0 : index
    %c21 = arith.constant 21 : index
    %158 = memref.load %arg3[%c0_71, %c21] : memref<3x49xf32, #tpu.memory_space<smem>>
    %159 = vector.extract_strided_slice %157 {offsets = [0, 0], sizes = [16, 16], strides = [1, 1]} : vector<16x22xf32> to vector<16x16xf32>
    %160 = vector.broadcast %158 : f32 to vector<16x16xf32>
    %161 = arith.mulf %160, %159 : vector<16x16xf32>
    %162 = arith.addf %155, %161 : vector<16x16xf32>
    %c0_72 = arith.constant 0 : index
    %c22 = arith.constant 22 : index
    %163 = memref.load %arg3[%c0_72, %c22] : memref<3x49xf32, #tpu.memory_space<smem>>
    %164 = vector.extract_strided_slice %157 {offsets = [0, 1], sizes = [16, 16], strides = [1, 1]} : vector<16x22xf32> to vector<16x16xf32>
    %165 = vector.broadcast %163 : f32 to vector<16x16xf32>
    %166 = arith.mulf %165, %164 : vector<16x16xf32>
    %167 = arith.addf %162, %166 : vector<16x16xf32>
    %c0_73 = arith.constant 0 : index
    %c23 = arith.constant 23 : index
    %168 = memref.load %arg3[%c0_73, %c23] : memref<3x49xf32, #tpu.memory_space<smem>>
    %169 = vector.extract_strided_slice %157 {offsets = [0, 2], sizes = [16, 16], strides = [1, 1]} : vector<16x22xf32> to vector<16x16xf32>
    %170 = vector.broadcast %168 : f32 to vector<16x16xf32>
    %171 = arith.mulf %170, %169 : vector<16x16xf32>
    %172 = arith.addf %167, %171 : vector<16x16xf32>
    %c0_74 = arith.constant 0 : index
    %c24 = arith.constant 24 : index
    %173 = memref.load %arg3[%c0_74, %c24] : memref<3x49xf32, #tpu.memory_space<smem>>
    %174 = vector.extract_strided_slice %157 {offsets = [0, 3], sizes = [16, 16], strides = [1, 1]} : vector<16x22xf32> to vector<16x16xf32>
    %175 = vector.broadcast %173 : f32 to vector<16x16xf32>
    %176 = arith.mulf %175, %174 : vector<16x16xf32>
    %177 = arith.addf %172, %176 : vector<16x16xf32>
    %c0_75 = arith.constant 0 : index
    %c25 = arith.constant 25 : index
    %178 = memref.load %arg3[%c0_75, %c25] : memref<3x49xf32, #tpu.memory_space<smem>>
    %179 = vector.extract_strided_slice %157 {offsets = [0, 4], sizes = [16, 16], strides = [1, 1]} : vector<16x22xf32> to vector<16x16xf32>
    %180 = vector.broadcast %178 : f32 to vector<16x16xf32>
    %181 = arith.mulf %180, %179 : vector<16x16xf32>
    %182 = arith.addf %177, %181 : vector<16x16xf32>
    %c0_76 = arith.constant 0 : index
    %c26 = arith.constant 26 : index
    %183 = memref.load %arg3[%c0_76, %c26] : memref<3x49xf32, #tpu.memory_space<smem>>
    %184 = vector.extract_strided_slice %157 {offsets = [0, 5], sizes = [16, 16], strides = [1, 1]} : vector<16x22xf32> to vector<16x16xf32>
    %185 = vector.broadcast %183 : f32 to vector<16x16xf32>
    %186 = arith.mulf %185, %184 : vector<16x16xf32>
    %187 = arith.addf %182, %186 : vector<16x16xf32>
    %c0_77 = arith.constant 0 : index
    %c27 = arith.constant 27 : index
    %188 = memref.load %arg3[%c0_77, %c27] : memref<3x49xf32, #tpu.memory_space<smem>>
    %189 = vector.extract_strided_slice %157 {offsets = [0, 6], sizes = [16, 16], strides = [1, 1]} : vector<16x22xf32> to vector<16x16xf32>
    %190 = vector.broadcast %188 : f32 to vector<16x16xf32>
    %191 = arith.mulf %190, %189 : vector<16x16xf32>
    %192 = arith.addf %187, %191 : vector<16x16xf32>
    %c0_78 = arith.constant 0 : index
    %c4_79 = arith.constant 4 : index
    %c0_80 = arith.constant 0 : index
    %193 = vector.load %arg5[%c0_78, %c4_79, %c0_80] : memref<3x22x22xf32, #tpu.memory_space<vmem>>, vector<1x16x22xf32>
    %194 = vector.shape_cast %193 : vector<1x16x22xf32> to vector<16x22xf32>
    %c0_81 = arith.constant 0 : index
    %c28 = arith.constant 28 : index
    %195 = memref.load %arg3[%c0_81, %c28] : memref<3x49xf32, #tpu.memory_space<smem>>
    %196 = vector.extract_strided_slice %194 {offsets = [0, 0], sizes = [16, 16], strides = [1, 1]} : vector<16x22xf32> to vector<16x16xf32>
    %197 = vector.broadcast %195 : f32 to vector<16x16xf32>
    %198 = arith.mulf %197, %196 : vector<16x16xf32>
    %199 = arith.addf %192, %198 : vector<16x16xf32>
    %c0_82 = arith.constant 0 : index
    %c29 = arith.constant 29 : index
    %200 = memref.load %arg3[%c0_82, %c29] : memref<3x49xf32, #tpu.memory_space<smem>>
    %201 = vector.extract_strided_slice %194 {offsets = [0, 1], sizes = [16, 16], strides = [1, 1]} : vector<16x22xf32> to vector<16x16xf32>
    %202 = vector.broadcast %200 : f32 to vector<16x16xf32>
    %203 = arith.mulf %202, %201 : vector<16x16xf32>
    %204 = arith.addf %199, %203 : vector<16x16xf32>
    %c0_83 = arith.constant 0 : index
    %c30 = arith.constant 30 : index
    %205 = memref.load %arg3[%c0_83, %c30] : memref<3x49xf32, #tpu.memory_space<smem>>
    %206 = vector.extract_strided_slice %194 {offsets = [0, 2], sizes = [16, 16], strides = [1, 1]} : vector<16x22xf32> to vector<16x16xf32>
    %207 = vector.broadcast %205 : f32 to vector<16x16xf32>
    %208 = arith.mulf %207, %206 : vector<16x16xf32>
    %209 = arith.addf %204, %208 : vector<16x16xf32>
    %c0_84 = arith.constant 0 : index
    %c31 = arith.constant 31 : index
    %210 = memref.load %arg3[%c0_84, %c31] : memref<3x49xf32, #tpu.memory_space<smem>>
    %211 = vector.extract_strided_slice %194 {offsets = [0, 3], sizes = [16, 16], strides = [1, 1]} : vector<16x22xf32> to vector<16x16xf32>
    %212 = vector.broadcast %210 : f32 to vector<16x16xf32>
    %213 = arith.mulf %212, %211 : vector<16x16xf32>
    %214 = arith.addf %209, %213 : vector<16x16xf32>
    %c0_85 = arith.constant 0 : index
    %c32 = arith.constant 32 : index
    %215 = memref.load %arg3[%c0_85, %c32] : memref<3x49xf32, #tpu.memory_space<smem>>
    %216 = vector.extract_strided_slice %194 {offsets = [0, 4], sizes = [16, 16], strides = [1, 1]} : vector<16x22xf32> to vector<16x16xf32>
    %217 = vector.broadcast %215 : f32 to vector<16x16xf32>
    %218 = arith.mulf %217, %216 : vector<16x16xf32>
    %219 = arith.addf %214, %218 : vector<16x16xf32>
    %c0_86 = arith.constant 0 : index
    %c33 = arith.constant 33 : index
    %220 = memref.load %arg3[%c0_86, %c33] : memref<3x49xf32, #tpu.memory_space<smem>>
    %221 = vector.extract_strided_slice %194 {offsets = [0, 5], sizes = [16, 16], strides = [1, 1]} : vector<16x22xf32> to vector<16x16xf32>
    %222 = vector.broadcast %220 : f32 to vector<16x16xf32>
    %223 = arith.mulf %222, %221 : vector<16x16xf32>
    %224 = arith.addf %219, %223 : vector<16x16xf32>
    %c0_87 = arith.constant 0 : index
    %c34 = arith.constant 34 : index
    %225 = memref.load %arg3[%c0_87, %c34] : memref<3x49xf32, #tpu.memory_space<smem>>
    %226 = vector.extract_strided_slice %194 {offsets = [0, 6], sizes = [16, 16], strides = [1, 1]} : vector<16x22xf32> to vector<16x16xf32>
    %227 = vector.broadcast %225 : f32 to vector<16x16xf32>
    %228 = arith.mulf %227, %226 : vector<16x16xf32>
    %229 = arith.addf %224, %228 : vector<16x16xf32>
    %c0_88 = arith.constant 0 : index
    %c5_89 = arith.constant 5 : index
    %c0_90 = arith.constant 0 : index
    %230 = vector.load %arg5[%c0_88, %c5_89, %c0_90] : memref<3x22x22xf32, #tpu.memory_space<vmem>>, vector<1x16x22xf32>
    %231 = vector.shape_cast %230 : vector<1x16x22xf32> to vector<16x22xf32>
    %c0_91 = arith.constant 0 : index
    %c35 = arith.constant 35 : index
    %232 = memref.load %arg3[%c0_91, %c35] : memref<3x49xf32, #tpu.memory_space<smem>>
    %233 = vector.extract_strided_slice %231 {offsets = [0, 0], sizes = [16, 16], strides = [1, 1]} : vector<16x22xf32> to vector<16x16xf32>
    %234 = vector.broadcast %232 : f32 to vector<16x16xf32>
    %235 = arith.mulf %234, %233 : vector<16x16xf32>
    %236 = arith.addf %229, %235 : vector<16x16xf32>
    %c0_92 = arith.constant 0 : index
    %c36 = arith.constant 36 : index
    %237 = memref.load %arg3[%c0_92, %c36] : memref<3x49xf32, #tpu.memory_space<smem>>
    %238 = vector.extract_strided_slice %231 {offsets = [0, 1], sizes = [16, 16], strides = [1, 1]} : vector<16x22xf32> to vector<16x16xf32>
    %239 = vector.broadcast %237 : f32 to vector<16x16xf32>
    %240 = arith.mulf %239, %238 : vector<16x16xf32>
    %241 = arith.addf %236, %240 : vector<16x16xf32>
    %c0_93 = arith.constant 0 : index
    %c37 = arith.constant 37 : index
    %242 = memref.load %arg3[%c0_93, %c37] : memref<3x49xf32, #tpu.memory_space<smem>>
    %243 = vector.extract_strided_slice %231 {offsets = [0, 2], sizes = [16, 16], strides = [1, 1]} : vector<16x22xf32> to vector<16x16xf32>
    %244 = vector.broadcast %242 : f32 to vector<16x16xf32>
    %245 = arith.mulf %244, %243 : vector<16x16xf32>
    %246 = arith.addf %241, %245 : vector<16x16xf32>
    %c0_94 = arith.constant 0 : index
    %c38 = arith.constant 38 : index
    %247 = memref.load %arg3[%c0_94, %c38] : memref<3x49xf32, #tpu.memory_space<smem>>
    %248 = vector.extract_strided_slice %231 {offsets = [0, 3], sizes = [16, 16], strides = [1, 1]} : vector<16x22xf32> to vector<16x16xf32>
    %249 = vector.broadcast %247 : f32 to vector<16x16xf32>
    %250 = arith.mulf %249, %248 : vector<16x16xf32>
    %251 = arith.addf %246, %250 : vector<16x16xf32>
    %c0_95 = arith.constant 0 : index
    %c39 = arith.constant 39 : index
    %252 = memref.load %arg3[%c0_95, %c39] : memref<3x49xf32, #tpu.memory_space<smem>>
    %253 = vector.extract_strided_slice %231 {offsets = [0, 4], sizes = [16, 16], strides = [1, 1]} : vector<16x22xf32> to vector<16x16xf32>
    %254 = vector.broadcast %252 : f32 to vector<16x16xf32>
    %255 = arith.mulf %254, %253 : vector<16x16xf32>
    %256 = arith.addf %251, %255 : vector<16x16xf32>
    %c0_96 = arith.constant 0 : index
    %c40 = arith.constant 40 : index
    %257 = memref.load %arg3[%c0_96, %c40] : memref<3x49xf32, #tpu.memory_space<smem>>
    %258 = vector.extract_strided_slice %231 {offsets = [0, 5], sizes = [16, 16], strides = [1, 1]} : vector<16x22xf32> to vector<16x16xf32>
    %259 = vector.broadcast %257 : f32 to vector<16x16xf32>
    %260 = arith.mulf %259, %258 : vector<16x16xf32>
    %261 = arith.addf %256, %260 : vector<16x16xf32>
    %c0_97 = arith.constant 0 : index
    %c41 = arith.constant 41 : index
    %262 = memref.load %arg3[%c0_97, %c41] : memref<3x49xf32, #tpu.memory_space<smem>>
    %263 = vector.extract_strided_slice %231 {offsets = [0, 6], sizes = [16, 16], strides = [1, 1]} : vector<16x22xf32> to vector<16x16xf32>
    %264 = vector.broadcast %262 : f32 to vector<16x16xf32>
    %265 = arith.mulf %264, %263 : vector<16x16xf32>
    %266 = arith.addf %261, %265 : vector<16x16xf32>
    %c0_98 = arith.constant 0 : index
    %c6_99 = arith.constant 6 : index
    %c0_100 = arith.constant 0 : index
    %267 = vector.load %arg5[%c0_98, %c6_99, %c0_100] : memref<3x22x22xf32, #tpu.memory_space<vmem>>, vector<1x16x22xf32>
    %268 = vector.shape_cast %267 : vector<1x16x22xf32> to vector<16x22xf32>
    %c0_101 = arith.constant 0 : index
    %c42 = arith.constant 42 : index
    %269 = memref.load %arg3[%c0_101, %c42] : memref<3x49xf32, #tpu.memory_space<smem>>
    %270 = vector.extract_strided_slice %268 {offsets = [0, 0], sizes = [16, 16], strides = [1, 1]} : vector<16x22xf32> to vector<16x16xf32>
    %271 = vector.broadcast %269 : f32 to vector<16x16xf32>
    %272 = arith.mulf %271, %270 : vector<16x16xf32>
    %273 = arith.addf %266, %272 : vector<16x16xf32>
    %c0_102 = arith.constant 0 : index
    %c43 = arith.constant 43 : index
    %274 = memref.load %arg3[%c0_102, %c43] : memref<3x49xf32, #tpu.memory_space<smem>>
    %275 = vector.extract_strided_slice %268 {offsets = [0, 1], sizes = [16, 16], strides = [1, 1]} : vector<16x22xf32> to vector<16x16xf32>
    %276 = vector.broadcast %274 : f32 to vector<16x16xf32>
    %277 = arith.mulf %276, %275 : vector<16x16xf32>
    %278 = arith.addf %273, %277 : vector<16x16xf32>
    %c0_103 = arith.constant 0 : index
    %c44 = arith.constant 44 : index
    %279 = memref.load %arg3[%c0_103, %c44] : memref<3x49xf32, #tpu.memory_space<smem>>
    %280 = vector.extract_strided_slice %268 {offsets = [0, 2], sizes = [16, 16], strides = [1, 1]} : vector<16x22xf32> to vector<16x16xf32>
    %281 = vector.broadcast %279 : f32 to vector<16x16xf32>
    %282 = arith.mulf %281, %280 : vector<16x16xf32>
    %283 = arith.addf %278, %282 : vector<16x16xf32>
    %c0_104 = arith.constant 0 : index
    %c45 = arith.constant 45 : index
    %284 = memref.load %arg3[%c0_104, %c45] : memref<3x49xf32, #tpu.memory_space<smem>>
    %285 = vector.extract_strided_slice %268 {offsets = [0, 3], sizes = [16, 16], strides = [1, 1]} : vector<16x22xf32> to vector<16x16xf32>
    %286 = vector.broadcast %284 : f32 to vector<16x16xf32>
    %287 = arith.mulf %286, %285 : vector<16x16xf32>
    %288 = arith.addf %283, %287 : vector<16x16xf32>
    %c0_105 = arith.constant 0 : index
    %c46 = arith.constant 46 : index
    %289 = memref.load %arg3[%c0_105, %c46] : memref<3x49xf32, #tpu.memory_space<smem>>
    %290 = vector.extract_strided_slice %268 {offsets = [0, 4], sizes = [16, 16], strides = [1, 1]} : vector<16x22xf32> to vector<16x16xf32>
    %291 = vector.broadcast %289 : f32 to vector<16x16xf32>
    %292 = arith.mulf %291, %290 : vector<16x16xf32>
    %293 = arith.addf %288, %292 : vector<16x16xf32>
    %c0_106 = arith.constant 0 : index
    %c47 = arith.constant 47 : index
    %294 = memref.load %arg3[%c0_106, %c47] : memref<3x49xf32, #tpu.memory_space<smem>>
    %295 = vector.extract_strided_slice %268 {offsets = [0, 5], sizes = [16, 16], strides = [1, 1]} : vector<16x22xf32> to vector<16x16xf32>
    %296 = vector.broadcast %294 : f32 to vector<16x16xf32>
    %297 = arith.mulf %296, %295 : vector<16x16xf32>
    %298 = arith.addf %293, %297 : vector<16x16xf32>
    %c0_107 = arith.constant 0 : index
    %c48 = arith.constant 48 : index
    %299 = memref.load %arg3[%c0_107, %c48] : memref<3x49xf32, #tpu.memory_space<smem>>
    %300 = vector.extract_strided_slice %268 {offsets = [0, 6], sizes = [16, 16], strides = [1, 1]} : vector<16x22xf32> to vector<16x16xf32>
    %301 = vector.broadcast %299 : f32 to vector<16x16xf32>
    %302 = arith.mulf %301, %300 : vector<16x16xf32>
    %303 = arith.addf %298, %302 : vector<16x16xf32>
    %c1_108 = arith.constant 1 : index
    %c0_109 = arith.constant 0 : index
    %c0_110 = arith.constant 0 : index
    %304 = vector.load %arg5[%c1_108, %c0_109, %c0_110] : memref<3x22x22xf32, #tpu.memory_space<vmem>>, vector<1x16x22xf32>
    %305 = vector.shape_cast %304 : vector<1x16x22xf32> to vector<16x22xf32>
    %c1_111 = arith.constant 1 : index
    %c0_112 = arith.constant 0 : index
    %306 = memref.load %arg3[%c1_111, %c0_112] : memref<3x49xf32, #tpu.memory_space<smem>>
    %307 = vector.extract_strided_slice %305 {offsets = [0, 0], sizes = [16, 16], strides = [1, 1]} : vector<16x22xf32> to vector<16x16xf32>
    %308 = vector.broadcast %306 : f32 to vector<16x16xf32>
    %309 = arith.mulf %308, %307 : vector<16x16xf32>
    %310 = arith.addf %303, %309 : vector<16x16xf32>
    %c1_113 = arith.constant 1 : index
    %c1_114 = arith.constant 1 : index
    %311 = memref.load %arg3[%c1_113, %c1_114] : memref<3x49xf32, #tpu.memory_space<smem>>
    %312 = vector.extract_strided_slice %305 {offsets = [0, 1], sizes = [16, 16], strides = [1, 1]} : vector<16x22xf32> to vector<16x16xf32>
    %313 = vector.broadcast %311 : f32 to vector<16x16xf32>
    %314 = arith.mulf %313, %312 : vector<16x16xf32>
    %315 = arith.addf %310, %314 : vector<16x16xf32>
    %c1_115 = arith.constant 1 : index
    %c2_116 = arith.constant 2 : index
    %316 = memref.load %arg3[%c1_115, %c2_116] : memref<3x49xf32, #tpu.memory_space<smem>>
    %317 = vector.extract_strided_slice %305 {offsets = [0, 2], sizes = [16, 16], strides = [1, 1]} : vector<16x22xf32> to vector<16x16xf32>
    %318 = vector.broadcast %316 : f32 to vector<16x16xf32>
    %319 = arith.mulf %318, %317 : vector<16x16xf32>
    %320 = arith.addf %315, %319 : vector<16x16xf32>
    %c1_117 = arith.constant 1 : index
    %c3_118 = arith.constant 3 : index
    %321 = memref.load %arg3[%c1_117, %c3_118] : memref<3x49xf32, #tpu.memory_space<smem>>
    %322 = vector.extract_strided_slice %305 {offsets = [0, 3], sizes = [16, 16], strides = [1, 1]} : vector<16x22xf32> to vector<16x16xf32>
    %323 = vector.broadcast %321 : f32 to vector<16x16xf32>
    %324 = arith.mulf %323, %322 : vector<16x16xf32>
    %325 = arith.addf %320, %324 : vector<16x16xf32>
    %c1_119 = arith.constant 1 : index
    %c4_120 = arith.constant 4 : index
    %326 = memref.load %arg3[%c1_119, %c4_120] : memref<3x49xf32, #tpu.memory_space<smem>>
    %327 = vector.extract_strided_slice %305 {offsets = [0, 4], sizes = [16, 16], strides = [1, 1]} : vector<16x22xf32> to vector<16x16xf32>
    %328 = vector.broadcast %326 : f32 to vector<16x16xf32>
    %329 = arith.mulf %328, %327 : vector<16x16xf32>
    %330 = arith.addf %325, %329 : vector<16x16xf32>
    %c1_121 = arith.constant 1 : index
    %c5_122 = arith.constant 5 : index
    %331 = memref.load %arg3[%c1_121, %c5_122] : memref<3x49xf32, #tpu.memory_space<smem>>
    %332 = vector.extract_strided_slice %305 {offsets = [0, 5], sizes = [16, 16], strides = [1, 1]} : vector<16x22xf32> to vector<16x16xf32>
    %333 = vector.broadcast %331 : f32 to vector<16x16xf32>
    %334 = arith.mulf %333, %332 : vector<16x16xf32>
    %335 = arith.addf %330, %334 : vector<16x16xf32>
    %c1_123 = arith.constant 1 : index
    %c6_124 = arith.constant 6 : index
    %336 = memref.load %arg3[%c1_123, %c6_124] : memref<3x49xf32, #tpu.memory_space<smem>>
    %337 = vector.extract_strided_slice %305 {offsets = [0, 6], sizes = [16, 16], strides = [1, 1]} : vector<16x22xf32> to vector<16x16xf32>
    %338 = vector.broadcast %336 : f32 to vector<16x16xf32>
    %339 = arith.mulf %338, %337 : vector<16x16xf32>
    %340 = arith.addf %335, %339 : vector<16x16xf32>
    %c1_125 = arith.constant 1 : index
    %c1_126 = arith.constant 1 : index
    %c0_127 = arith.constant 0 : index
    %341 = vector.load %arg5[%c1_125, %c1_126, %c0_127] : memref<3x22x22xf32, #tpu.memory_space<vmem>>, vector<1x16x22xf32>
    %342 = vector.shape_cast %341 : vector<1x16x22xf32> to vector<16x22xf32>
    %c1_128 = arith.constant 1 : index
    %c7_129 = arith.constant 7 : index
    %343 = memref.load %arg3[%c1_128, %c7_129] : memref<3x49xf32, #tpu.memory_space<smem>>
    %344 = vector.extract_strided_slice %342 {offsets = [0, 0], sizes = [16, 16], strides = [1, 1]} : vector<16x22xf32> to vector<16x16xf32>
    %345 = vector.broadcast %343 : f32 to vector<16x16xf32>
    %346 = arith.mulf %345, %344 : vector<16x16xf32>
    %347 = arith.addf %340, %346 : vector<16x16xf32>
    %c1_130 = arith.constant 1 : index
    %c8_131 = arith.constant 8 : index
    %348 = memref.load %arg3[%c1_130, %c8_131] : memref<3x49xf32, #tpu.memory_space<smem>>
    %349 = vector.extract_strided_slice %342 {offsets = [0, 1], sizes = [16, 16], strides = [1, 1]} : vector<16x22xf32> to vector<16x16xf32>
    %350 = vector.broadcast %348 : f32 to vector<16x16xf32>
    %351 = arith.mulf %350, %349 : vector<16x16xf32>
    %352 = arith.addf %347, %351 : vector<16x16xf32>
    %c1_132 = arith.constant 1 : index
    %c9_133 = arith.constant 9 : index
    %353 = memref.load %arg3[%c1_132, %c9_133] : memref<3x49xf32, #tpu.memory_space<smem>>
    %354 = vector.extract_strided_slice %342 {offsets = [0, 2], sizes = [16, 16], strides = [1, 1]} : vector<16x22xf32> to vector<16x16xf32>
    %355 = vector.broadcast %353 : f32 to vector<16x16xf32>
    %356 = arith.mulf %355, %354 : vector<16x16xf32>
    %357 = arith.addf %352, %356 : vector<16x16xf32>
    %c1_134 = arith.constant 1 : index
    %c10_135 = arith.constant 10 : index
    %358 = memref.load %arg3[%c1_134, %c10_135] : memref<3x49xf32, #tpu.memory_space<smem>>
    %359 = vector.extract_strided_slice %342 {offsets = [0, 3], sizes = [16, 16], strides = [1, 1]} : vector<16x22xf32> to vector<16x16xf32>
    %360 = vector.broadcast %358 : f32 to vector<16x16xf32>
    %361 = arith.mulf %360, %359 : vector<16x16xf32>
    %362 = arith.addf %357, %361 : vector<16x16xf32>
    %c1_136 = arith.constant 1 : index
    %c11_137 = arith.constant 11 : index
    %363 = memref.load %arg3[%c1_136, %c11_137] : memref<3x49xf32, #tpu.memory_space<smem>>
    %364 = vector.extract_strided_slice %342 {offsets = [0, 4], sizes = [16, 16], strides = [1, 1]} : vector<16x22xf32> to vector<16x16xf32>
    %365 = vector.broadcast %363 : f32 to vector<16x16xf32>
    %366 = arith.mulf %365, %364 : vector<16x16xf32>
    %367 = arith.addf %362, %366 : vector<16x16xf32>
    %c1_138 = arith.constant 1 : index
    %c12_139 = arith.constant 12 : index
    %368 = memref.load %arg3[%c1_138, %c12_139] : memref<3x49xf32, #tpu.memory_space<smem>>
    %369 = vector.extract_strided_slice %342 {offsets = [0, 5], sizes = [16, 16], strides = [1, 1]} : vector<16x22xf32> to vector<16x16xf32>
    %370 = vector.broadcast %368 : f32 to vector<16x16xf32>
    %371 = arith.mulf %370, %369 : vector<16x16xf32>
    %372 = arith.addf %367, %371 : vector<16x16xf32>
    %c1_140 = arith.constant 1 : index
    %c13_141 = arith.constant 13 : index
    %373 = memref.load %arg3[%c1_140, %c13_141] : memref<3x49xf32, #tpu.memory_space<smem>>
    %374 = vector.extract_strided_slice %342 {offsets = [0, 6], sizes = [16, 16], strides = [1, 1]} : vector<16x22xf32> to vector<16x16xf32>
    %375 = vector.broadcast %373 : f32 to vector<16x16xf32>
    %376 = arith.mulf %375, %374 : vector<16x16xf32>
    %377 = arith.addf %372, %376 : vector<16x16xf32>
    %c1_142 = arith.constant 1 : index
    %c2_143 = arith.constant 2 : index
    %c0_144 = arith.constant 0 : index
    %378 = vector.load %arg5[%c1_142, %c2_143, %c0_144] : memref<3x22x22xf32, #tpu.memory_space<vmem>>, vector<1x16x22xf32>
    %379 = vector.shape_cast %378 : vector<1x16x22xf32> to vector<16x22xf32>
    %c1_145 = arith.constant 1 : index
    %c14_146 = arith.constant 14 : index
    %380 = memref.load %arg3[%c1_145, %c14_146] : memref<3x49xf32, #tpu.memory_space<smem>>
    %381 = vector.extract_strided_slice %379 {offsets = [0, 0], sizes = [16, 16], strides = [1, 1]} : vector<16x22xf32> to vector<16x16xf32>
    %382 = vector.broadcast %380 : f32 to vector<16x16xf32>
    %383 = arith.mulf %382, %381 : vector<16x16xf32>
    %384 = arith.addf %377, %383 : vector<16x16xf32>
    %c1_147 = arith.constant 1 : index
    %c15_148 = arith.constant 15 : index
    %385 = memref.load %arg3[%c1_147, %c15_148] : memref<3x49xf32, #tpu.memory_space<smem>>
    %386 = vector.extract_strided_slice %379 {offsets = [0, 1], sizes = [16, 16], strides = [1, 1]} : vector<16x22xf32> to vector<16x16xf32>
    %387 = vector.broadcast %385 : f32 to vector<16x16xf32>
    %388 = arith.mulf %387, %386 : vector<16x16xf32>
    %389 = arith.addf %384, %388 : vector<16x16xf32>
    %c1_149 = arith.constant 1 : index
    %c16_150 = arith.constant 16 : index
    %390 = memref.load %arg3[%c1_149, %c16_150] : memref<3x49xf32, #tpu.memory_space<smem>>
    %391 = vector.extract_strided_slice %379 {offsets = [0, 2], sizes = [16, 16], strides = [1, 1]} : vector<16x22xf32> to vector<16x16xf32>
    %392 = vector.broadcast %390 : f32 to vector<16x16xf32>
    %393 = arith.mulf %392, %391 : vector<16x16xf32>
    %394 = arith.addf %389, %393 : vector<16x16xf32>
    %c1_151 = arith.constant 1 : index
    %c17_152 = arith.constant 17 : index
    %395 = memref.load %arg3[%c1_151, %c17_152] : memref<3x49xf32, #tpu.memory_space<smem>>
    %396 = vector.extract_strided_slice %379 {offsets = [0, 3], sizes = [16, 16], strides = [1, 1]} : vector<16x22xf32> to vector<16x16xf32>
    %397 = vector.broadcast %395 : f32 to vector<16x16xf32>
    %398 = arith.mulf %397, %396 : vector<16x16xf32>
    %399 = arith.addf %394, %398 : vector<16x16xf32>
    %c1_153 = arith.constant 1 : index
    %c18_154 = arith.constant 18 : index
    %400 = memref.load %arg3[%c1_153, %c18_154] : memref<3x49xf32, #tpu.memory_space<smem>>
    %401 = vector.extract_strided_slice %379 {offsets = [0, 4], sizes = [16, 16], strides = [1, 1]} : vector<16x22xf32> to vector<16x16xf32>
    %402 = vector.broadcast %400 : f32 to vector<16x16xf32>
    %403 = arith.mulf %402, %401 : vector<16x16xf32>
    %404 = arith.addf %399, %403 : vector<16x16xf32>
    %c1_155 = arith.constant 1 : index
    %c19_156 = arith.constant 19 : index
    %405 = memref.load %arg3[%c1_155, %c19_156] : memref<3x49xf32, #tpu.memory_space<smem>>
    %406 = vector.extract_strided_slice %379 {offsets = [0, 5], sizes = [16, 16], strides = [1, 1]} : vector<16x22xf32> to vector<16x16xf32>
    %407 = vector.broadcast %405 : f32 to vector<16x16xf32>
    %408 = arith.mulf %407, %406 : vector<16x16xf32>
    %409 = arith.addf %404, %408 : vector<16x16xf32>
    %c1_157 = arith.constant 1 : index
    %c20_158 = arith.constant 20 : index
    %410 = memref.load %arg3[%c1_157, %c20_158] : memref<3x49xf32, #tpu.memory_space<smem>>
    %411 = vector.extract_strided_slice %379 {offsets = [0, 6], sizes = [16, 16], strides = [1, 1]} : vector<16x22xf32> to vector<16x16xf32>
    %412 = vector.broadcast %410 : f32 to vector<16x16xf32>
    %413 = arith.mulf %412, %411 : vector<16x16xf32>
    %414 = arith.addf %409, %413 : vector<16x16xf32>
    %c1_159 = arith.constant 1 : index
    %c3_160 = arith.constant 3 : index
    %c0_161 = arith.constant 0 : index
    %415 = vector.load %arg5[%c1_159, %c3_160, %c0_161] : memref<3x22x22xf32, #tpu.memory_space<vmem>>, vector<1x16x22xf32>
    %416 = vector.shape_cast %415 : vector<1x16x22xf32> to vector<16x22xf32>
    %c1_162 = arith.constant 1 : index
    %c21_163 = arith.constant 21 : index
    %417 = memref.load %arg3[%c1_162, %c21_163] : memref<3x49xf32, #tpu.memory_space<smem>>
    %418 = vector.extract_strided_slice %416 {offsets = [0, 0], sizes = [16, 16], strides = [1, 1]} : vector<16x22xf32> to vector<16x16xf32>
    %419 = vector.broadcast %417 : f32 to vector<16x16xf32>
    %420 = arith.mulf %419, %418 : vector<16x16xf32>
    %421 = arith.addf %414, %420 : vector<16x16xf32>
    %c1_164 = arith.constant 1 : index
    %c22_165 = arith.constant 22 : index
    %422 = memref.load %arg3[%c1_164, %c22_165] : memref<3x49xf32, #tpu.memory_space<smem>>
    %423 = vector.extract_strided_slice %416 {offsets = [0, 1], sizes = [16, 16], strides = [1, 1]} : vector<16x22xf32> to vector<16x16xf32>
    %424 = vector.broadcast %422 : f32 to vector<16x16xf32>
    %425 = arith.mulf %424, %423 : vector<16x16xf32>
    %426 = arith.addf %421, %425 : vector<16x16xf32>
    %c1_166 = arith.constant 1 : index
    %c23_167 = arith.constant 23 : index
    %427 = memref.load %arg3[%c1_166, %c23_167] : memref<3x49xf32, #tpu.memory_space<smem>>
    %428 = vector.extract_strided_slice %416 {offsets = [0, 2], sizes = [16, 16], strides = [1, 1]} : vector<16x22xf32> to vector<16x16xf32>
    %429 = vector.broadcast %427 : f32 to vector<16x16xf32>
    %430 = arith.mulf %429, %428 : vector<16x16xf32>
    %431 = arith.addf %426, %430 : vector<16x16xf32>
    %c1_168 = arith.constant 1 : index
    %c24_169 = arith.constant 24 : index
    %432 = memref.load %arg3[%c1_168, %c24_169] : memref<3x49xf32, #tpu.memory_space<smem>>
    %433 = vector.extract_strided_slice %416 {offsets = [0, 3], sizes = [16, 16], strides = [1, 1]} : vector<16x22xf32> to vector<16x16xf32>
    %434 = vector.broadcast %432 : f32 to vector<16x16xf32>
    %435 = arith.mulf %434, %433 : vector<16x16xf32>
    %436 = arith.addf %431, %435 : vector<16x16xf32>
    %c1_170 = arith.constant 1 : index
    %c25_171 = arith.constant 25 : index
    %437 = memref.load %arg3[%c1_170, %c25_171] : memref<3x49xf32, #tpu.memory_space<smem>>
    %438 = vector.extract_strided_slice %416 {offsets = [0, 4], sizes = [16, 16], strides = [1, 1]} : vector<16x22xf32> to vector<16x16xf32>
    %439 = vector.broadcast %437 : f32 to vector<16x16xf32>
    %440 = arith.mulf %439, %438 : vector<16x16xf32>
    %441 = arith.addf %436, %440 : vector<16x16xf32>
    %c1_172 = arith.constant 1 : index
    %c26_173 = arith.constant 26 : index
    %442 = memref.load %arg3[%c1_172, %c26_173] : memref<3x49xf32, #tpu.memory_space<smem>>
    %443 = vector.extract_strided_slice %416 {offsets = [0, 5], sizes = [16, 16], strides = [1, 1]} : vector<16x22xf32> to vector<16x16xf32>
    %444 = vector.broadcast %442 : f32 to vector<16x16xf32>
    %445 = arith.mulf %444, %443 : vector<16x16xf32>
    %446 = arith.addf %441, %445 : vector<16x16xf32>
    %c1_174 = arith.constant 1 : index
    %c27_175 = arith.constant 27 : index
    %447 = memref.load %arg3[%c1_174, %c27_175] : memref<3x49xf32, #tpu.memory_space<smem>>
    %448 = vector.extract_strided_slice %416 {offsets = [0, 6], sizes = [16, 16], strides = [1, 1]} : vector<16x22xf32> to vector<16x16xf32>
    %449 = vector.broadcast %447 : f32 to vector<16x16xf32>
    %450 = arith.mulf %449, %448 : vector<16x16xf32>
    %451 = arith.addf %446, %450 : vector<16x16xf32>
    %c1_176 = arith.constant 1 : index
    %c4_177 = arith.constant 4 : index
    %c0_178 = arith.constant 0 : index
    %452 = vector.load %arg5[%c1_176, %c4_177, %c0_178] : memref<3x22x22xf32, #tpu.memory_space<vmem>>, vector<1x16x22xf32>
    %453 = vector.shape_cast %452 : vector<1x16x22xf32> to vector<16x22xf32>
    %c1_179 = arith.constant 1 : index
    %c28_180 = arith.constant 28 : index
    %454 = memref.load %arg3[%c1_179, %c28_180] : memref<3x49xf32, #tpu.memory_space<smem>>
    %455 = vector.extract_strided_slice %453 {offsets = [0, 0], sizes = [16, 16], strides = [1, 1]} : vector<16x22xf32> to vector<16x16xf32>
    %456 = vector.broadcast %454 : f32 to vector<16x16xf32>
    %457 = arith.mulf %456, %455 : vector<16x16xf32>
    %458 = arith.addf %451, %457 : vector<16x16xf32>
    %c1_181 = arith.constant 1 : index
    %c29_182 = arith.constant 29 : index
    %459 = memref.load %arg3[%c1_181, %c29_182] : memref<3x49xf32, #tpu.memory_space<smem>>
    %460 = vector.extract_strided_slice %453 {offsets = [0, 1], sizes = [16, 16], strides = [1, 1]} : vector<16x22xf32> to vector<16x16xf32>
    %461 = vector.broadcast %459 : f32 to vector<16x16xf32>
    %462 = arith.mulf %461, %460 : vector<16x16xf32>
    %463 = arith.addf %458, %462 : vector<16x16xf32>
    %c1_183 = arith.constant 1 : index
    %c30_184 = arith.constant 30 : index
    %464 = memref.load %arg3[%c1_183, %c30_184] : memref<3x49xf32, #tpu.memory_space<smem>>
    %465 = vector.extract_strided_slice %453 {offsets = [0, 2], sizes = [16, 16], strides = [1, 1]} : vector<16x22xf32> to vector<16x16xf32>
    %466 = vector.broadcast %464 : f32 to vector<16x16xf32>
    %467 = arith.mulf %466, %465 : vector<16x16xf32>
    %468 = arith.addf %463, %467 : vector<16x16xf32>
    %c1_185 = arith.constant 1 : index
    %c31_186 = arith.constant 31 : index
    %469 = memref.load %arg3[%c1_185, %c31_186] : memref<3x49xf32, #tpu.memory_space<smem>>
    %470 = vector.extract_strided_slice %453 {offsets = [0, 3], sizes = [16, 16], strides = [1, 1]} : vector<16x22xf32> to vector<16x16xf32>
    %471 = vector.broadcast %469 : f32 to vector<16x16xf32>
    %472 = arith.mulf %471, %470 : vector<16x16xf32>
    %473 = arith.addf %468, %472 : vector<16x16xf32>
    %c1_187 = arith.constant 1 : index
    %c32_188 = arith.constant 32 : index
    %474 = memref.load %arg3[%c1_187, %c32_188] : memref<3x49xf32, #tpu.memory_space<smem>>
    %475 = vector.extract_strided_slice %453 {offsets = [0, 4], sizes = [16, 16], strides = [1, 1]} : vector<16x22xf32> to vector<16x16xf32>
    %476 = vector.broadcast %474 : f32 to vector<16x16xf32>
    %477 = arith.mulf %476, %475 : vector<16x16xf32>
    %478 = arith.addf %473, %477 : vector<16x16xf32>
    %c1_189 = arith.constant 1 : index
    %c33_190 = arith.constant 33 : index
    %479 = memref.load %arg3[%c1_189, %c33_190] : memref<3x49xf32, #tpu.memory_space<smem>>
    %480 = vector.extract_strided_slice %453 {offsets = [0, 5], sizes = [16, 16], strides = [1, 1]} : vector<16x22xf32> to vector<16x16xf32>
    %481 = vector.broadcast %479 : f32 to vector<16x16xf32>
    %482 = arith.mulf %481, %480 : vector<16x16xf32>
    %483 = arith.addf %478, %482 : vector<16x16xf32>
    %c1_191 = arith.constant 1 : index
    %c34_192 = arith.constant 34 : index
    %484 = memref.load %arg3[%c1_191, %c34_192] : memref<3x49xf32, #tpu.memory_space<smem>>
    %485 = vector.extract_strided_slice %453 {offsets = [0, 6], sizes = [16, 16], strides = [1, 1]} : vector<16x22xf32> to vector<16x16xf32>
    %486 = vector.broadcast %484 : f32 to vector<16x16xf32>
    %487 = arith.mulf %486, %485 : vector<16x16xf32>
    %488 = arith.addf %483, %487 : vector<16x16xf32>
    %c1_193 = arith.constant 1 : index
    %c5_194 = arith.constant 5 : index
    %c0_195 = arith.constant 0 : index
    %489 = vector.load %arg5[%c1_193, %c5_194, %c0_195] : memref<3x22x22xf32, #tpu.memory_space<vmem>>, vector<1x16x22xf32>
    %490 = vector.shape_cast %489 : vector<1x16x22xf32> to vector<16x22xf32>
    %c1_196 = arith.constant 1 : index
    %c35_197 = arith.constant 35 : index
    %491 = memref.load %arg3[%c1_196, %c35_197] : memref<3x49xf32, #tpu.memory_space<smem>>
    %492 = vector.extract_strided_slice %490 {offsets = [0, 0], sizes = [16, 16], strides = [1, 1]} : vector<16x22xf32> to vector<16x16xf32>
    %493 = vector.broadcast %491 : f32 to vector<16x16xf32>
    %494 = arith.mulf %493, %492 : vector<16x16xf32>
    %495 = arith.addf %488, %494 : vector<16x16xf32>
    %c1_198 = arith.constant 1 : index
    %c36_199 = arith.constant 36 : index
    %496 = memref.load %arg3[%c1_198, %c36_199] : memref<3x49xf32, #tpu.memory_space<smem>>
    %497 = vector.extract_strided_slice %490 {offsets = [0, 1], sizes = [16, 16], strides = [1, 1]} : vector<16x22xf32> to vector<16x16xf32>
    %498 = vector.broadcast %496 : f32 to vector<16x16xf32>
    %499 = arith.mulf %498, %497 : vector<16x16xf32>
    %500 = arith.addf %495, %499 : vector<16x16xf32>
    %c1_200 = arith.constant 1 : index
    %c37_201 = arith.constant 37 : index
    %501 = memref.load %arg3[%c1_200, %c37_201] : memref<3x49xf32, #tpu.memory_space<smem>>
    %502 = vector.extract_strided_slice %490 {offsets = [0, 2], sizes = [16, 16], strides = [1, 1]} : vector<16x22xf32> to vector<16x16xf32>
    %503 = vector.broadcast %501 : f32 to vector<16x16xf32>
    %504 = arith.mulf %503, %502 : vector<16x16xf32>
    %505 = arith.addf %500, %504 : vector<16x16xf32>
    %c1_202 = arith.constant 1 : index
    %c38_203 = arith.constant 38 : index
    %506 = memref.load %arg3[%c1_202, %c38_203] : memref<3x49xf32, #tpu.memory_space<smem>>
    %507 = vector.extract_strided_slice %490 {offsets = [0, 3], sizes = [16, 16], strides = [1, 1]} : vector<16x22xf32> to vector<16x16xf32>
    %508 = vector.broadcast %506 : f32 to vector<16x16xf32>
    %509 = arith.mulf %508, %507 : vector<16x16xf32>
    %510 = arith.addf %505, %509 : vector<16x16xf32>
    %c1_204 = arith.constant 1 : index
    %c39_205 = arith.constant 39 : index
    %511 = memref.load %arg3[%c1_204, %c39_205] : memref<3x49xf32, #tpu.memory_space<smem>>
    %512 = vector.extract_strided_slice %490 {offsets = [0, 4], sizes = [16, 16], strides = [1, 1]} : vector<16x22xf32> to vector<16x16xf32>
    %513 = vector.broadcast %511 : f32 to vector<16x16xf32>
    %514 = arith.mulf %513, %512 : vector<16x16xf32>
    %515 = arith.addf %510, %514 : vector<16x16xf32>
    %c1_206 = arith.constant 1 : index
    %c40_207 = arith.constant 40 : index
    %516 = memref.load %arg3[%c1_206, %c40_207] : memref<3x49xf32, #tpu.memory_space<smem>>
    %517 = vector.extract_strided_slice %490 {offsets = [0, 5], sizes = [16, 16], strides = [1, 1]} : vector<16x22xf32> to vector<16x16xf32>
    %518 = vector.broadcast %516 : f32 to vector<16x16xf32>
    %519 = arith.mulf %518, %517 : vector<16x16xf32>
    %520 = arith.addf %515, %519 : vector<16x16xf32>
    %c1_208 = arith.constant 1 : index
    %c41_209 = arith.constant 41 : index
    %521 = memref.load %arg3[%c1_208, %c41_209] : memref<3x49xf32, #tpu.memory_space<smem>>
    %522 = vector.extract_strided_slice %490 {offsets = [0, 6], sizes = [16, 16], strides = [1, 1]} : vector<16x22xf32> to vector<16x16xf32>
    %523 = vector.broadcast %521 : f32 to vector<16x16xf32>
    %524 = arith.mulf %523, %522 : vector<16x16xf32>
    %525 = arith.addf %520, %524 : vector<16x16xf32>
    %c1_210 = arith.constant 1 : index
    %c6_211 = arith.constant 6 : index
    %c0_212 = arith.constant 0 : index
    %526 = vector.load %arg5[%c1_210, %c6_211, %c0_212] : memref<3x22x22xf32, #tpu.memory_space<vmem>>, vector<1x16x22xf32>
    %527 = vector.shape_cast %526 : vector<1x16x22xf32> to vector<16x22xf32>
    %c1_213 = arith.constant 1 : index
    %c42_214 = arith.constant 42 : index
    %528 = memref.load %arg3[%c1_213, %c42_214] : memref<3x49xf32, #tpu.memory_space<smem>>
    %529 = vector.extract_strided_slice %527 {offsets = [0, 0], sizes = [16, 16], strides = [1, 1]} : vector<16x22xf32> to vector<16x16xf32>
    %530 = vector.broadcast %528 : f32 to vector<16x16xf32>
    %531 = arith.mulf %530, %529 : vector<16x16xf32>
    %532 = arith.addf %525, %531 : vector<16x16xf32>
    %c1_215 = arith.constant 1 : index
    %c43_216 = arith.constant 43 : index
    %533 = memref.load %arg3[%c1_215, %c43_216] : memref<3x49xf32, #tpu.memory_space<smem>>
    %534 = vector.extract_strided_slice %527 {offsets = [0, 1], sizes = [16, 16], strides = [1, 1]} : vector<16x22xf32> to vector<16x16xf32>
    %535 = vector.broadcast %533 : f32 to vector<16x16xf32>
    %536 = arith.mulf %535, %534 : vector<16x16xf32>
    %537 = arith.addf %532, %536 : vector<16x16xf32>
    %c1_217 = arith.constant 1 : index
    %c44_218 = arith.constant 44 : index
    %538 = memref.load %arg3[%c1_217, %c44_218] : memref<3x49xf32, #tpu.memory_space<smem>>
    %539 = vector.extract_strided_slice %527 {offsets = [0, 2], sizes = [16, 16], strides = [1, 1]} : vector<16x22xf32> to vector<16x16xf32>
    %540 = vector.broadcast %538 : f32 to vector<16x16xf32>
    %541 = arith.mulf %540, %539 : vector<16x16xf32>
    %542 = arith.addf %537, %541 : vector<16x16xf32>
    %c1_219 = arith.constant 1 : index
    %c45_220 = arith.constant 45 : index
    %543 = memref.load %arg3[%c1_219, %c45_220] : memref<3x49xf32, #tpu.memory_space<smem>>
    %544 = vector.extract_strided_slice %527 {offsets = [0, 3], sizes = [16, 16], strides = [1, 1]} : vector<16x22xf32> to vector<16x16xf32>
    %545 = vector.broadcast %543 : f32 to vector<16x16xf32>
    %546 = arith.mulf %545, %544 : vector<16x16xf32>
    %547 = arith.addf %542, %546 : vector<16x16xf32>
    %c1_221 = arith.constant 1 : index
    %c46_222 = arith.constant 46 : index
    %548 = memref.load %arg3[%c1_221, %c46_222] : memref<3x49xf32, #tpu.memory_space<smem>>
    %549 = vector.extract_strided_slice %527 {offsets = [0, 4], sizes = [16, 16], strides = [1, 1]} : vector<16x22xf32> to vector<16x16xf32>
    %550 = vector.broadcast %548 : f32 to vector<16x16xf32>
    %551 = arith.mulf %550, %549 : vector<16x16xf32>
    %552 = arith.addf %547, %551 : vector<16x16xf32>
    %c1_223 = arith.constant 1 : index
    %c47_224 = arith.constant 47 : index
    %553 = memref.load %arg3[%c1_223, %c47_224] : memref<3x49xf32, #tpu.memory_space<smem>>
    %554 = vector.extract_strided_slice %527 {offsets = [0, 5], sizes = [16, 16], strides = [1, 1]} : vector<16x22xf32> to vector<16x16xf32>
    %555 = vector.broadcast %553 : f32 to vector<16x16xf32>
    %556 = arith.mulf %555, %554 : vector<16x16xf32>
    %557 = arith.addf %552, %556 : vector<16x16xf32>
    %c1_225 = arith.constant 1 : index
    %c48_226 = arith.constant 48 : index
    %558 = memref.load %arg3[%c1_225, %c48_226] : memref<3x49xf32, #tpu.memory_space<smem>>
    %559 = vector.extract_strided_slice %527 {offsets = [0, 6], sizes = [16, 16], strides = [1, 1]} : vector<16x22xf32> to vector<16x16xf32>
    %560 = vector.broadcast %558 : f32 to vector<16x16xf32>
    %561 = arith.mulf %560, %559 : vector<16x16xf32>
    %562 = arith.addf %557, %561 : vector<16x16xf32>
    %c2_227 = arith.constant 2 : index
    %c0_228 = arith.constant 0 : index
    %c0_229 = arith.constant 0 : index
    %563 = vector.load %arg5[%c2_227, %c0_228, %c0_229] : memref<3x22x22xf32, #tpu.memory_space<vmem>>, vector<1x16x22xf32>
    %564 = vector.shape_cast %563 : vector<1x16x22xf32> to vector<16x22xf32>
    %c2_230 = arith.constant 2 : index
    %c0_231 = arith.constant 0 : index
    %565 = memref.load %arg3[%c2_230, %c0_231] : memref<3x49xf32, #tpu.memory_space<smem>>
    %566 = vector.extract_strided_slice %564 {offsets = [0, 0], sizes = [16, 16], strides = [1, 1]} : vector<16x22xf32> to vector<16x16xf32>
    %567 = vector.broadcast %565 : f32 to vector<16x16xf32>
    %568 = arith.mulf %567, %566 : vector<16x16xf32>
    %569 = arith.addf %562, %568 : vector<16x16xf32>
    %c2_232 = arith.constant 2 : index
    %c1_233 = arith.constant 1 : index
    %570 = memref.load %arg3[%c2_232, %c1_233] : memref<3x49xf32, #tpu.memory_space<smem>>
    %571 = vector.extract_strided_slice %564 {offsets = [0, 1], sizes = [16, 16], strides = [1, 1]} : vector<16x22xf32> to vector<16x16xf32>
    %572 = vector.broadcast %570 : f32 to vector<16x16xf32>
    %573 = arith.mulf %572, %571 : vector<16x16xf32>
    %574 = arith.addf %569, %573 : vector<16x16xf32>
    %c2_234 = arith.constant 2 : index
    %c2_235 = arith.constant 2 : index
    %575 = memref.load %arg3[%c2_234, %c2_235] : memref<3x49xf32, #tpu.memory_space<smem>>
    %576 = vector.extract_strided_slice %564 {offsets = [0, 2], sizes = [16, 16], strides = [1, 1]} : vector<16x22xf32> to vector<16x16xf32>
    %577 = vector.broadcast %575 : f32 to vector<16x16xf32>
    %578 = arith.mulf %577, %576 : vector<16x16xf32>
    %579 = arith.addf %574, %578 : vector<16x16xf32>
    %c2_236 = arith.constant 2 : index
    %c3_237 = arith.constant 3 : index
    %580 = memref.load %arg3[%c2_236, %c3_237] : memref<3x49xf32, #tpu.memory_space<smem>>
    %581 = vector.extract_strided_slice %564 {offsets = [0, 3], sizes = [16, 16], strides = [1, 1]} : vector<16x22xf32> to vector<16x16xf32>
    %582 = vector.broadcast %580 : f32 to vector<16x16xf32>
    %583 = arith.mulf %582, %581 : vector<16x16xf32>
    %584 = arith.addf %579, %583 : vector<16x16xf32>
    %c2_238 = arith.constant 2 : index
    %c4_239 = arith.constant 4 : index
    %585 = memref.load %arg3[%c2_238, %c4_239] : memref<3x49xf32, #tpu.memory_space<smem>>
    %586 = vector.extract_strided_slice %564 {offsets = [0, 4], sizes = [16, 16], strides = [1, 1]} : vector<16x22xf32> to vector<16x16xf32>
    %587 = vector.broadcast %585 : f32 to vector<16x16xf32>
    %588 = arith.mulf %587, %586 : vector<16x16xf32>
    %589 = arith.addf %584, %588 : vector<16x16xf32>
    %c2_240 = arith.constant 2 : index
    %c5_241 = arith.constant 5 : index
    %590 = memref.load %arg3[%c2_240, %c5_241] : memref<3x49xf32, #tpu.memory_space<smem>>
    %591 = vector.extract_strided_slice %564 {offsets = [0, 5], sizes = [16, 16], strides = [1, 1]} : vector<16x22xf32> to vector<16x16xf32>
    %592 = vector.broadcast %590 : f32 to vector<16x16xf32>
    %593 = arith.mulf %592, %591 : vector<16x16xf32>
    %594 = arith.addf %589, %593 : vector<16x16xf32>
    %c2_242 = arith.constant 2 : index
    %c6_243 = arith.constant 6 : index
    %595 = memref.load %arg3[%c2_242, %c6_243] : memref<3x49xf32, #tpu.memory_space<smem>>
    %596 = vector.extract_strided_slice %564 {offsets = [0, 6], sizes = [16, 16], strides = [1, 1]} : vector<16x22xf32> to vector<16x16xf32>
    %597 = vector.broadcast %595 : f32 to vector<16x16xf32>
    %598 = arith.mulf %597, %596 : vector<16x16xf32>
    %599 = arith.addf %594, %598 : vector<16x16xf32>
    %c2_244 = arith.constant 2 : index
    %c1_245 = arith.constant 1 : index
    %c0_246 = arith.constant 0 : index
    %600 = vector.load %arg5[%c2_244, %c1_245, %c0_246] : memref<3x22x22xf32, #tpu.memory_space<vmem>>, vector<1x16x22xf32>
    %601 = vector.shape_cast %600 : vector<1x16x22xf32> to vector<16x22xf32>
    %c2_247 = arith.constant 2 : index
    %c7_248 = arith.constant 7 : index
    %602 = memref.load %arg3[%c2_247, %c7_248] : memref<3x49xf32, #tpu.memory_space<smem>>
    %603 = vector.extract_strided_slice %601 {offsets = [0, 0], sizes = [16, 16], strides = [1, 1]} : vector<16x22xf32> to vector<16x16xf32>
    %604 = vector.broadcast %602 : f32 to vector<16x16xf32>
    %605 = arith.mulf %604, %603 : vector<16x16xf32>
    %606 = arith.addf %599, %605 : vector<16x16xf32>
    %c2_249 = arith.constant 2 : index
    %c8_250 = arith.constant 8 : index
    %607 = memref.load %arg3[%c2_249, %c8_250] : memref<3x49xf32, #tpu.memory_space<smem>>
    %608 = vector.extract_strided_slice %601 {offsets = [0, 1], sizes = [16, 16], strides = [1, 1]} : vector<16x22xf32> to vector<16x16xf32>
    %609 = vector.broadcast %607 : f32 to vector<16x16xf32>
    %610 = arith.mulf %609, %608 : vector<16x16xf32>
    %611 = arith.addf %606, %610 : vector<16x16xf32>
    %c2_251 = arith.constant 2 : index
    %c9_252 = arith.constant 9 : index
    %612 = memref.load %arg3[%c2_251, %c9_252] : memref<3x49xf32, #tpu.memory_space<smem>>
    %613 = vector.extract_strided_slice %601 {offsets = [0, 2], sizes = [16, 16], strides = [1, 1]} : vector<16x22xf32> to vector<16x16xf32>
    %614 = vector.broadcast %612 : f32 to vector<16x16xf32>
    %615 = arith.mulf %614, %613 : vector<16x16xf32>
    %616 = arith.addf %611, %615 : vector<16x16xf32>
    %c2_253 = arith.constant 2 : index
    %c10_254 = arith.constant 10 : index
    %617 = memref.load %arg3[%c2_253, %c10_254] : memref<3x49xf32, #tpu.memory_space<smem>>
    %618 = vector.extract_strided_slice %601 {offsets = [0, 3], sizes = [16, 16], strides = [1, 1]} : vector<16x22xf32> to vector<16x16xf32>
    %619 = vector.broadcast %617 : f32 to vector<16x16xf32>
    %620 = arith.mulf %619, %618 : vector<16x16xf32>
    %621 = arith.addf %616, %620 : vector<16x16xf32>
    %c2_255 = arith.constant 2 : index
    %c11_256 = arith.constant 11 : index
    %622 = memref.load %arg3[%c2_255, %c11_256] : memref<3x49xf32, #tpu.memory_space<smem>>
    %623 = vector.extract_strided_slice %601 {offsets = [0, 4], sizes = [16, 16], strides = [1, 1]} : vector<16x22xf32> to vector<16x16xf32>
    %624 = vector.broadcast %622 : f32 to vector<16x16xf32>
    %625 = arith.mulf %624, %623 : vector<16x16xf32>
    %626 = arith.addf %621, %625 : vector<16x16xf32>
    %c2_257 = arith.constant 2 : index
    %c12_258 = arith.constant 12 : index
    %627 = memref.load %arg3[%c2_257, %c12_258] : memref<3x49xf32, #tpu.memory_space<smem>>
    %628 = vector.extract_strided_slice %601 {offsets = [0, 5], sizes = [16, 16], strides = [1, 1]} : vector<16x22xf32> to vector<16x16xf32>
    %629 = vector.broadcast %627 : f32 to vector<16x16xf32>
    %630 = arith.mulf %629, %628 : vector<16x16xf32>
    %631 = arith.addf %626, %630 : vector<16x16xf32>
    %c2_259 = arith.constant 2 : index
    %c13_260 = arith.constant 13 : index
    %632 = memref.load %arg3[%c2_259, %c13_260] : memref<3x49xf32, #tpu.memory_space<smem>>
    %633 = vector.extract_strided_slice %601 {offsets = [0, 6], sizes = [16, 16], strides = [1, 1]} : vector<16x22xf32> to vector<16x16xf32>
    %634 = vector.broadcast %632 : f32 to vector<16x16xf32>
    %635 = arith.mulf %634, %633 : vector<16x16xf32>
    %636 = arith.addf %631, %635 : vector<16x16xf32>
    %c2_261 = arith.constant 2 : index
    %c2_262 = arith.constant 2 : index
    %c0_263 = arith.constant 0 : index
    %637 = vector.load %arg5[%c2_261, %c2_262, %c0_263] : memref<3x22x22xf32, #tpu.memory_space<vmem>>, vector<1x16x22xf32>
    %638 = vector.shape_cast %637 : vector<1x16x22xf32> to vector<16x22xf32>
    %c2_264 = arith.constant 2 : index
    %c14_265 = arith.constant 14 : index
    %639 = memref.load %arg3[%c2_264, %c14_265] : memref<3x49xf32, #tpu.memory_space<smem>>
    %640 = vector.extract_strided_slice %638 {offsets = [0, 0], sizes = [16, 16], strides = [1, 1]} : vector<16x22xf32> to vector<16x16xf32>
    %641 = vector.broadcast %639 : f32 to vector<16x16xf32>
    %642 = arith.mulf %641, %640 : vector<16x16xf32>
    %643 = arith.addf %636, %642 : vector<16x16xf32>
    %c2_266 = arith.constant 2 : index
    %c15_267 = arith.constant 15 : index
    %644 = memref.load %arg3[%c2_266, %c15_267] : memref<3x49xf32, #tpu.memory_space<smem>>
    %645 = vector.extract_strided_slice %638 {offsets = [0, 1], sizes = [16, 16], strides = [1, 1]} : vector<16x22xf32> to vector<16x16xf32>
    %646 = vector.broadcast %644 : f32 to vector<16x16xf32>
    %647 = arith.mulf %646, %645 : vector<16x16xf32>
    %648 = arith.addf %643, %647 : vector<16x16xf32>
    %c2_268 = arith.constant 2 : index
    %c16_269 = arith.constant 16 : index
    %649 = memref.load %arg3[%c2_268, %c16_269] : memref<3x49xf32, #tpu.memory_space<smem>>
    %650 = vector.extract_strided_slice %638 {offsets = [0, 2], sizes = [16, 16], strides = [1, 1]} : vector<16x22xf32> to vector<16x16xf32>
    %651 = vector.broadcast %649 : f32 to vector<16x16xf32>
    %652 = arith.mulf %651, %650 : vector<16x16xf32>
    %653 = arith.addf %648, %652 : vector<16x16xf32>
    %c2_270 = arith.constant 2 : index
    %c17_271 = arith.constant 17 : index
    %654 = memref.load %arg3[%c2_270, %c17_271] : memref<3x49xf32, #tpu.memory_space<smem>>
    %655 = vector.extract_strided_slice %638 {offsets = [0, 3], sizes = [16, 16], strides = [1, 1]} : vector<16x22xf32> to vector<16x16xf32>
    %656 = vector.broadcast %654 : f32 to vector<16x16xf32>
    %657 = arith.mulf %656, %655 : vector<16x16xf32>
    %658 = arith.addf %653, %657 : vector<16x16xf32>
    %c2_272 = arith.constant 2 : index
    %c18_273 = arith.constant 18 : index
    %659 = memref.load %arg3[%c2_272, %c18_273] : memref<3x49xf32, #tpu.memory_space<smem>>
    %660 = vector.extract_strided_slice %638 {offsets = [0, 4], sizes = [16, 16], strides = [1, 1]} : vector<16x22xf32> to vector<16x16xf32>
    %661 = vector.broadcast %659 : f32 to vector<16x16xf32>
    %662 = arith.mulf %661, %660 : vector<16x16xf32>
    %663 = arith.addf %658, %662 : vector<16x16xf32>
    %c2_274 = arith.constant 2 : index
    %c19_275 = arith.constant 19 : index
    %664 = memref.load %arg3[%c2_274, %c19_275] : memref<3x49xf32, #tpu.memory_space<smem>>
    %665 = vector.extract_strided_slice %638 {offsets = [0, 5], sizes = [16, 16], strides = [1, 1]} : vector<16x22xf32> to vector<16x16xf32>
    %666 = vector.broadcast %664 : f32 to vector<16x16xf32>
    %667 = arith.mulf %666, %665 : vector<16x16xf32>
    %668 = arith.addf %663, %667 : vector<16x16xf32>
    %c2_276 = arith.constant 2 : index
    %c20_277 = arith.constant 20 : index
    %669 = memref.load %arg3[%c2_276, %c20_277] : memref<3x49xf32, #tpu.memory_space<smem>>
    %670 = vector.extract_strided_slice %638 {offsets = [0, 6], sizes = [16, 16], strides = [1, 1]} : vector<16x22xf32> to vector<16x16xf32>
    %671 = vector.broadcast %669 : f32 to vector<16x16xf32>
    %672 = arith.mulf %671, %670 : vector<16x16xf32>
    %673 = arith.addf %668, %672 : vector<16x16xf32>
    %c2_278 = arith.constant 2 : index
    %c3_279 = arith.constant 3 : index
    %c0_280 = arith.constant 0 : index
    %674 = vector.load %arg5[%c2_278, %c3_279, %c0_280] : memref<3x22x22xf32, #tpu.memory_space<vmem>>, vector<1x16x22xf32>
    %675 = vector.shape_cast %674 : vector<1x16x22xf32> to vector<16x22xf32>
    %c2_281 = arith.constant 2 : index
    %c21_282 = arith.constant 21 : index
    %676 = memref.load %arg3[%c2_281, %c21_282] : memref<3x49xf32, #tpu.memory_space<smem>>
    %677 = vector.extract_strided_slice %675 {offsets = [0, 0], sizes = [16, 16], strides = [1, 1]} : vector<16x22xf32> to vector<16x16xf32>
    %678 = vector.broadcast %676 : f32 to vector<16x16xf32>
    %679 = arith.mulf %678, %677 : vector<16x16xf32>
    %680 = arith.addf %673, %679 : vector<16x16xf32>
    %c2_283 = arith.constant 2 : index
    %c22_284 = arith.constant 22 : index
    %681 = memref.load %arg3[%c2_283, %c22_284] : memref<3x49xf32, #tpu.memory_space<smem>>
    %682 = vector.extract_strided_slice %675 {offsets = [0, 1], sizes = [16, 16], strides = [1, 1]} : vector<16x22xf32> to vector<16x16xf32>
    %683 = vector.broadcast %681 : f32 to vector<16x16xf32>
    %684 = arith.mulf %683, %682 : vector<16x16xf32>
    %685 = arith.addf %680, %684 : vector<16x16xf32>
    %c2_285 = arith.constant 2 : index
    %c23_286 = arith.constant 23 : index
    %686 = memref.load %arg3[%c2_285, %c23_286] : memref<3x49xf32, #tpu.memory_space<smem>>
    %687 = vector.extract_strided_slice %675 {offsets = [0, 2], sizes = [16, 16], strides = [1, 1]} : vector<16x22xf32> to vector<16x16xf32>
    %688 = vector.broadcast %686 : f32 to vector<16x16xf32>
    %689 = arith.mulf %688, %687 : vector<16x16xf32>
    %690 = arith.addf %685, %689 : vector<16x16xf32>
    %c2_287 = arith.constant 2 : index
    %c24_288 = arith.constant 24 : index
    %691 = memref.load %arg3[%c2_287, %c24_288] : memref<3x49xf32, #tpu.memory_space<smem>>
    %692 = vector.extract_strided_slice %675 {offsets = [0, 3], sizes = [16, 16], strides = [1, 1]} : vector<16x22xf32> to vector<16x16xf32>
    %693 = vector.broadcast %691 : f32 to vector<16x16xf32>
    %694 = arith.mulf %693, %692 : vector<16x16xf32>
    %695 = arith.addf %690, %694 : vector<16x16xf32>
    %c2_289 = arith.constant 2 : index
    %c25_290 = arith.constant 25 : index
    %696 = memref.load %arg3[%c2_289, %c25_290] : memref<3x49xf32, #tpu.memory_space<smem>>
    %697 = vector.extract_strided_slice %675 {offsets = [0, 4], sizes = [16, 16], strides = [1, 1]} : vector<16x22xf32> to vector<16x16xf32>
    %698 = vector.broadcast %696 : f32 to vector<16x16xf32>
    %699 = arith.mulf %698, %697 : vector<16x16xf32>
    %700 = arith.addf %695, %699 : vector<16x16xf32>
    %c2_291 = arith.constant 2 : index
    %c26_292 = arith.constant 26 : index
    %701 = memref.load %arg3[%c2_291, %c26_292] : memref<3x49xf32, #tpu.memory_space<smem>>
    %702 = vector.extract_strided_slice %675 {offsets = [0, 5], sizes = [16, 16], strides = [1, 1]} : vector<16x22xf32> to vector<16x16xf32>
    %703 = vector.broadcast %701 : f32 to vector<16x16xf32>
    %704 = arith.mulf %703, %702 : vector<16x16xf32>
    %705 = arith.addf %700, %704 : vector<16x16xf32>
    %c2_293 = arith.constant 2 : index
    %c27_294 = arith.constant 27 : index
    %706 = memref.load %arg3[%c2_293, %c27_294] : memref<3x49xf32, #tpu.memory_space<smem>>
    %707 = vector.extract_strided_slice %675 {offsets = [0, 6], sizes = [16, 16], strides = [1, 1]} : vector<16x22xf32> to vector<16x16xf32>
    %708 = vector.broadcast %706 : f32 to vector<16x16xf32>
    %709 = arith.mulf %708, %707 : vector<16x16xf32>
    %710 = arith.addf %705, %709 : vector<16x16xf32>
    %c2_295 = arith.constant 2 : index
    %c4_296 = arith.constant 4 : index
    %c0_297 = arith.constant 0 : index
    %711 = vector.load %arg5[%c2_295, %c4_296, %c0_297] : memref<3x22x22xf32, #tpu.memory_space<vmem>>, vector<1x16x22xf32>
    %712 = vector.shape_cast %711 : vector<1x16x22xf32> to vector<16x22xf32>
    %c2_298 = arith.constant 2 : index
    %c28_299 = arith.constant 28 : index
    %713 = memref.load %arg3[%c2_298, %c28_299] : memref<3x49xf32, #tpu.memory_space<smem>>
    %714 = vector.extract_strided_slice %712 {offsets = [0, 0], sizes = [16, 16], strides = [1, 1]} : vector<16x22xf32> to vector<16x16xf32>
    %715 = vector.broadcast %713 : f32 to vector<16x16xf32>
    %716 = arith.mulf %715, %714 : vector<16x16xf32>
    %717 = arith.addf %710, %716 : vector<16x16xf32>
    %c2_300 = arith.constant 2 : index
    %c29_301 = arith.constant 29 : index
    %718 = memref.load %arg3[%c2_300, %c29_301] : memref<3x49xf32, #tpu.memory_space<smem>>
    %719 = vector.extract_strided_slice %712 {offsets = [0, 1], sizes = [16, 16], strides = [1, 1]} : vector<16x22xf32> to vector<16x16xf32>
    %720 = vector.broadcast %718 : f32 to vector<16x16xf32>
    %721 = arith.mulf %720, %719 : vector<16x16xf32>
    %722 = arith.addf %717, %721 : vector<16x16xf32>
    %c2_302 = arith.constant 2 : index
    %c30_303 = arith.constant 30 : index
    %723 = memref.load %arg3[%c2_302, %c30_303] : memref<3x49xf32, #tpu.memory_space<smem>>
    %724 = vector.extract_strided_slice %712 {offsets = [0, 2], sizes = [16, 16], strides = [1, 1]} : vector<16x22xf32> to vector<16x16xf32>
    %725 = vector.broadcast %723 : f32 to vector<16x16xf32>
    %726 = arith.mulf %725, %724 : vector<16x16xf32>
    %727 = arith.addf %722, %726 : vector<16x16xf32>
    %c2_304 = arith.constant 2 : index
    %c31_305 = arith.constant 31 : index
    %728 = memref.load %arg3[%c2_304, %c31_305] : memref<3x49xf32, #tpu.memory_space<smem>>
    %729 = vector.extract_strided_slice %712 {offsets = [0, 3], sizes = [16, 16], strides = [1, 1]} : vector<16x22xf32> to vector<16x16xf32>
    %730 = vector.broadcast %728 : f32 to vector<16x16xf32>
    %731 = arith.mulf %730, %729 : vector<16x16xf32>
    %732 = arith.addf %727, %731 : vector<16x16xf32>
    %c2_306 = arith.constant 2 : index
    %c32_307 = arith.constant 32 : index
    %733 = memref.load %arg3[%c2_306, %c32_307] : memref<3x49xf32, #tpu.memory_space<smem>>
    %734 = vector.extract_strided_slice %712 {offsets = [0, 4], sizes = [16, 16], strides = [1, 1]} : vector<16x22xf32> to vector<16x16xf32>
    %735 = vector.broadcast %733 : f32 to vector<16x16xf32>
    %736 = arith.mulf %735, %734 : vector<16x16xf32>
    %737 = arith.addf %732, %736 : vector<16x16xf32>
    %c2_308 = arith.constant 2 : index
    %c33_309 = arith.constant 33 : index
    %738 = memref.load %arg3[%c2_308, %c33_309] : memref<3x49xf32, #tpu.memory_space<smem>>
    %739 = vector.extract_strided_slice %712 {offsets = [0, 5], sizes = [16, 16], strides = [1, 1]} : vector<16x22xf32> to vector<16x16xf32>
    %740 = vector.broadcast %738 : f32 to vector<16x16xf32>
    %741 = arith.mulf %740, %739 : vector<16x16xf32>
    %742 = arith.addf %737, %741 : vector<16x16xf32>
    %c2_310 = arith.constant 2 : index
    %c34_311 = arith.constant 34 : index
    %743 = memref.load %arg3[%c2_310, %c34_311] : memref<3x49xf32, #tpu.memory_space<smem>>
    %744 = vector.extract_strided_slice %712 {offsets = [0, 6], sizes = [16, 16], strides = [1, 1]} : vector<16x22xf32> to vector<16x16xf32>
    %745 = vector.broadcast %743 : f32 to vector<16x16xf32>
    %746 = arith.mulf %745, %744 : vector<16x16xf32>
    %747 = arith.addf %742, %746 : vector<16x16xf32>
    %c2_312 = arith.constant 2 : index
    %c5_313 = arith.constant 5 : index
    %c0_314 = arith.constant 0 : index
    %748 = vector.load %arg5[%c2_312, %c5_313, %c0_314] : memref<3x22x22xf32, #tpu.memory_space<vmem>>, vector<1x16x22xf32>
    %749 = vector.shape_cast %748 : vector<1x16x22xf32> to vector<16x22xf32>
    %c2_315 = arith.constant 2 : index
    %c35_316 = arith.constant 35 : index
    %750 = memref.load %arg3[%c2_315, %c35_316] : memref<3x49xf32, #tpu.memory_space<smem>>
    %751 = vector.extract_strided_slice %749 {offsets = [0, 0], sizes = [16, 16], strides = [1, 1]} : vector<16x22xf32> to vector<16x16xf32>
    %752 = vector.broadcast %750 : f32 to vector<16x16xf32>
    %753 = arith.mulf %752, %751 : vector<16x16xf32>
    %754 = arith.addf %747, %753 : vector<16x16xf32>
    %c2_317 = arith.constant 2 : index
    %c36_318 = arith.constant 36 : index
    %755 = memref.load %arg3[%c2_317, %c36_318] : memref<3x49xf32, #tpu.memory_space<smem>>
    %756 = vector.extract_strided_slice %749 {offsets = [0, 1], sizes = [16, 16], strides = [1, 1]} : vector<16x22xf32> to vector<16x16xf32>
    %757 = vector.broadcast %755 : f32 to vector<16x16xf32>
    %758 = arith.mulf %757, %756 : vector<16x16xf32>
    %759 = arith.addf %754, %758 : vector<16x16xf32>
    %c2_319 = arith.constant 2 : index
    %c37_320 = arith.constant 37 : index
    %760 = memref.load %arg3[%c2_319, %c37_320] : memref<3x49xf32, #tpu.memory_space<smem>>
    %761 = vector.extract_strided_slice %749 {offsets = [0, 2], sizes = [16, 16], strides = [1, 1]} : vector<16x22xf32> to vector<16x16xf32>
    %762 = vector.broadcast %760 : f32 to vector<16x16xf32>
    %763 = arith.mulf %762, %761 : vector<16x16xf32>
    %764 = arith.addf %759, %763 : vector<16x16xf32>
    %c2_321 = arith.constant 2 : index
    %c38_322 = arith.constant 38 : index
    %765 = memref.load %arg3[%c2_321, %c38_322] : memref<3x49xf32, #tpu.memory_space<smem>>
    %766 = vector.extract_strided_slice %749 {offsets = [0, 3], sizes = [16, 16], strides = [1, 1]} : vector<16x22xf32> to vector<16x16xf32>
    %767 = vector.broadcast %765 : f32 to vector<16x16xf32>
    %768 = arith.mulf %767, %766 : vector<16x16xf32>
    %769 = arith.addf %764, %768 : vector<16x16xf32>
    %c2_323 = arith.constant 2 : index
    %c39_324 = arith.constant 39 : index
    %770 = memref.load %arg3[%c2_323, %c39_324] : memref<3x49xf32, #tpu.memory_space<smem>>
    %771 = vector.extract_strided_slice %749 {offsets = [0, 4], sizes = [16, 16], strides = [1, 1]} : vector<16x22xf32> to vector<16x16xf32>
    %772 = vector.broadcast %770 : f32 to vector<16x16xf32>
    %773 = arith.mulf %772, %771 : vector<16x16xf32>
    %774 = arith.addf %769, %773 : vector<16x16xf32>
    %c2_325 = arith.constant 2 : index
    %c40_326 = arith.constant 40 : index
    %775 = memref.load %arg3[%c2_325, %c40_326] : memref<3x49xf32, #tpu.memory_space<smem>>
    %776 = vector.extract_strided_slice %749 {offsets = [0, 5], sizes = [16, 16], strides = [1, 1]} : vector<16x22xf32> to vector<16x16xf32>
    %777 = vector.broadcast %775 : f32 to vector<16x16xf32>
    %778 = arith.mulf %777, %776 : vector<16x16xf32>
    %779 = arith.addf %774, %778 : vector<16x16xf32>
    %c2_327 = arith.constant 2 : index
    %c41_328 = arith.constant 41 : index
    %780 = memref.load %arg3[%c2_327, %c41_328] : memref<3x49xf32, #tpu.memory_space<smem>>
    %781 = vector.extract_strided_slice %749 {offsets = [0, 6], sizes = [16, 16], strides = [1, 1]} : vector<16x22xf32> to vector<16x16xf32>
    %782 = vector.broadcast %780 : f32 to vector<16x16xf32>
    %783 = arith.mulf %782, %781 : vector<16x16xf32>
    %784 = arith.addf %779, %783 : vector<16x16xf32>
    %c2_329 = arith.constant 2 : index
    %c6_330 = arith.constant 6 : index
    %c0_331 = arith.constant 0 : index
    %785 = vector.load %arg5[%c2_329, %c6_330, %c0_331] : memref<3x22x22xf32, #tpu.memory_space<vmem>>, vector<1x16x22xf32>
    %786 = vector.shape_cast %785 : vector<1x16x22xf32> to vector<16x22xf32>
    %c2_332 = arith.constant 2 : index
    %c42_333 = arith.constant 42 : index
    %787 = memref.load %arg3[%c2_332, %c42_333] : memref<3x49xf32, #tpu.memory_space<smem>>
    %788 = vector.extract_strided_slice %786 {offsets = [0, 0], sizes = [16, 16], strides = [1, 1]} : vector<16x22xf32> to vector<16x16xf32>
    %789 = vector.broadcast %787 : f32 to vector<16x16xf32>
    %790 = arith.mulf %789, %788 : vector<16x16xf32>
    %791 = arith.addf %784, %790 : vector<16x16xf32>
    %c2_334 = arith.constant 2 : index
    %c43_335 = arith.constant 43 : index
    %792 = memref.load %arg3[%c2_334, %c43_335] : memref<3x49xf32, #tpu.memory_space<smem>>
    %793 = vector.extract_strided_slice %786 {offsets = [0, 1], sizes = [16, 16], strides = [1, 1]} : vector<16x22xf32> to vector<16x16xf32>
    %794 = vector.broadcast %792 : f32 to vector<16x16xf32>
    %795 = arith.mulf %794, %793 : vector<16x16xf32>
    %796 = arith.addf %791, %795 : vector<16x16xf32>
    %c2_336 = arith.constant 2 : index
    %c44_337 = arith.constant 44 : index
    %797 = memref.load %arg3[%c2_336, %c44_337] : memref<3x49xf32, #tpu.memory_space<smem>>
    %798 = vector.extract_strided_slice %786 {offsets = [0, 2], sizes = [16, 16], strides = [1, 1]} : vector<16x22xf32> to vector<16x16xf32>
    %799 = vector.broadcast %797 : f32 to vector<16x16xf32>
    %800 = arith.mulf %799, %798 : vector<16x16xf32>
    %801 = arith.addf %796, %800 : vector<16x16xf32>
    %c2_338 = arith.constant 2 : index
    %c45_339 = arith.constant 45 : index
    %802 = memref.load %arg3[%c2_338, %c45_339] : memref<3x49xf32, #tpu.memory_space<smem>>
    %803 = vector.extract_strided_slice %786 {offsets = [0, 3], sizes = [16, 16], strides = [1, 1]} : vector<16x22xf32> to vector<16x16xf32>
    %804 = vector.broadcast %802 : f32 to vector<16x16xf32>
    %805 = arith.mulf %804, %803 : vector<16x16xf32>
    %806 = arith.addf %801, %805 : vector<16x16xf32>
    %c2_340 = arith.constant 2 : index
    %c46_341 = arith.constant 46 : index
    %807 = memref.load %arg3[%c2_340, %c46_341] : memref<3x49xf32, #tpu.memory_space<smem>>
    %808 = vector.extract_strided_slice %786 {offsets = [0, 4], sizes = [16, 16], strides = [1, 1]} : vector<16x22xf32> to vector<16x16xf32>
    %809 = vector.broadcast %807 : f32 to vector<16x16xf32>
    %810 = arith.mulf %809, %808 : vector<16x16xf32>
    %811 = arith.addf %806, %810 : vector<16x16xf32>
    %c2_342 = arith.constant 2 : index
    %c47_343 = arith.constant 47 : index
    %812 = memref.load %arg3[%c2_342, %c47_343] : memref<3x49xf32, #tpu.memory_space<smem>>
    %813 = vector.extract_strided_slice %786 {offsets = [0, 5], sizes = [16, 16], strides = [1, 1]} : vector<16x22xf32> to vector<16x16xf32>
    %814 = vector.broadcast %812 : f32 to vector<16x16xf32>
    %815 = arith.mulf %814, %813 : vector<16x16xf32>
    %816 = arith.addf %811, %815 : vector<16x16xf32>
    %c2_344 = arith.constant 2 : index
    %c48_345 = arith.constant 48 : index
    %817 = memref.load %arg3[%c2_344, %c48_345] : memref<3x49xf32, #tpu.memory_space<smem>>
    %818 = vector.extract_strided_slice %786 {offsets = [0, 6], sizes = [16, 16], strides = [1, 1]} : vector<16x22xf32> to vector<16x16xf32>
    %819 = vector.broadcast %817 : f32 to vector<16x16xf32>
    %820 = arith.mulf %819, %818 : vector<16x16xf32>
    %821 = arith.addf %816, %820 : vector<16x16xf32>
    %cst_346 = arith.constant 0.000000e+00 : f32
    %822 = vector.broadcast %cst_346 : f32 to vector<16x16xf32>
    %823 = arith.subf %822, %821 : vector<16x16xf32>
    %824 = math.exp %823 : vector<16x16xf32>
    %cst_347 = arith.constant 1.000000e+00 : f32
    %825 = vector.broadcast %cst_347 : f32 to vector<16x16xf32>
    %826 = arith.addf %825, %824 : vector<16x16xf32>
    %cst_348 = arith.constant 1.000000e+00 : f32
    %827 = vector.broadcast %cst_348 : f32 to vector<16x16xf32>
    %828 = arith.divf %827, %826 : vector<16x16xf32>
    %829 = vector.shape_cast %828 : vector<16x16xf32> to vector<1x16x16xf32>
    %830 = vector.broadcast %829 : vector<1x16x16xf32> to vector<4x16x16xf32>
    %831 = arith.mulf %1, %830 : vector<4x16x16xf32>
    %c0_349 = arith.constant 0 : index
    %c0_350 = arith.constant 0 : index
    %c0_351 = arith.constant 0 : index
    %c0_352 = arith.constant 0 : index
    %832 = vector.load %arg4[%c0_349, %c0_350, %c0_351, %c0_352] : memref<1x4x16x16xf32, #tpu.memory_space<vmem>>, vector<1x4x16x16xf32>
    %833 = vector.shape_cast %832 : vector<1x4x16x16xf32> to vector<4x16x16xf32>
    %834 = vector.shape_cast %831 : vector<4x16x16xf32> to vector<1x4x16x16xf32>
    tpu.vector_store %arg4[%c0_349, %c0_350, %c0_351, %c0_352], %834 {strides = array<i32>} : memref<1x4x16x16xf32, #tpu.memory_space<vmem>>, vector<1x4x16x16xf32>,
    return
  }
  func.func @transform_0(%arg0: i32) -> (i32, i32, i32, i32) {
    %c0_i32 = arith.constant 0 : i32
    %c0_i32_0 = arith.constant 0 : i32
    %c0_i32_1 = arith.constant 0 : i32
    %c0_i32_2 = arith.constant 0 : i32
    return %arg0, %c0_i32, %c0_i32_0, %c0_i32_1 : i32, i32, i32, i32
  }
  func.func @transform_1(%arg0: i32) -> (i32, i32, i32) {
    %c0_i32 = arith.constant 0 : i32
    %c0_i32_0 = arith.constant 0 : i32
    %c0_i32_1 = arith.constant 0 : i32
    return %arg0, %c0_i32, %c0_i32_0 : i32, i32, i32
  }
  func.func @transform_2(%arg0: i32) -> (i32, i32) {
    %c0_i32 = arith.constant 0 : i32
    %c0_i32_0 = arith.constant 0 : i32
    %c0_i32_1 = arith.constant 0 : i32
    return %c0_i32, %c0_i32_0 : i32, i32
  }
  func.func @transform_3(%arg0: i32) -> (i32, i32, i32, i32) {
    %c0_i32 = arith.constant 0 : i32
    %c0_i32_0 = arith.constant 0 : i32
    %c0_i32_1 = arith.constant 0 : i32
    %c0_i32_2 = arith.constant 0 : i32
    return %arg0, %c0_i32, %c0_i32_0, %c0_i32_1 : i32, i32, i32, i32
  }
}

</mosaic_0001>

<llo_original>
// kernel: _spatial_attention_forward.1
$region0: #{_spatial_attention_forward.1}
  #allocation0 [shape = 'u32[]', space=smem, size = 0x4, offset = 0x4, fixed_abs, tag = 'smem constant byte address 0x4 - core index']
  #allocation1 [shape = 'u32[144,128]{1,0:T(1,128)}', space=vmem, size = 0x12000, scoped, tag = 'internal scratch']
  #allocation2 [shape = 'f32[3,22,22]{2,1,0:T(8,128)}', space=vmem, size = 0x9000, scoped, tag = 'scratch operand']
  %s0 = inlined_call_operand.vmem [shape: f32[2,4,16,16], index: 0, kind: input, shape index: {}]
  %s1 = inlined_call_operand.vmem [shape: f32[2,16,1024], index: 1, kind: input, shape index: {}]
  %s2 = inlined_call_operand.vmem [shape: f32[3,49], index: 2, kind: input, shape index: {}]
  %s3 = inlined_call_operand.hbm [shape: f32[2,4,16,16], index: 3, kind: output, shape index: {}]
  %s4 = sld [smem:[#allocation0]]
  $region49: #{_spatial_attention_forward.1} parent=0
    _
  %s6 = ssub.s32 1, %s4
  %s7 = scalar_select 0, %s6, %s4
  $region1: #{_spatial_attention_forward.1} parent=0
    #allocation3 [shape = 'u8[2048]{0}', space=smem, size = 0x800, scoped, tag = 'input window, operand 2, single buffered']
    #allocation4 [shape = 's32[2]{0}', space=sflag, size = 0x8, scoped, tag = 'scoped memory for _spatial_attention_forward.1']
    #allocation5 [shape = 's32[2]{0}', space=sflag, size = 0x8, scoped, tag = 'scoped memory for _spatial_attention_forward.1']
    #allocation6 [shape = 'u8[65536]{0}', space=vmem, size = 0x10000, scoped, tag = 'output window, operand 0']
    %8 = vsyncpa [#allocation5], 0
    %9 = vsyncpa [#allocation4], 0
    %s10 = scalar_lea.sflag [#allocation4], 1
    %11 = vsyncpa %s10, 0
    loop: start=0, step=1, limit=4
    $region2: #{_spatial_attention_forward.1} parent=1 // loop_pre_header
      _
    $region3: #{_spatial_attention_forward.1} parent=1 // loop_header
      %s13 = sphi 0, %s17
      %p14 = scmp.ge.s32.totalorder %s13, 4
      %s23 = sphi 0, %s25
      %s26 = sphi 0, %s23
      %s27 = sphi 0, %s26
      %s43 = sphi 0, %s27
      %s49 = sphi 0, %s51
      %s52 = sphi 0, %s49
      %s53 = sphi 0, %s52
      %s69 = sphi 0, %s53
      %s73 = sphi 0, %s73
      %s75 = sphi 0, %s73
      %s76 = sphi 0, %s75
      %s90 = sphi 0, %s76
      %s96 = sphi 0, %s98
      %s99 = sphi 0, %s96
      %s100 = sphi 0, %s99
      %s116 = sphi 0, %s100
    $region4: #{_spatial_attention_forward.1} parent=1 // loop_header_branch
      %16 = sbr.rel (%p14) target = $region8
    $region5: #{_spatial_attention_forward.1} parent=1 // loop_body
      %s18 = ssub.s32 %s13, 1
      %s19 = ssub.s32 %s13, 2
      %s20 = sadd.s32 %s13, 1
      %s21 = ssub.s32 %s13, %s20
      %p22 = scmp.eq.s32.totalorder %s21, 0
      %s24 = sadd.s32 %s23, 1
      %s25 = scalar_select %p22, %s23, %s24
      %p28 = pneg %p22
      %p29 = scmp.eq.s32.totalorder %s13, 1
      %p30 = por %p28, %p29
      %p31 = scmp.ne.s32.totalorder %s23, %s26
      %p32 = scmp.eq.s32.totalorder %s13, 0
      %p33 = por %p31, %p32
      %p34 = scmp.ne.s32.totalorder %s23, %s26
      %p35 = scmp.eq.s32.totalorder %s18, 1
      %p36 = por %p34, %p35
      %p37 = scmp.ne.s32.totalorder %s26, %s27
      %p38 = scmp.eq.s32.totalorder %s18, 0
      %p39 = por %p37, %p38
      %p40 = scmp.ne.s32.totalorder %s26, %s27
      %p41 = scmp.eq.s32.totalorder %s19, 1
      %p42 = por %p40, %p41
      %p44 = scmp.ne.s32.totalorder %s27, %s43
      %p45 = scmp.eq.s32.totalorder %s19, 0
      %p46 = por %p44, %p45
      %s47 = ssub.s32 %s13, %s20
      %p48 = scmp.eq.s32.totalorder %s47, 0
      %s50 = sadd.s32 %s49, 1
      %s51 = scalar_select %p48, %s49, %s50
      %p54 = pneg %p48
      %p55 = scmp.eq.s32.totalorder %s13, 1
      %p56 = por %p54, %p55
      %p57 = scmp.ne.s32.totalorder %s49, %s52
      %p58 = scmp.eq.s32.totalorder %s13, 0
      %p59 = por %p57, %p58
      %p60 = scmp.ne.s32.totalorder %s49, %s52
      %p61 = scmp.eq.s32.totalorder %s18, 1
      %p62 = por %p60, %p61
      %p63 = scmp.ne.s32.totalorder %s52, %s53
      %p64 = scmp.eq.s32.totalorder %s18, 0
      %p65 = por %p63, %p64
      %p66 = scmp.ne.s32.totalorder %s52, %s53
      %p67 = scmp.eq.s32.totalorder %s19, 1
      %p68 = por %p66, %p67
      %p70 = scmp.ne.s32.totalorder %s53, %s69
      %p71 = scmp.eq.s32.totalorder %s19, 0
      %p72 = por %p70, %p71
      %s74 = sadd.s32 %s73, 1
      %p77 = scmp.eq.s32.totalorder %s13, 1
      %p78 = scmp.ne.s32.totalorder %s73, %s75
      %p79 = scmp.eq.s32.totalorder %s13, 0
      %p80 = por %p78, %p79
      %p81 = scmp.ne.s32.totalorder %s73, %s75
      %p82 = scmp.eq.s32.totalorder %s18, 1
      %p83 = por %p81, %p82
      %p84 = scmp.ne.s32.totalorder %s75, %s76
      %p85 = scmp.eq.s32.totalorder %s18, 0
      %p86 = por %p84, %p85
      %p87 = scmp.ne.s32.totalorder %s75, %s76
      %p88 = scmp.eq.s32.totalorder %s19, 1
      %p89 = por %p87, %p88
      %p91 = scmp.ne.s32.totalorder %s76, %s90
      %p92 = scmp.eq.s32.totalorder %s19, 0
      %p93 = por %p91, %p92
      %s94 = ssub.s32 %s13, %s20
      %p95 = scmp.eq.s32.totalorder %s94, 0
      %s97 = sadd.s32 %s96, 1
      %s98 = scalar_select %p95, %s96, %s97
      %p101 = pneg %p95
      %p102 = scmp.eq.s32.totalorder %s13, 1
      %p103 = por %p101, %p102
      %p104 = scmp.ne.s32.totalorder %s96, %s99
      %p105 = scmp.eq.s32.totalorder %s13, 0
      %p106 = por %p104, %p105
      %p107 = scmp.ne.s32.totalorder %s96, %s99
      %p108 = scmp.eq.s32.totalorder %s18, 1
      %p109 = por %p107, %p108
      %p110 = scmp.ne.s32.totalorder %s99, %s100
      %p111 = scmp.eq.s32.totalorder %s18, 0
      %p112 = por %p110, %p111
      %p113 = scmp.ne.s32.totalorder %s99, %s100
      %p114 = scmp.eq.s32.totalorder %s19, 1
      %p115 = por %p113, %p114
      %p117 = scmp.ne.s32.totalorder %s100, %s116
      %p118 = scmp.eq.s32.totalorder %s19, 0
      %p119 = por %p117, %p118
      %p120 = scmp.le.s32.totalorder 1, %s13
      %p121 = scmp.lt.s32.totalorder %s13, 3
      %p122 = pnand %p120, %p121
      %p123 = pneg %p122
      // Predicated region
      $region9: #{_spatial_attention_forward.1} parent=5 // pred_check
        _
      $region10: #{_spatial_attention_forward.1} parent=5 // pred_check_branch
        %125 = sbr.rel (%p122) target = $region12
      $region11: #{_spatial_attention_forward.1} parent=5 // pred_region
        %s126 = ssub.s32 %s13, 1
        // Predicated region
        $region13: #{_spatial_attention_forward.1} parent=11 // pred_check
          %p127 = pneg %p86
        $region14: #{_spatial_attention_forward.1} parent=11 // pred_check_branch
          %129 = sbr.rel (%p127) target = $region16
        $region15: #{_spatial_attention_forward.1} parent=11 // pred_region
          %s131 = ssub.s32 64, 64
          %132 = vsyncadd [#allocation5], %s131
          %s134 = sshll.u32 %s2, 4
          %s135 = int_to_ptr.vmem [resolvable:$true] %s134
          %137 = dma.vmem_to_smem %s135, 64, [#allocation3], [#allocation5]
        $region16: #{_spatial_attention_forward.1} parent=11 // pred_fallthru
          _
      $region12: #{_spatial_attention_forward.1} parent=5 // pred_fallthru
        _
      %p138 = scmp.lt.s32.totalorder %s13, 2
      // Predicated region
      $region17: #{_spatial_attention_forward.1} parent=5 // pred_check
        %p139 = pneg %p138
      $region18: #{_spatial_attention_forward.1} parent=5 // pred_check_branch
        %141 = sbr.rel (%p139) target = $region20
      $region19: #{_spatial_attention_forward.1} parent=5 // pred_region
        // Predicated region
        $region21: #{_spatial_attention_forward.1} parent=19 // pred_check
          %p142 = pneg %p33
        $region22: #{_spatial_attention_forward.1} parent=19 // pred_check_branch
          %144 = sbr.rel (%p142) target = $region24
        $region23: #{_spatial_attention_forward.1} parent=19 // pred_region
          %p145 = scmp.lt.s32.totalorder %s13, 1
          %s146 = scalar_select %p145, %s13, 1
          %s147 = smul.addr %s146, 8
          %s148 = smul.addr %s147, 8
          %s149 = scalar_lea.vmem %s0, %s148
        $region24: #{_spatial_attention_forward.1} parent=19 // pred_fallthru
          _
        // Predicated region
        $region25: #{_spatial_attention_forward.1} parent=19 // pred_check
          %p150 = pneg %p59
        $region26: #{_spatial_attention_forward.1} parent=19 // pred_check_branch
          %152 = sbr.rel (%p150) target = $region28
        $region27: #{_spatial_attention_forward.1} parent=19 // pred_region
          %p153 = scmp.lt.s32.totalorder %s13, 1
          %s154 = scalar_select %p153, %s13, 1
          %s155 = smul.addr %s154, 16
          %s156 = smul.addr %s155, 8
          %s157 = scalar_lea.vmem %s1, %s156
        $region28: #{_spatial_attention_forward.1} parent=19 // pred_fallthru
          _
      $region20: #{_spatial_attention_forward.1} parent=5 // pred_fallthru
        _
      %p158 = scmp.le.s32.totalorder 1, %s13
      %p159 = scmp.lt.s32.totalorder %s13, 3
      %p160 = pnand %p158, %p159
      %p161 = pneg %p160
      // Predicated region
      $region29: #{_spatial_attention_forward.1} parent=5 // pred_check
        _
      $region30: #{_spatial_attention_forward.1} parent=5 // pred_check_branch
        %163 = sbr.rel (%p160) target = $region32
      $region31: #{_spatial_attention_forward.1} parent=5 // pred_region
        %s164 = ssub.s32 %s13, 1
        // Predicated region
        $region33: #{_spatial_attention_forward.1} parent=31 // pred_check
          %p165 = pneg %p86
        $region34: #{_spatial_attention_forward.1} parent=31 // pred_check_branch
          %167 = sbr.rel (%p165) target = $region36
        $region35: #{_spatial_attention_forward.1} parent=31 // pred_region
          %168 = dma.done [#allocation5], 64
        $region36: #{_spatial_attention_forward.1} parent=31 // pred_fallthru
          _
        %169 = sfence
        %p170 = scmp.lt.s32.totalorder %s18, 1
        %s171 = scalar_select %p170, %s18, 1
        %s172 = smul.addr %s171, 8
        %s173 = smul.addr %s172, 8
        %s174 = scalar_lea.vmem %s0, %s173
        %p175 = pneg %p39
        %p176 = pneg %p36
        %p177 = scmp.lt.s32.totalorder %s18, 1
        %s178 = scalar_select %p177, %s18, 1
        %s179 = smul.addr %s178, 16
        %s180 = smul.addr %s179, 8
        %s181 = scalar_lea.vmem %s1, %s180
        %p182 = pneg %p65
        %p183 = pneg %p62
        %p184 = pneg %p86
        %p185 = pneg %p83
        %p186 = pneg %p112
        %p187 = pneg %p109
        %s188 = sand.u32 %s99, 1
        %s189 = scalar_lea.sflag [#allocation4], %s188
        %s190 = sand.u32 %s99, 1
        %s191 = smul.addr %s190, 64
        %s192 = scalar_lea.vmem [#allocation6], %s191
        %p193 = scmp.lt.s32.totalorder %s18, 1
        %s194 = scalar_select %p193, %s18, 1
        %s195 = smul.addr %s194, 8
        %s196 = smul.addr %s195, 8
        %s197 = scalar_lea.vmem %s0, %s196
        %p198 = scmp.lt.s32.totalorder %s18, 1
        %s199 = scalar_select %p198, %s18, 1
        %s200 = smul.addr %s199, 16
        %s201 = smul.addr %s200, 8
        %s202 = scalar_lea.vmem %s1, %s201
        %v203 = vld [vmem:[%s197] sm:$0xff]
        %v204 = vld [vmem:[%s197 + $0x8] sm:$0xff]
        %v205 = vld [vmem:[%s197 + $0x10] sm:$0xff]
        %v206 = vld [vmem:[%s197 + $0x18] sm:$0xff]
        %v207 = vld [vmem:[%s197 + $0x20] sm:$0xff]
        %v208 = vld [vmem:[%s197 + $0x28] sm:$0xff]
        %v209 = vld [vmem:[%s197 + $0x30] sm:$0xff]
        %v210 = vld [vmem:[%s197 + $0x38] sm:$0xff]
        %vm211 = vcmask 130048
        %v212 = vsel %vm211, %v203, 0.0
        %v213 = vsel %vm211, %v205, 0.0
        %v214 = vadd.f32 %v212, %v213
        %v215 = vsel %vm211, %v207, 0.0
        %v216 = vadd.f32 %v214, %v215
        %v217 = vsel %vm211, %v209, 0.0
        %v218 = vadd.f32 %v216, %v217
        %v219 = vsel %vm211, %v204, 0.0
        %v220 = vsel %vm211, %v206, 0.0
        %v221 = vadd.f32 %v219, %v220
        %v222 = vsel %vm211, %v208, 0.0
        %v223 = vadd.f32 %v221, %v222
        %v224 = vsel %vm211, %v210, 0.0
        %v225 = vadd.f32 %v223, %v224
        %v226 = vrcp.pop 4.0
        %v227 = vmul.f32 %v218, %v226
        %v228 = vmul.f32 %v225, %v226
        %v229 = vsel %vm211, %v203, -inf
        %v230 = vsel %vm211, %v205, -inf
        %v231 = vsel %vm211, %v207, -inf
        %v232 = vmax.f32 %v229, %v231
        %v233 = vsel %vm211, %v209, -inf
        %v234 = vmax.f32 %v230, %v233
        %v235 = vmax.f32 %v232, %v234
        %v236 = vsel %vm211, %v204, -inf
        %v237 = vsel %vm211, %v206, -inf
        %v238 = vsel %vm211, %v208, -inf
        %v239 = vmax.f32 %v236, %v238
        %v240 = vsel %vm211, %v210, -inf
        %v241 = vmax.f32 %v237, %v240
        %v242 = vmax.f32 %v239, %v241
        %v243 = vld [vmem:[%s202] sm:$0xff]
        %v244 = vld [vmem:[%s202 + $0x40] sm:$0xff]
        %v245 = vld [vmem:[%s202 + $0x8] sm:$0xff]
        %v246 = vld [vmem:[%s202 + $0x48] sm:$0xff]
        %v247 = vmax.f32 %v243, %v245
        %v248 = vmax.f32 %v244, %v246
        %v249 = vld [vmem:[%s202 + $0x10] sm:$0xff]
        %v250 = vld [vmem:[%s202 + $0x50] sm:$0xff]
        %v251 = vmax.f32 %v247, %v249
        %v252 = vmax.f32 %v248, %v250
        %v253 = vld [vmem:[%s202 + $0x18] sm:$0xff]
        %v254 = vld [vmem:[%s202 + $0x58] sm:$0xff]
        %v255 = vmax.f32 %v251, %v253
        %v256 = vmax.f32 %v252, %v254
        %v257 = vld [vmem:[%s202 + $0x20] sm:$0xff]
        %v258 = vld [vmem:[%s202 + $0x60] sm:$0xff]
        %v259 = vmax.f32 %v255, %v257
        %v260 = vmax.f32 %v256, %v258
        %v261 = vld [vmem:[%s202 + $0x28] sm:$0xff]
        %v262 = vld [vmem:[%s202 + $0x68] sm:$0xff]
        %v263 = vmax.f32 %v259, %v261
        %v264 = vmax.f32 %v260, %v262
        %v265 = vld [vmem:[%s202 + $0x30] sm:$0xff]
        %v266 = vld [vmem:[%s202 + $0x70] sm:$0xff]
        %v267 = vmax.f32 %v263, %v265
        %v268 = vmax.f32 %v264, %v266
        %v269 = vld [vmem:[%s202 + $0x38] sm:$0xff]
        %v270 = vld [vmem:[%s202 + $0x78] sm:$0xff]
        %v271 = vmax.f32 %v267, %v269
        %v272 = vmax.f32 %v268, %v270
        %273 = vxpose.xlu0.b32.start [1/16] %v271, 128
        %274 = vxpose.xlu0.b32.cont [2/16] %v272, 128
        %275 = vxpose.xlu0.b32.cont [3/16] 0.0, 128
        %276 = vxpose.xlu0.b32.cont [4/16] 0.0, 128
        %277 = vxpose.xlu0.b32.cont [5/16] 0.0, 128
        %278 = vxpose.xlu0.b32.cont [6/16] 0.0, 128
        %279 = vxpose.xlu0.b32.cont [7/16] 0.0, 128
        %280 = vxpose.xlu0.b32.cont [8/16] 0.0, 128
        %281 = vxpose.xlu0.b32.cont [9/16] 0.0, 128
        %282 = vxpose.xlu0.b32.cont [10/16] 0.0, 128
        %283 = vxpose.xlu0.b32.cont [11/16] 0.0, 128
        %284 = vxpose.xlu0.b32.cont [12/16] 0.0, 128
        %285 = vxpose.xlu0.b32.cont [13/16] 0.0, 128
        %286 = vxpose.xlu0.b32.cont [14/16] 0.0, 128
        %287 = vxpose.xlu0.b32.cont [15/16] 0.0, 128
        %288 = vxpose.xlu0.b32.end [16/16] 0.0, 128
        %v289 = vpop.trf.xlu0
        %v290 = vpop.trf.xlu0
        %v291 = vpop.trf.xlu0
        %v292 = vpop.trf.xlu0
        %v293 = vpop.trf.xlu0
        %v294 = vpop.trf.xlu0
        %v295 = vpop.trf.xlu0
        %v296 = vpop.trf.xlu0
        %v297 = vpop.trf.xlu0
        %v298 = vpop.trf.xlu0
        %v299 = vpop.trf.xlu0
        %v300 = vpop.trf.xlu0
        %v301 = vpop.trf.xlu0
        %v302 = vpop.trf.xlu0
        %v303 = vpop.trf.xlu0
        %v304 = vpop.trf.xlu0
        %v305 = vsel %vm211, %v289, -inf
        %v306 = vrot.slane %v305, 4
        %v307 = vmax.f32 %v305, %v306
        %v308 = vrot.slane %v307, 2
        %v309 = vmax.f32 %v307, %v308
        %v310 = vrot.slane %v309, 1
        %v311 = vmax.f32 %v309, %v310
        %v312 = vsel %vm211, %v290, -inf
        %v313 = vrot.slane %v312, 4
        %v314 = vmax.f32 %v312, %v313
        %v315 = vrot.slane %v314, 2
        %v316 = vmax.f32 %v314, %v315
        %v317 = vrot.slane %v316, 1
        %v318 = vmax.f32 %v316, %v317
        %v319 = vsel %vm211, %v291, -inf
        %v320 = vrot.slane %v319, 4
        %v321 = vmax.f32 %v319, %v320
        %v322 = vrot.slane %v321, 2
        %v323 = vmax.f32 %v321, %v322
        %v324 = vrot.slane %v323, 1
        %v325 = vmax.f32 %v323, %v324
        %v326 = vsel %vm211, %v292, -inf
        %v327 = vrot.slane %v326, 4
        %v328 = vmax.f32 %v326, %v327
        %v329 = vrot.slane %v328, 2
        %v330 = vmax.f32 %v328, %v329
        %v331 = vrot.slane %v330, 1
        %v332 = vmax.f32 %v330, %v331
        %v333 = vsel %vm211, %v293, -inf
        %v334 = vrot.slane %v333, 4
        %v335 = vmax.f32 %v333, %v334
        %v336 = vrot.slane %v335, 2
        %v337 = vmax.f32 %v335, %v336
        %v338 = vrot.slane %v337, 1
        %v339 = vmax.f32 %v337, %v338
        %v340 = vsel %vm211, %v294, -inf
        %v341 = vrot.slane %v340, 4
        %v342 = vmax.f32 %v340, %v341
        %v343 = vrot.slane %v342, 2
        %v344 = vmax.f32 %v342, %v343
        %v345 = vrot.slane %v344, 1
        %v346 = vmax.f32 %v344, %v345
        %v347 = vsel %vm211, %v295, -inf
        %v348 = vrot.slane %v347, 4
        %v349 = vmax.f32 %v347, %v348
        %v350 = vrot.slane %v349, 2
        %v351 = vmax.f32 %v349, %v350
        %v352 = vrot.slane %v351, 1
        %v353 = vmax.f32 %v351, %v352
        %v354 = vsel %vm211, %v296, -inf
        %v355 = vrot.slane %v354, 4
        %v356 = vmax.f32 %v354, %v355
        %v357 = vrot.slane %v356, 2
        %v358 = vmax.f32 %v356, %v357
        %v359 = vrot.slane %v358, 1
        %v360 = vmax.f32 %v358, %v359
        %v361 = vsel %vm211, %v297, -inf
        %v362 = vrot.slane %v361, 4
        %v363 = vmax.f32 %v361, %v362
        %v364 = vrot.slane %v363, 2
        %v365 = vmax.f32 %v363, %v364
        %v366 = vrot.slane %v365, 1
        %v367 = vmax.f32 %v365, %v366
        %v368 = vsel %vm211, %v298, -inf
        %v369 = vrot.slane %v368, 4
        %v370 = vmax.f32 %v368, %v369
        %v371 = vrot.slane %v370, 2
        %v372 = vmax.f32 %v370, %v371
        %v373 = vrot.slane %v372, 1
        %v374 = vmax.f32 %v372, %v373
        %v375 = vsel %vm211, %v299, -inf
        %v376 = vrot.slane %v375, 4
        %v377 = vmax.f32 %v375, %v376
        %v378 = vrot.slane %v377, 2
        %v379 = vmax.f32 %v377, %v378
        %v380 = vrot.slane %v379, 1
        %v381 = vmax.f32 %v379, %v380
        %v382 = vsel %vm211, %v300, -inf
        %v383 = vrot.slane %v382, 4
        %v384 = vmax.f32 %v382, %v383
        %v385 = vrot.slane %v384, 2
        %v386 = vmax.f32 %v384, %v385
        %v387 = vrot.slane %v386, 1
        %v388 = vmax.f32 %v386, %v387
        %v389 = vsel %vm211, %v301, -inf
        %v390 = vrot.slane %v389, 4
        %v391 = vmax.f32 %v389, %v390
        %v392 = vrot.slane %v391, 2
        %v393 = vmax.f32 %v391, %v392
        %v394 = vrot.slane %v393, 1
        %v395 = vmax.f32 %v393, %v394
        %v396 = vsel %vm211, %v302, -inf
        %v397 = vrot.slane %v396, 4
        %v398 = vmax.f32 %v396, %v397
        %v399 = vrot.slane %v398, 2
        %v400 = vmax.f32 %v398, %v399
        %v401 = vrot.slane %v400, 1
        %v402 = vmax.f32 %v400, %v401
        %v403 = vsel %vm211, %v303, -inf
        %v404 = vrot.slane %v403, 4
        %v405 = vmax.f32 %v403, %v404
        %v406 = vrot.slane %v405, 2
        %v407 = vmax.f32 %v405, %v406
        %v408 = vrot.slane %v407, 1
        %v409 = vmax.f32 %v407, %v408
        %v410 = vsel %vm211, %v304, -inf
        %v411 = vrot.slane %v410, 4
        %v412 = vmax.f32 %v410, %v411
        %v413 = vrot.slane %v412, 2
        %v414 = vmax.f32 %v412, %v413
        %v415 = vrot.slane %v414, 1
        %v416 = vmax.f32 %v414, %v415
        %vm433 = vcmask 1041409
        %v434 = vsel %vm433, %v318, %v311
        %vm435 = vcmask 1042434
        %v436 = vsel %vm435, %v325, %v434
        %vm437 = vcmask 1043459
        %v438 = vsel %vm437, %v332, %v436
        %vm439 = vcmask 1044484
        %v440 = vsel %vm439, %v339, %v438
        %vm441 = vcmask 1045509
        %v442 = vsel %vm441, %v346, %v440
        %vm443 = vcmask 1046534
        %v444 = vsel %vm443, %v353, %v442
        %vm445 = vcmask 1047559
        %v446 = vsel %vm445, %v360, %v444
        %v447 = vsel %vm433, %v374, %v367
        %v448 = vsel %vm435, %v381, %v447
        %v449 = vsel %vm437, %v388, %v448
        %v450 = vsel %vm439, %v395, %v449
        %v451 = vsel %vm441, %v402, %v450
        %v452 = vsel %vm443, %v409, %v451
        %v453 = vsel %vm445, %v416, %v452
        %456 = vxpose.xlu0.b32.start [1/16] %v446, 128
        %457 = vxpose.xlu0.b32.cont [2/16] %v453, 128
        %458 = vxpose.xlu0.b32.cont [3/16] 0.0, 128
        %459 = vxpose.xlu0.b32.cont [4/16] 0.0, 128
        %460 = vxpose.xlu0.b32.cont [5/16] 0.0, 128
        %461 = vxpose.xlu0.b32.cont [6/16] 0.0, 128
        %462 = vxpose.xlu0.b32.cont [7/16] 0.0, 128
        %463 = vxpose.xlu0.b32.cont [8/16] 0.0, 128
        %464 = vxpose.xlu0.b32.cont [9/16] 0.0, 128
        %465 = vxpose.xlu0.b32.cont [10/16] 0.0, 128
        %466 = vxpose.xlu0.b32.cont [11/16] 0.0, 128
        %467 = vxpose.xlu0.b32.cont [12/16] 0.0, 128
        %468 = vxpose.xlu0.b32.cont [13/16] 0.0, 128
        %469 = vxpose.xlu0.b32.cont [14/16] 0.0, 128
        %470 = vxpose.xlu0.b32.cont [15/16] 0.0, 128
        %471 = vxpose.xlu0.b32.end [16/16] 0.0, 128
        %v472 = vpop.trf.xlu0
        %v473 = vpop.trf.xlu0
        %v474 = vpop.trf.xlu0
        %v475 = vpop.trf.xlu0
        %v476 = vpop.trf.xlu0
        %v477 = vpop.trf.xlu0
        %v478 = vpop.trf.xlu0
        %v479 = vpop.trf.xlu0
        %v480 = vpop.trf.xlu0
        %v481 = vpop.trf.xlu0
        %v482 = vpop.trf.xlu0
        %v483 = vpop.trf.xlu0
        %v484 = vpop.trf.xlu0
        %v485 = vpop.trf.xlu0
        %v486 = vpop.trf.xlu0
        %v487 = vpop.trf.xlu0
        %vm488 = vcmask 179200
        %489 = vst.msk [vmem:[#allocation2] sm:$0xff] %vm488, 0.0
        %490 = vst.msk [vmem:[#allocation2 + $0x8] sm:$0xff] %vm488, 0.0
        %vm491 = vcmask 177152
        %492 = vst.msk [vmem:[#allocation2 + $0x10] sm:$0x3f] %vm491, 0.0
        %493 = vst.msk [vmem:[#allocation2 + $0x18] sm:$0xff] %vm488, 0.0
        %494 = vst.msk [vmem:[#allocation2 + $0x20] sm:$0xff] %vm488, 0.0
        %495 = vst.msk [vmem:[#allocation2 + $0x28] sm:$0x3f] %vm491, 0.0
        %496 = vst.msk [vmem:[#allocation2 + $0x30] sm:$0xff] %vm488, 0.0
        %497 = vst.msk [vmem:[#allocation2 + $0x38] sm:$0xff] %vm488, 0.0
        %498 = vst.msk [vmem:[#allocation2 + $0x40] sm:$0x3f] %vm491, 0.0
        %501 = vrot.lane.b32.xlu0 %v227, 3
        %v502 = vpop.permute.xlu0 %501
        %503 = vrot.lane.b32.xlu0 %v228, 3
        %v504 = vpop.permute.xlu0 %503
        %vm507 = vcmask 154648
        %508 = vst.msk [vmem:[#allocation2 + $0x3] sm:$0xff] %vm507, %v502
        %509 = vst.msk [vmem:[#allocation2 + $0xb] sm:$0xff] %vm507, %v504
        %512 = vrot.lane.b32.xlu0 %v235, 3
        %v513 = vpop.permute.xlu0 %512
        %514 = vrot.lane.b32.xlu0 %v242, 3
        %v515 = vpop.permute.xlu0 %514
        %s518 = scalar_lea.vmem [#allocation2], 24
        %519 = vst.msk [vmem:[%s518 + $0x3] sm:$0xff] %vm507, %v513
        %520 = vst.msk [vmem:[%s518 + $0xb] sm:$0xff] %vm507, %v515
        %523 = vrot.lane.b32.xlu0 %v472, 3
        %v524 = vpop.permute.xlu0 %523
        %525 = vrot.lane.b32.xlu0 %v473, 3
        %v526 = vpop.permute.xlu0 %525
        %s529 = scalar_lea.vmem [#allocation2], 48
        %530 = vst.msk [vmem:[%s529 + $0x3] sm:$0xff] %vm507, %v524
        %531 = vst.msk [vmem:[%s529 + $0xb] sm:$0xff] %vm507, %v526
        %v532 = vld [vmem:[#allocation2] sm:$0xff]
        %v533 = vld [vmem:[#allocation2 + $0x8] sm:$0xff]
        %s534 = sld [smem:[#allocation3]]
        %v535 = vstv %s534
        %v536 = vmul.f32 %v535, %v532
        %v537 = vmul.f32 %v535, %v533
        %v538 = vadd.f32 %v536, 0.0
        %v539 = vadd.f32 %v537, 0.0
        %s540 = sld [smem:[#allocation3 + $0x1]]
        %v541 = vstv %s540
        %v542 = vmul.f32 %v541, %v532
        %v543 = vmul.f32 %v541, %v533
        %546 = vrot.lane.b32.xlu0 %v542, 127
        %v547 = vpop.permute.xlu0 %546
        %548 = vrot.lane.b32.xlu0 %v543, 127
        %v549 = vpop.permute.xlu0 %548
        %v552 = vadd.f32 %v538, %v547
        %v553 = vadd.f32 %v539, %v549
        %s554 = sld [smem:[#allocation3 + $0x2]]
        %v555 = vstv %s554
        %v556 = vmul.f32 %v555, %v532
        %v557 = vmul.f32 %v555, %v533
        %560 = vrot.lane.b32.xlu0 %v556, 126
        %v561 = vpop.permute.xlu0 %560
        %562 = vrot.lane.b32.xlu0 %v557, 126
        %v563 = vpop.permute.xlu0 %562
        %v566 = vadd.f32 %v552, %v561
        %v567 = vadd.f32 %v553, %v563
        %s568 = sld [smem:[#allocation3 + $0x3]]
        %v569 = vstv %s568
        %v570 = vmul.f32 %v569, %v532
        %v571 = vmul.f32 %v569, %v533
        %574 = vrot.lane.b32.xlu0 %v570, 125
        %v575 = vpop.permute.xlu0 %574
        %576 = vrot.lane.b32.xlu0 %v571, 125
        %v577 = vpop.permute.xlu0 %576
        %v580 = vadd.f32 %v566, %v575
        %v581 = vadd.f32 %v567, %v577
        %s582 = sld [smem:[#allocation3 + $0x4]]
        %v583 = vstv %s582
        %v584 = vmul.f32 %v583, %v532
        %v585 = vmul.f32 %v583, %v533
        %588 = vrot.lane.b32.xlu0 %v584, 124
        %v589 = vpop.permute.xlu0 %588
        %590 = vrot.lane.b32.xlu0 %v585, 124
        %v591 = vpop.permute.xlu0 %590
        %v594 = vadd.f32 %v580, %v589
        %v595 = vadd.f32 %v581, %v591
        %s596 = sld [smem:[#allocation3 + $0x5]]
        %v597 = vstv %s596
        %v598 = vmul.f32 %v597, %v532
        %v599 = vmul.f32 %v597, %v533
        %602 = vrot.lane.b32.xlu0 %v598, 123
        %v603 = vpop.permute.xlu0 %602
        %604 = vrot.lane.b32.xlu0 %v599, 123
        %v605 = vpop.permute.xlu0 %604
        %v608 = vadd.f32 %v594, %v603
        %v609 = vadd.f32 %v595, %v605
        %s610 = sld [smem:[#allocation3 + $0x6]]
        %v611 = vstv %s610
        %v612 = vmul.f32 %v611, %v532
        %v613 = vmul.f32 %v611, %v533
        %616 = vrot.lane.b32.xlu0 %v612, 122
        %v617 = vpop.permute.xlu0 %616
        %618 = vrot.lane.b32.xlu0 %v613, 122
        %v619 = vpop.permute.xlu0 %618
        %v622 = vadd.f32 %v608, %v617
        %v623 = vadd.f32 %v609, %v619
        %v624 = vld [vmem:[#allocation2 + $0x1] sm:$0xff]
        %v625 = vld [vmem:[#allocation2 + $0x9] sm:$0xff]
        %s626 = sld [smem:[#allocation3 + $0x7]]
        %v627 = vstv %s626
        %v628 = vmul.f32 %v627, %v624
        %v629 = vmul.f32 %v627, %v625
        %v630 = vadd.f32 %v622, %v628
        %v631 = vadd.f32 %v623, %v629
        %s632 = sld [smem:[#allocation3 + $0x8]]
        %v633 = vstv %s632
        %v634 = vmul.f32 %v633, %v624
        %v635 = vmul.f32 %v633, %v625
        %638 = vrot.lane.b32.xlu0 %v634, 127
        %v639 = vpop.permute.xlu0 %638
        %640 = vrot.lane.b32.xlu0 %v635, 127
        %v641 = vpop.permute.xlu0 %640
        %v644 = vadd.f32 %v630, %v639
        %v645 = vadd.f32 %v631, %v641
        %s646 = sld [smem:[#allocation3 + $0x9]]
        %v647 = vstv %s646
        %v648 = vmul.f32 %v647, %v624
        %v649 = vmul.f32 %v647, %v625
        %652 = vrot.lane.b32.xlu0 %v648, 126
        %v653 = vpop.permute.xlu0 %652
        %654 = vrot.lane.b32.xlu0 %v649, 126
        %v655 = vpop.permute.xlu0 %654
        %v658 = vadd.f32 %v644, %v653
        %v659 = vadd.f32 %v645, %v655
        %s660 = sld [smem:[#allocation3 + $0xa]]
        %v661 = vstv %s660
        %v662 = vmul.f32 %v661, %v624
        %v663 = vmul.f32 %v661, %v625
        %666 = vrot.lane.b32.xlu0 %v662, 125
        %v667 = vpop.permute.xlu0 %666
        %668 = vrot.lane.b32.xlu0 %v663, 125
        %v669 = vpop.permute.xlu0 %668
        %v672 = vadd.f32 %v658, %v667
        %v673 = vadd.f32 %v659, %v669
        %s674 = sld [smem:[#allocation3 + $0xb]]
        %v675 = vstv %s674
        %v676 = vmul.f32 %v675, %v624
        %v677 = vmul.f32 %v675, %v625
        %680 = vrot.lane.b32.xlu0 %v676, 124
        %v681 = vpop.permute.xlu0 %680
        %682 = vrot.lane.b32.xlu0 %v677, 124
        %v683 = vpop.permute.xlu0 %682
        %v686 = vadd.f32 %v672, %v681
        %v687 = vadd.f32 %v673, %v683
        %s688 = sld [smem:[#allocation3 + $0xc]]
        %v689 = vstv %s688
        %v690 = vmul.f32 %v689, %v624
        %v691 = vmul.f32 %v689, %v625
        %694 = vrot.lane.b32.xlu0 %v690, 123
        %v695 = vpop.permute.xlu0 %694
        %696 = vrot.lane.b32.xlu0 %v691, 123
        %v697 = vpop.permute.xlu0 %696
        %v700 = vadd.f32 %v686, %v695
        %v701 = vadd.f32 %v687, %v697
        %s702 = sld [smem:[#allocation3 + $0xd]]
        %v703 = vstv %s702
        %v704 = vmul.f32 %v703, %v624
        %v705 = vmul.f32 %v703, %v625
        %708 = vrot.lane.b32.xlu0 %v704, 122
        %v709 = vpop.permute.xlu0 %708
        %710 = vrot.lane.b32.xlu0 %v705, 122
        %v711 = vpop.permute.xlu0 %710
        %v714 = vadd.f32 %v700, %v709
        %v715 = vadd.f32 %v701, %v711
        %v716 = vld [vmem:[#allocation2 + $0x2] sm:$0xff]
        %v717 = vld [vmem:[#allocation2 + $0xa] sm:$0xff]
        %s718 = sld [smem:[#allocation3 + $0xe]]
        %v719 = vstv %s718
        %v720 = vmul.f32 %v719, %v716
        %v721 = vmul.f32 %v719, %v717
        %v722 = vadd.f32 %v714, %v720
        %v723 = vadd.f32 %v715, %v721
        %s724 = sld [smem:[#allocation3 + $0xf]]
        %v725 = vstv %s724
        %v726 = vmul.f32 %v725, %v716
        %v727 = vmul.f32 %v725, %v717
        %730 = vrot.lane.b32.xlu0 %v726, 127
        %v731 = vpop.permute.xlu0 %730
        %732 = vrot.lane.b32.xlu0 %v727, 127
        %v733 = vpop.permute.xlu0 %732
        %v736 = vadd.f32 %v722, %v731
        %v737 = vadd.f32 %v723, %v733
        %s738 = sld [smem:[#allocation3 + $0x10]]
        %v739 = vstv %s738
        %v740 = vmul.f32 %v739, %v716
        %v741 = vmul.f32 %v739, %v717
        %744 = vrot.lane.b32.xlu0 %v740, 126
        %v745 = vpop.permute.xlu0 %744
        %746 = vrot.lane.b32.xlu0 %v741, 126
        %v747 = vpop.permute.xlu0 %746
        %v750 = vadd.f32 %v736, %v745
        %v751 = vadd.f32 %v737, %v747
        %s752 = sld [smem:[#allocation3 + $0x11]]
        %v753 = vstv %s752
        %v754 = vmul.f32 %v753, %v716
        %v755 = vmul.f32 %v753, %v717
        %758 = vrot.lane.b32.xlu0 %v754, 125
        %v759 = vpop.permute.xlu0 %758
        %760 = vrot.lane.b32.xlu0 %v755, 125
        %v761 = vpop.permute.xlu0 %760
        %v764 = vadd.f32 %v750, %v759
        %v765 = vadd.f32 %v751, %v761
        %s766 = sld [smem:[#allocation3 + $0x12]]
        %v767 = vstv %s766
        %v768 = vmul.f32 %v767, %v716
        %v769 = vmul.f32 %v767, %v717
        %772 = vrot.lane.b32.xlu0 %v768, 124
        %v773 = vpop.permute.xlu0 %772
        %774 = vrot.lane.b32.xlu0 %v769, 124
        %v775 = vpop.permute.xlu0 %774
        %v778 = vadd.f32 %v764, %v773
        %v779 = vadd.f32 %v765, %v775
        %s780 = sld [smem:[#allocation3 + $0x13]]
        %v781 = vstv %s780
        %v782 = vmul.f32 %v781, %v716
        %v783 = vmul.f32 %v781, %v717
        %786 = vrot.lane.b32.xlu0 %v782, 123
        %v787 = vpop.permute.xlu0 %786
        %788 = vrot.lane.b32.xlu0 %v783, 123
        %v789 = vpop.permute.xlu0 %788
        %v792 = vadd.f32 %v778, %v787
        %v793 = vadd.f32 %v779, %v789
        %s794 = sld [smem:[#allocation3 + $0x14]]
        %v795 = vstv %s794
        %v796 = vmul.f32 %v795, %v716
        %v797 = vmul.f32 %v795, %v717
        %800 = vrot.lane.b32.xlu0 %v796, 122
        %v801 = vpop.permute.xlu0 %800
        %802 = vrot.lane.b32.xlu0 %v797, 122
        %v803 = vpop.permute.xlu0 %802
        %v806 = vadd.f32 %v792, %v801
        %v807 = vadd.f32 %v793, %v803
        %v808 = vld [vmem:[#allocation2 + $0x3] sm:$0xff]
        %v809 = vld [vmem:[#allocation2 + $0xb] sm:$0xff]
        %s810 = sld [smem:[#allocation3 + $0x15]]
        %v811 = vstv %s810
        %v812 = vmul.f32 %v811, %v808
        %v813 = vmul.f32 %v811, %v809
        %v814 = vadd.f32 %v806, %v812
        %v815 = vadd.f32 %v807, %v813
        %s816 = sld [smem:[#allocation3 + $0x16]]
        %v817 = vstv %s816
        %v818 = vmul.f32 %v817, %v808
        %v819 = vmul.f32 %v817, %v809
        %822 = vrot.lane.b32.xlu0 %v818, 127
        %v823 = vpop.permute.xlu0 %822
        %824 = vrot.lane.b32.xlu0 %v819, 127
        %v825 = vpop.permute.xlu0 %824
        %v828 = vadd.f32 %v814, %v823
        %v829 = vadd.f32 %v815, %v825
        %s830 = sld [smem:[#allocation3 + $0x17]]
        %v831 = vstv %s830
        %v832 = vmul.f32 %v831, %v808
        %v833 = vmul.f32 %v831, %v809
        %836 = vrot.lane.b32.xlu0 %v832, 126
        %v837 = vpop.permute.xlu0 %836
        %838 = vrot.lane.b32.xlu0 %v833, 126
        %v839 = vpop.permute.xlu0 %838
        %v842 = vadd.f32 %v828, %v837
        %v843 = vadd.f32 %v829, %v839
        %s844 = sld [smem:[#allocation3 + $0x18]]
        %v845 = vstv %s844
        %v846 = vmul.f32 %v845, %v808
        %v847 = vmul.f32 %v845, %v809
        %850 = vrot.lane.b32.xlu0 %v846, 125
        %v851 = vpop.permute.xlu0 %850
        %852 = vrot.lane.b32.xlu0 %v847, 125
        %v853 = vpop.permute.xlu0 %852
        %v856 = vadd.f32 %v842, %v851
        %v857 = vadd.f32 %v843, %v853
        %s858 = sld [smem:[#allocation3 + $0x19]]
        %v859 = vstv %s858
        %v860 = vmul.f32 %v859, %v808
        %v861 = vmul.f32 %v859, %v809
        %864 = vrot.lane.b32.xlu0 %v860, 124
        %v865 = vpop.permute.xlu0 %864
        %866 = vrot.lane.b32.xlu0 %v861, 124
        %v867 = vpop.permute.xlu0 %866
        %v870 = vadd.f32 %v856, %v865
        %v871 = vadd.f32 %v857, %v867
        %s872 = sld [smem:[#allocation3 + $0x1a]]
        %v873 = vstv %s872
        %v874 = vmul.f32 %v873, %v808
        %v875 = vmul.f32 %v873, %v809
        %878 = vrot.lane.b32.xlu0 %v874, 123
        %v879 = vpop.permute.xlu0 %878
        %880 = vrot.lane.b32.xlu0 %v875, 123
        %v881 = vpop.permute.xlu0 %880
        %v884 = vadd.f32 %v870, %v879
        %v885 = vadd.f32 %v871, %v881
        %s886 = sld [smem:[#allocation3 + $0x1b]]
        %v887 = vstv %s886
        %v888 = vmul.f32 %v887, %v808
        %v889 = vmul.f32 %v887, %v809
        %892 = vrot.lane.b32.xlu0 %v888, 122
        %v893 = vpop.permute.xlu0 %892
        %894 = vrot.lane.b32.xlu0 %v889, 122
        %v895 = vpop.permute.xlu0 %894
        %v898 = vadd.f32 %v884, %v893
        %v899 = vadd.f32 %v885, %v895
        %v900 = vld [vmem:[#allocation2 + $0x4] sm:$0xff]
        %v901 = vld [vmem:[#allocation2 + $0xc] sm:$0xff]
        %s902 = sld [smem:[#allocation3 + $0x1c]]
        %v903 = vstv %s902
        %v904 = vmul.f32 %v903, %v900
        %v905 = vmul.f32 %v903, %v901
        %v906 = vadd.f32 %v898, %v904
        %v907 = vadd.f32 %v899, %v905
        %s908 = sld [smem:[#allocation3 + $0x1d]]
        %v909 = vstv %s908
        %v910 = vmul.f32 %v909, %v900
        %v911 = vmul.f32 %v909, %v901
        %914 = vrot.lane.b32.xlu0 %v910, 127
        %v915 = vpop.permute.xlu0 %914
        %916 = vrot.lane.b32.xlu0 %v911, 127
        %v917 = vpop.permute.xlu0 %916
        %v920 = vadd.f32 %v906, %v915
        %v921 = vadd.f32 %v907, %v917
        %s922 = sld [smem:[#allocation3 + $0x1e]]
        %v923 = vstv %s922
        %v924 = vmul.f32 %v923, %v900
        %v925 = vmul.f32 %v923, %v901
        %928 = vrot.lane.b32.xlu0 %v924, 126
        %v929 = vpop.permute.xlu0 %928
        %930 = vrot.lane.b32.xlu0 %v925, 126
        %v931 = vpop.permute.xlu0 %930
        %v934 = vadd.f32 %v920, %v929
        %v935 = vadd.f32 %v921, %v931
        %s936 = sld [smem:[#allocation3 + $0x1f]]
        %v937 = vstv %s936
        %v938 = vmul.f32 %v937, %v900
        %v939 = vmul.f32 %v937, %v901
        %942 = vrot.lane.b32.xlu0 %v938, 125
        %v943 = vpop.permute.xlu0 %942
        %944 = vrot.lane.b32.xlu0 %v939, 125
        %v945 = vpop.permute.xlu0 %944
        %v948 = vadd.f32 %v934, %v943
        %v949 = vadd.f32 %v935, %v945
        %s950 = sld [smem:[#allocation3 + $0x20]]
        %v951 = vstv %s950
        %v952 = vmul.f32 %v951, %v900
        %v953 = vmul.f32 %v951, %v901
        %956 = vrot.lane.b32.xlu0 %v952, 124
        %v957 = vpop.permute.xlu0 %956
        %958 = vrot.lane.b32.xlu0 %v953, 124
        %v959 = vpop.permute.xlu0 %958
        %v962 = vadd.f32 %v948, %v957
        %v963 = vadd.f32 %v949, %v959
        %s964 = sld [smem:[#allocation3 + $0x21]]
        %v965 = vstv %s964
        %v966 = vmul.f32 %v965, %v900
        %v967 = vmul.f32 %v965, %v901
        %970 = vrot.lane.b32.xlu0 %v966, 123
        %v971 = vpop.permute.xlu0 %970
        %972 = vrot.lane.b32.xlu0 %v967, 123
        %v973 = vpop.permute.xlu0 %972
        %v976 = vadd.f32 %v962, %v971
        %v977 = vadd.f32 %v963, %v973
        %s978 = sld [smem:[#allocation3 + $0x22]]
        %v979 = vstv %s978
        %v980 = vmul.f32 %v979, %v900
        %v981 = vmul.f32 %v979, %v901
        %984 = vrot.lane.b32.xlu0 %v980, 122
        %v985 = vpop.permute.xlu0 %984
        %986 = vrot.lane.b32.xlu0 %v981, 122
        %v987 = vpop.permute.xlu0 %986
        %v990 = vadd.f32 %v976, %v985
        %v991 = vadd.f32 %v977, %v987
        %v992 = vld [vmem:[#allocation2 + $0x5] sm:$0xff]
        %v993 = vld [vmem:[#allocation2 + $0xd] sm:$0xff]
        %s994 = sld [smem:[#allocation3 + $0x23]]
        %v995 = vstv %s994
        %v996 = vmul.f32 %v995, %v992
        %v997 = vmul.f32 %v995, %v993
        %v998 = vadd.f32 %v990, %v996
        %v999 = vadd.f32 %v991, %v997
        %s1000 = sld [smem:[#allocation3 + $0x24]]
        %v1001 = vstv %s1000
        %v1002 = vmul.f32 %v1001, %v992
        %v1003 = vmul.f32 %v1001, %v993
        %1006 = vrot.lane.b32.xlu0 %v1002, 127
        %v1007 = vpop.permute.xlu0 %1006
        %1008 = vrot.lane.b32.xlu0 %v1003, 127
        %v1009 = vpop.permute.xlu0 %1008
        %v1012 = vadd.f32 %v998, %v1007
        %v1013 = vadd.f32 %v999, %v1009
        %s1014 = sld [smem:[#allocation3 + $0x25]]
        %v1015 = vstv %s1014
        %v1016 = vmul.f32 %v1015, %v992
        %v1017 = vmul.f32 %v1015, %v993
        %1020 = vrot.lane.b32.xlu0 %v1016, 126
        %v1021 = vpop.permute.xlu0 %1020
        %1022 = vrot.lane.b32.xlu0 %v1017, 126
        %v1023 = vpop.permute.xlu0 %1022
        %v1026 = vadd.f32 %v1012, %v1021
        %v1027 = vadd.f32 %v1013, %v1023
        %s1028 = sld [smem:[#allocation3 + $0x26]]
        %v1029 = vstv %s1028
        %v1030 = vmul.f32 %v1029, %v992
        %v1031 = vmul.f32 %v1029, %v993
        %1034 = vrot.lane.b32.xlu0 %v1030, 125
        %v1035 = vpop.permute.xlu0 %1034
        %1036 = vrot.lane.b32.xlu0 %v1031, 125
        %v1037 = vpop.permute.xlu0 %1036
        %v1040 = vadd.f32 %v1026, %v1035
        %v1041 = vadd.f32 %v1027, %v1037
        %s1042 = sld [smem:[#allocation3 + $0x27]]
        %v1043 = vstv %s1042
        %v1044 = vmul.f32 %v1043, %v992
        %v1045 = vmul.f32 %v1043, %v993
        %1048 = vrot.lane.b32.xlu0 %v1044, 124
        %v1049 = vpop.permute.xlu0 %1048
        %1050 = vrot.lane.b32.xlu0 %v1045, 124
        %v1051 = vpop.permute.xlu0 %1050
        %v1054 = vadd.f32 %v1040, %v1049
        %v1055 = vadd.f32 %v1041, %v1051
        %s1056 = sld [smem:[#allocation3 + $0x28]]
        %v1057 = vstv %s1056
        %v1058 = vmul.f32 %v1057, %v992
        %v1059 = vmul.f32 %v1057, %v993
        %1062 = vrot.lane.b32.xlu0 %v1058, 123
        %v1063 = vpop.permute.xlu0 %1062
        %1064 = vrot.lane.b32.xlu0 %v1059, 123
        %v1065 = vpop.permute.xlu0 %1064
        %v1068 = vadd.f32 %v1054, %v1063
        %v1069 = vadd.f32 %v1055, %v1065
        %s1070 = sld [smem:[#allocation3 + $0x29]]
        %v1071 = vstv %s1070
        %v1072 = vmul.f32 %v1071, %v992
        %v1073 = vmul.f32 %v1071, %v993
        %1076 = vrot.lane.b32.xlu0 %v1072, 122
        %v1077 = vpop.permute.xlu0 %1076
        %1078 = vrot.lane.b32.xlu0 %v1073, 122
        %v1079 = vpop.permute.xlu0 %1078
        %v1082 = vadd.f32 %v1068, %v1077
        %v1083 = vadd.f32 %v1069, %v1079
        %v1084 = vld [vmem:[#allocation2 + $0x6] sm:$0xff]
        %v1085 = vld [vmem:[#allocation2 + $0xe] sm:$0xff]
        %s1086 = sld [smem:[#allocation3 + $0x2a]]
        %v1087 = vstv %s1086
        %v1088 = vmul.f32 %v1087, %v1084
        %v1089 = vmul.f32 %v1087, %v1085
        %v1090 = vadd.f32 %v1082, %v1088
        %v1091 = vadd.f32 %v1083, %v1089
        %s1092 = sld [smem:[#allocation3 + $0x2b]]
        %v1093 = vstv %s1092
        %v1094 = vmul.f32 %v1093, %v1084
        %v1095 = vmul.f32 %v1093, %v1085
        %1098 = vrot.lane.b32.xlu0 %v1094, 127
        %v1099 = vpop.permute.xlu0 %1098
        %1100 = vrot.lane.b32.xlu0 %v1095, 127
        %v1101 = vpop.permute.xlu0 %1100
        %v1104 = vadd.f32 %v1090, %v1099
        %v1105 = vadd.f32 %v1091, %v1101
        %s1106 = sld [smem:[#allocation3 + $0x2c]]
        %v1107 = vstv %s1106
        %v1108 = vmul.f32 %v1107, %v1084
        %v1109 = vmul.f32 %v1107, %v1085
        %1112 = vrot.lane.b32.xlu0 %v1108, 126
        %v1113 = vpop.permute.xlu0 %1112
        %1114 = vrot.lane.b32.xlu0 %v1109, 126
        %v1115 = vpop.permute.xlu0 %1114
        %v1118 = vadd.f32 %v1104, %v1113
        %v1119 = vadd.f32 %v1105, %v1115
        %s1120 = sld [smem:[#allocation3 + $0x2d]]
        %v1121 = vstv %s1120
        %v1122 = vmul.f32 %v1121, %v1084
        %v1123 = vmul.f32 %v1121, %v1085
        %1126 = vrot.lane.b32.xlu0 %v1122, 125
        %v1127 = vpop.permute.xlu0 %1126
        %1128 = vrot.lane.b32.xlu0 %v1123, 125
        %v1129 = vpop.permute.xlu0 %1128
        %v1132 = vadd.f32 %v1118, %v1127
        %v1133 = vadd.f32 %v1119, %v1129
        %s1134 = sld [smem:[#allocation3 + $0x2e]]
        %v1135 = vstv %s1134
        %v1136 = vmul.f32 %v1135, %v1084
        %v1137 = vmul.f32 %v1135, %v1085
        %1140 = vrot.lane.b32.xlu0 %v1136, 124
        %v1141 = vpop.permute.xlu0 %1140
        %1142 = vrot.lane.b32.xlu0 %v1137, 124
        %v1143 = vpop.permute.xlu0 %1142
        %v1146 = vadd.f32 %v1132, %v1141
        %v1147 = vadd.f32 %v1133, %v1143
        %s1148 = sld [smem:[#allocation3 + $0x2f]]
        %v1149 = vstv %s1148
        %v1150 = vmul.f32 %v1149, %v1084
        %v1151 = vmul.f32 %v1149, %v1085
        %1154 = vrot.lane.b32.xlu0 %v1150, 123
        %v1155 = vpop.permute.xlu0 %1154
        %1156 = vrot.lane.b32.xlu0 %v1151, 123
        %v1157 = vpop.permute.xlu0 %1156
        %v1160 = vadd.f32 %v1146, %v1155
        %v1161 = vadd.f32 %v1147, %v1157
        %s1162 = sld [smem:[#allocation3 + $0x30]]
        %v1163 = vstv %s1162
        %v1164 = vmul.f32 %v1163, %v1084
        %v1165 = vmul.f32 %v1163, %v1085
        %1168 = vrot.lane.b32.xlu0 %v1164, 122
        %v1169 = vpop.permute.xlu0 %1168
        %1170 = vrot.lane.b32.xlu0 %v1165, 122
        %v1171 = vpop.permute.xlu0 %1170
        %v1174 = vadd.f32 %v1160, %v1169
        %v1175 = vadd.f32 %v1161, %v1171
        %v1176 = vld [vmem:[%s518] sm:$0xff]
        %v1177 = vld [vmem:[%s518 + $0x8] sm:$0xff]
        %s1178 = sld [smem:[#allocation3 + $0x80]]
        %v1179 = vstv %s1178
        %v1180 = vmul.f32 %v1179, %v1176
        %v1181 = vmul.f32 %v1179, %v1177
        %v1182 = vadd.f32 %v1174, %v1180
        %v1183 = vadd.f32 %v1175, %v1181
        %s1184 = sld [smem:[#allocation3 + $0x81]]
        %v1185 = vstv %s1184
        %v1186 = vmul.f32 %v1185, %v1176
        %v1187 = vmul.f32 %v1185, %v1177
        %1190 = vrot.lane.b32.xlu0 %v1186, 127
        %v1191 = vpop.permute.xlu0 %1190
        %1192 = vrot.lane.b32.xlu0 %v1187, 127
        %v1193 = vpop.permute.xlu0 %1192
        %v1196 = vadd.f32 %v1182, %v1191
        %v1197 = vadd.f32 %v1183, %v1193
        %s1198 = sld [smem:[#allocation3 + $0x82]]
        %v1199 = vstv %s1198
        %v1200 = vmul.f32 %v1199, %v1176
        %v1201 = vmul.f32 %v1199, %v1177
        %1204 = vrot.lane.b32.xlu0 %v1200, 126
        %v1205 = vpop.permute.xlu0 %1204
        %1206 = vrot.lane.b32.xlu0 %v1201, 126
        %v1207 = vpop.permute.xlu0 %1206
        %v1210 = vadd.f32 %v1196, %v1205
        %v1211 = vadd.f32 %v1197, %v1207
        %s1212 = sld [smem:[#allocation3 + $0x83]]
        %v1213 = vstv %s1212
        %v1214 = vmul.f32 %v1213, %v1176
        %v1215 = vmul.f32 %v1213, %v1177
        %1218 = vrot.lane.b32.xlu0 %v1214, 125
        %v1219 = vpop.permute.xlu0 %1218
        %1220 = vrot.lane.b32.xlu0 %v1215, 125
        %v1221 = vpop.permute.xlu0 %1220
        %v1224 = vadd.f32 %v1210, %v1219
        %v1225 = vadd.f32 %v1211, %v1221
        %s1226 = sld [smem:[#allocation3 + $0x84]]
        %v1227 = vstv %s1226
        %v1228 = vmul.f32 %v1227, %v1176
        %v1229 = vmul.f32 %v1227, %v1177
        %1232 = vrot.lane.b32.xlu0 %v1228, 124
        %v1233 = vpop.permute.xlu0 %1232
        %1234 = vrot.lane.b32.xlu0 %v1229, 124
        %v1235 = vpop.permute.xlu0 %1234
        %v1238 = vadd.f32 %v1224, %v1233
        %v1239 = vadd.f32 %v1225, %v1235
        %s1240 = sld [smem:[#allocation3 + $0x85]]
        %v1241 = vstv %s1240
        %v1242 = vmul.f32 %v1241, %v1176
        %v1243 = vmul.f32 %v1241, %v1177
        %1246 = vrot.lane.b32.xlu0 %v1242, 123
        %v1247 = vpop.permute.xlu0 %1246
        %1248 = vrot.lane.b32.xlu0 %v1243, 123
        %v1249 = vpop.permute.xlu0 %1248
        %v1252 = vadd.f32 %v1238, %v1247
        %v1253 = vadd.f32 %v1239, %v1249
        %s1254 = sld [smem:[#allocation3 + $0x86]]
        %v1255 = vstv %s1254
        %v1256 = vmul.f32 %v1255, %v1176
        %v1257 = vmul.f32 %v1255, %v1177
        %1260 = vrot.lane.b32.xlu0 %v1256, 122
        %v1261 = vpop.permute.xlu0 %1260
        %1262 = vrot.lane.b32.xlu0 %v1257, 122
        %v1263 = vpop.permute.xlu0 %1262
        %v1266 = vadd.f32 %v1252, %v1261
        %v1267 = vadd.f32 %v1253, %v1263
        %v1268 = vld [vmem:[%s518 + $0x1] sm:$0xff]
        %v1269 = vld [vmem:[%s518 + $0x9] sm:$0xff]
        %s1270 = sld [smem:[#allocation3 + $0x87]]
        %v1271 = vstv %s1270
        %v1272 = vmul.f32 %v1271, %v1268
        %v1273 = vmul.f32 %v1271, %v1269
        %v1274 = vadd.f32 %v1266, %v1272
        %v1275 = vadd.f32 %v1267, %v1273
        %s1276 = sld [smem:[#allocation3 + $0x88]]
        %v1277 = vstv %s1276
        %v1278 = vmul.f32 %v1277, %v1268
        %v1279 = vmul.f32 %v1277, %v1269
        %1282 = vrot.lane.b32.xlu0 %v1278, 127
        %v1283 = vpop.permute.xlu0 %1282
        %1284 = vrot.lane.b32.xlu0 %v1279, 127
        %v1285 = vpop.permute.xlu0 %1284
        %v1288 = vadd.f32 %v1274, %v1283
        %v1289 = vadd.f32 %v1275, %v1285
        %s1290 = sld [smem:[#allocation3 + $0x89]]
        %v1291 = vstv %s1290
        %v1292 = vmul.f32 %v1291, %v1268
        %v1293 = vmul.f32 %v1291, %v1269
        %1296 = vrot.lane.b32.xlu0 %v1292, 126
        %v1297 = vpop.permute.xlu0 %1296
        %1298 = vrot.lane.b32.xlu0 %v1293, 126
        %v1299 = vpop.permute.xlu0 %1298
        %v1302 = vadd.f32 %v1288, %v1297
        %v1303 = vadd.f32 %v1289, %v1299
        %s1304 = sld [smem:[#allocation3 + $0x8a]]
        %v1305 = vstv %s1304
        %v1306 = vmul.f32 %v1305, %v1268
        %v1307 = vmul.f32 %v1305, %v1269
        %1310 = vrot.lane.b32.xlu0 %v1306, 125
        %v1311 = vpop.permute.xlu0 %1310
        %1312 = vrot.lane.b32.xlu0 %v1307, 125
        %v1313 = vpop.permute.xlu0 %1312
        %v1316 = vadd.f32 %v1302, %v1311
        %v1317 = vadd.f32 %v1303, %v1313
        %s1318 = sld [smem:[#allocation3 + $0x8b]]
        %v1319 = vstv %s1318
        %v1320 = vmul.f32 %v1319, %v1268
        %v1321 = vmul.f32 %v1319, %v1269
        %1324 = vrot.lane.b32.xlu0 %v1320, 124
        %v1325 = vpop.permute.xlu0 %1324
        %1326 = vrot.lane.b32.xlu0 %v1321, 124
        %v1327 = vpop.permute.xlu0 %1326
        %v1330 = vadd.f32 %v1316, %v1325
        %v1331 = vadd.f32 %v1317, %v1327
        %s1332 = sld [smem:[#allocation3 + $0x8c]]
        %v1333 = vstv %s1332
        %v1334 = vmul.f32 %v1333, %v1268
        %v1335 = vmul.f32 %v1333, %v1269
        %1338 = vrot.lane.b32.xlu0 %v1334, 123
        %v1339 = vpop.permute.xlu0 %1338
        %1340 = vrot.lane.b32.xlu0 %v1335, 123
        %v1341 = vpop.permute.xlu0 %1340
        %v1344 = vadd.f32 %v1330, %v1339
        %v1345 = vadd.f32 %v1331, %v1341
        %s1346 = sld [smem:[#allocation3 + $0x8d]]
        %v1347 = vstv %s1346
        %v1348 = vmul.f32 %v1347, %v1268
        %v1349 = vmul.f32 %v1347, %v1269
        %1352 = vrot.lane.b32.xlu0 %v1348, 122
        %v1353 = vpop.permute.xlu0 %1352
        %1354 = vrot.lane.b32.xlu0 %v1349, 122
        %v1355 = vpop.permute.xlu0 %1354
        %v1358 = vadd.f32 %v1344, %v1353
        %v1359 = vadd.f32 %v1345, %v1355
        %v1360 = vld [vmem:[%s518 + $0x2] sm:$0xff]
        %v1361 = vld [vmem:[%s518 + $0xa] sm:$0xff]
        %s1362 = sld [smem:[#allocation3 + $0x8e]]
        %v1363 = vstv %s1362
        %v1364 = vmul.f32 %v1363, %v1360
        %v1365 = vmul.f32 %v1363, %v1361
        %v1366 = vadd.f32 %v1358, %v1364
        %v1367 = vadd.f32 %v1359, %v1365
        %s1368 = sld [smem:[#allocation3 + $0x8f]]
        %v1369 = vstv %s1368
        %v1370 = vmul.f32 %v1369, %v1360
        %v1371 = vmul.f32 %v1369, %v1361
        %1374 = vrot.lane.b32.xlu0 %v1370, 127
        %v1375 = vpop.permute.xlu0 %1374
        %1376 = vrot.lane.b32.xlu0 %v1371, 127
        %v1377 = vpop.permute.xlu0 %1376
        %v1380 = vadd.f32 %v1366, %v1375
        %v1381 = vadd.f32 %v1367, %v1377
        %s1382 = sld [smem:[#allocation3 + $0x90]]
        %v1383 = vstv %s1382
        %v1384 = vmul.f32 %v1383, %v1360
        %v1385 = vmul.f32 %v1383, %v1361
        %1388 = vrot.lane.b32.xlu0 %v1384, 126
        %v1389 = vpop.permute.xlu0 %1388
        %1390 = vrot.lane.b32.xlu0 %v1385, 126
        %v1391 = vpop.permute.xlu0 %1390
        %v1394 = vadd.f32 %v1380, %v1389
        %v1395 = vadd.f32 %v1381, %v1391
        %s1396 = sld [smem:[#allocation3 + $0x91]]
        %v1397 = vstv %s1396
        %v1398 = vmul.f32 %v1397, %v1360
        %v1399 = vmul.f32 %v1397, %v1361
        %1402 = vrot.lane.b32.xlu0 %v1398, 125
        %v1403 = vpop.permute.xlu0 %1402
        %1404 = vrot.lane.b32.xlu0 %v1399, 125
        %v1405 = vpop.permute.xlu0 %1404
        %v1408 = vadd.f32 %v1394, %v1403
        %v1409 = vadd.f32 %v1395, %v1405
        %s1410 = sld [smem:[#allocation3 + $0x92]]
        %v1411 = vstv %s1410
        %v1412 = vmul.f32 %v1411, %v1360
        %v1413 = vmul.f32 %v1411, %v1361
        %1416 = vrot.lane.b32.xlu0 %v1412, 124
        %v1417 = vpop.permute.xlu0 %1416
        %1418 = vrot.lane.b32.xlu0 %v1413, 124
        %v1419 = vpop.permute.xlu0 %1418
        %v1422 = vadd.f32 %v1408, %v1417
        %v1423 = vadd.f32 %v1409, %v1419
        %s1424 = sld [smem:[#allocation3 + $0x93]]
        %v1425 = vstv %s1424
        %v1426 = vmul.f32 %v1425, %v1360
        %v1427 = vmul.f32 %v1425, %v1361
        %1430 = vrot.lane.b32.xlu0 %v1426, 123
        %v1431 = vpop.permute.xlu0 %1430
        %1432 = vrot.lane.b32.xlu0 %v1427, 123
        %v1433 = vpop.permute.xlu0 %1432
        %v1436 = vadd.f32 %v1422, %v1431
        %v1437 = vadd.f32 %v1423, %v1433
        %s1438 = sld [smem:[#allocation3 + $0x94]]
        %v1439 = vstv %s1438
        %v1440 = vmul.f32 %v1439, %v1360
        %v1441 = vmul.f32 %v1439, %v1361
        %1444 = vrot.lane.b32.xlu0 %v1440, 122
        %v1445 = vpop.permute.xlu0 %1444
        %1446 = vrot.lane.b32.xlu0 %v1441, 122
        %v1447 = vpop.permute.xlu0 %1446
        %v1450 = vadd.f32 %v1436, %v1445
        %v1451 = vadd.f32 %v1437, %v1447
        %v1452 = vld [vmem:[%s518 + $0x3] sm:$0xff]
        %v1453 = vld [vmem:[%s518 + $0xb] sm:$0xff]
        %s1454 = sld [smem:[#allocation3 + $0x95]]
        %v1455 = vstv %s1454
        %v1456 = vmul.f32 %v1455, %v1452
        %v1457 = vmul.f32 %v1455, %v1453
        %v1458 = vadd.f32 %v1450, %v1456
        %v1459 = vadd.f32 %v1451, %v1457
        %s1460 = sld [smem:[#allocation3 + $0x96]]
        %v1461 = vstv %s1460
        %v1462 = vmul.f32 %v1461, %v1452
        %v1463 = vmul.f32 %v1461, %v1453
        %1466 = vrot.lane.b32.xlu0 %v1462, 127
        %v1467 = vpop.permute.xlu0 %1466
        %1468 = vrot.lane.b32.xlu0 %v1463, 127
        %v1469 = vpop.permute.xlu0 %1468
        %v1472 = vadd.f32 %v1458, %v1467
        %v1473 = vadd.f32 %v1459, %v1469
        %s1474 = sld [smem:[#allocation3 + $0x97]]
        %v1475 = vstv %s1474
        %v1476 = vmul.f32 %v1475, %v1452
        %v1477 = vmul.f32 %v1475, %v1453
        %1480 = vrot.lane.b32.xlu0 %v1476, 126
        %v1481 = vpop.permute.xlu0 %1480
        %1482 = vrot.lane.b32.xlu0 %v1477, 126
        %v1483 = vpop.permute.xlu0 %1482
        %v1486 = vadd.f32 %v1472, %v1481
        %v1487 = vadd.f32 %v1473, %v1483
        %s1488 = sld [smem:[#allocation3 + $0x98]]
        %v1489 = vstv %s1488
        %v1490 = vmul.f32 %v1489, %v1452
        %v1491 = vmul.f32 %v1489, %v1453
        %1494 = vrot.lane.b32.xlu0 %v1490, 125
        %v1495 = vpop.permute.xlu0 %1494
        %1496 = vrot.lane.b32.xlu0 %v1491, 125
        %v1497 = vpop.permute.xlu0 %1496
        %v1500 = vadd.f32 %v1486, %v1495
        %v1501 = vadd.f32 %v1487, %v1497
        %s1502 = sld [smem:[#allocation3 + $0x99]]
        %v1503 = vstv %s1502
        %v1504 = vmul.f32 %v1503, %v1452
        %v1505 = vmul.f32 %v1503, %v1453
        %1508 = vrot.lane.b32.xlu0 %v1504, 124
        %v1509 = vpop.permute.xlu0 %1508
        %1510 = vrot.lane.b32.xlu0 %v1505, 124
        %v1511 = vpop.permute.xlu0 %1510
        %v1514 = vadd.f32 %v1500, %v1509
        %v1515 = vadd.f32 %v1501, %v1511
        %s1516 = sld [smem:[#allocation3 + $0x9a]]
        %v1517 = vstv %s1516
        %v1518 = vmul.f32 %v1517, %v1452
        %v1519 = vmul.f32 %v1517, %v1453
        %1522 = vrot.lane.b32.xlu0 %v1518, 123
        %v1523 = vpop.permute.xlu0 %1522
        %1524 = vrot.lane.b32.xlu0 %v1519, 123
        %v1525 = vpop.permute.xlu0 %1524
        %v1528 = vadd.f32 %v1514, %v1523
        %v1529 = vadd.f32 %v1515, %v1525
        %s1530 = sld [smem:[#allocation3 + $0x9b]]
        %v1531 = vstv %s1530
        %v1532 = vmul.f32 %v1531, %v1452
        %v1533 = vmul.f32 %v1531, %v1453
        %1536 = vrot.lane.b32.xlu0 %v1532, 122
        %v1537 = vpop.permute.xlu0 %1536
        %1538 = vrot.lane.b32.xlu0 %v1533, 122
        %v1539 = vpop.permute.xlu0 %1538
        %v1542 = vadd.f32 %v1528, %v1537
        %v1543 = vadd.f32 %v1529, %v1539
        %v1544 = vld [vmem:[%s518 + $0x4] sm:$0xff]
        %v1545 = vld [vmem:[%s518 + $0xc] sm:$0xff]
        %s1546 = sld [smem:[#allocation3 + $0x9c]]
        %v1547 = vstv %s1546
        %v1548 = vmul.f32 %v1547, %v1544
        %v1549 = vmul.f32 %v1547, %v1545
        %v1550 = vadd.f32 %v1542, %v1548
        %v1551 = vadd.f32 %v1543, %v1549
        %s1552 = sld [smem:[#allocation3 + $0x9d]]
        %v1553 = vstv %s1552
        %v1554 = vmul.f32 %v1553, %v1544
        %v1555 = vmul.f32 %v1553, %v1545
        %1558 = vrot.lane.b32.xlu0 %v1554, 127
        %v1559 = vpop.permute.xlu0 %1558
        %1560 = vrot.lane.b32.xlu0 %v1555, 127
        %v1561 = vpop.permute.xlu0 %1560
        %v1564 = vadd.f32 %v1550, %v1559
        %v1565 = vadd.f32 %v1551, %v1561
        %s1566 = sld [smem:[#allocation3 + $0x9e]]
        %v1567 = vstv %s1566
        %v1568 = vmul.f32 %v1567, %v1544
        %v1569 = vmul.f32 %v1567, %v1545
        %1572 = vrot.lane.b32.xlu0 %v1568, 126
        %v1573 = vpop.permute.xlu0 %1572
        %1574 = vrot.lane.b32.xlu0 %v1569, 126
        %v1575 = vpop.permute.xlu0 %1574
        %v1578 = vadd.f32 %v1564, %v1573
        %v1579 = vadd.f32 %v1565, %v1575
        %s1580 = sld [smem:[#allocation3 + $0x9f]]
        %v1581 = vstv %s1580
        %v1582 = vmul.f32 %v1581, %v1544
        %v1583 = vmul.f32 %v1581, %v1545
        %1586 = vrot.lane.b32.xlu0 %v1582, 125
        %v1587 = vpop.permute.xlu0 %1586
        %1588 = vrot.lane.b32.xlu0 %v1583, 125
        %v1589 = vpop.permute.xlu0 %1588
        %v1592 = vadd.f32 %v1578, %v1587
        %v1593 = vadd.f32 %v1579, %v1589
        %s1594 = sld [smem:[#allocation3 + $0xa0]]
        %v1595 = vstv %s1594
        %v1596 = vmul.f32 %v1595, %v1544
        %v1597 = vmul.f32 %v1595, %v1545
        %1600 = vrot.lane.b32.xlu0 %v1596, 124
        %v1601 = vpop.permute.xlu0 %1600
        %1602 = vrot.lane.b32.xlu0 %v1597, 124
        %v1603 = vpop.permute.xlu0 %1602
        %v1606 = vadd.f32 %v1592, %v1601
        %v1607 = vadd.f32 %v1593, %v1603
        %s1608 = sld [smem:[#allocation3 + $0xa1]]
        %v1609 = vstv %s1608
        %v1610 = vmul.f32 %v1609, %v1544
        %v1611 = vmul.f32 %v1609, %v1545
        %1614 = vrot.lane.b32.xlu0 %v1610, 123
        %v1615 = vpop.permute.xlu0 %1614
        %1616 = vrot.lane.b32.xlu0 %v1611, 123
        %v1617 = vpop.permute.xlu0 %1616
        %v1620 = vadd.f32 %v1606, %v1615
        %v1621 = vadd.f32 %v1607, %v1617
        %s1622 = sld [smem:[#allocation3 + $0xa2]]
        %v1623 = vstv %s1622
        %v1624 = vmul.f32 %v1623, %v1544
        %v1625 = vmul.f32 %v1623, %v1545
        %1628 = vrot.lane.b32.xlu0 %v1624, 122
        %v1629 = vpop.permute.xlu0 %1628
        %1630 = vrot.lane.b32.xlu0 %v1625, 122
        %v1631 = vpop.permute.xlu0 %1630
        %v1634 = vadd.f32 %v1620, %v1629
        %v1635 = vadd.f32 %v1621, %v1631
        %v1636 = vld [vmem:[%s518 + $0x5] sm:$0xff]
        %v1637 = vld [vmem:[%s518 + $0xd] sm:$0xff]
        %s1638 = sld [smem:[#allocation3 + $0xa3]]
        %v1639 = vstv %s1638
        %v1640 = vmul.f32 %v1639, %v1636
        %v1641 = vmul.f32 %v1639, %v1637
        %v1642 = vadd.f32 %v1634, %v1640
        %v1643 = vadd.f32 %v1635, %v1641
        %s1644 = sld [smem:[#allocation3 + $0xa4]]
        %v1645 = vstv %s1644
        %v1646 = vmul.f32 %v1645, %v1636
        %v1647 = vmul.f32 %v1645, %v1637
        %1650 = vrot.lane.b32.xlu0 %v1646, 127
        %v1651 = vpop.permute.xlu0 %1650
        %1652 = vrot.lane.b32.xlu0 %v1647, 127
        %v1653 = vpop.permute.xlu0 %1652
        %v1656 = vadd.f32 %v1642, %v1651
        %v1657 = vadd.f32 %v1643, %v1653
        %s1658 = sld [smem:[#allocation3 + $0xa5]]
        %v1659 = vstv %s1658
        %v1660 = vmul.f32 %v1659, %v1636
        %v1661 = vmul.f32 %v1659, %v1637
        %1664 = vrot.lane.b32.xlu0 %v1660, 126
        %v1665 = vpop.permute.xlu0 %1664
        %1666 = vrot.lane.b32.xlu0 %v1661, 126
        %v1667 = vpop.permute.xlu0 %1666
        %v1670 = vadd.f32 %v1656, %v1665
        %v1671 = vadd.f32 %v1657, %v1667
        %s1672 = sld [smem:[#allocation3 + $0xa6]]
        %v1673 = vstv %s1672
        %v1674 = vmul.f32 %v1673, %v1636
        %v1675 = vmul.f32 %v1673, %v1637
        %1678 = vrot.lane.b32.xlu0 %v1674, 125
        %v1679 = vpop.permute.xlu0 %1678
        %1680 = vrot.lane.b32.xlu0 %v1675, 125
        %v1681 = vpop.permute.xlu0 %1680
        %v1684 = vadd.f32 %v1670, %v1679
        %v1685 = vadd.f32 %v1671, %v1681
        %s1686 = sld [smem:[#allocation3 + $0xa7]]
        %v1687 = vstv %s1686
        %v1688 = vmul.f32 %v1687, %v1636
        %v1689 = vmul.f32 %v1687, %v1637
        %1692 = vrot.lane.b32.xlu0 %v1688, 124
        %v1693 = vpop.permute.xlu0 %1692
        %1694 = vrot.lane.b32.xlu0 %v1689, 124
        %v1695 = vpop.permute.xlu0 %1694
        %v1698 = vadd.f32 %v1684, %v1693
        %v1699 = vadd.f32 %v1685, %v1695
        %s1700 = sld [smem:[#allocation3 + $0xa8]]
        %v1701 = vstv %s1700
        %v1702 = vmul.f32 %v1701, %v1636
        %v1703 = vmul.f32 %v1701, %v1637
        %1706 = vrot.lane.b32.xlu0 %v1702, 123
        %v1707 = vpop.permute.xlu0 %1706
        %1708 = vrot.lane.b32.xlu0 %v1703, 123
        %v1709 = vpop.permute.xlu0 %1708
        %v1712 = vadd.f32 %v1698, %v1707
        %v1713 = vadd.f32 %v1699, %v1709
        %s1714 = sld [smem:[#allocation3 + $0xa9]]
        %v1715 = vstv %s1714
        %v1716 = vmul.f32 %v1715, %v1636
        %v1717 = vmul.f32 %v1715, %v1637
        %1720 = vrot.lane.b32.xlu0 %v1716, 122
        %v1721 = vpop.permute.xlu0 %1720
        %1722 = vrot.lane.b32.xlu0 %v1717, 122
        %v1723 = vpop.permute.xlu0 %1722
        %v1726 = vadd.f32 %v1712, %v1721
        %v1727 = vadd.f32 %v1713, %v1723
        %v1728 = vld [vmem:[%s518 + $0x6] sm:$0xff]
        %v1729 = vld [vmem:[%s518 + $0xe] sm:$0xff]
        %s1730 = sld [smem:[#allocation3 + $0xaa]]
        %v1731 = vstv %s1730
        %v1732 = vmul.f32 %v1731, %v1728
        %v1733 = vmul.f32 %v1731, %v1729
        %v1734 = vadd.f32 %v1726, %v1732
        %v1735 = vadd.f32 %v1727, %v1733
        %s1736 = sld [smem:[#allocation3 + $0xab]]
        %v1737 = vstv %s1736
        %v1738 = vmul.f32 %v1737, %v1728
        %v1739 = vmul.f32 %v1737, %v1729
        %1742 = vrot.lane.b32.xlu0 %v1738, 127
        %v1743 = vpop.permute.xlu0 %1742
        %1744 = vrot.lane.b32.xlu0 %v1739, 127
        %v1745 = vpop.permute.xlu0 %1744
        %v1748 = vadd.f32 %v1734, %v1743
        %v1749 = vadd.f32 %v1735, %v1745
        %s1750 = sld [smem:[#allocation3 + $0xac]]
        %v1751 = vstv %s1750
        %v1752 = vmul.f32 %v1751, %v1728
        %v1753 = vmul.f32 %v1751, %v1729
        %1756 = vrot.lane.b32.xlu0 %v1752, 126
        %v1757 = vpop.permute.xlu0 %1756
        %1758 = vrot.lane.b32.xlu0 %v1753, 126
        %v1759 = vpop.permute.xlu0 %1758
        %v1762 = vadd.f32 %v1748, %v1757
        %v1763 = vadd.f32 %v1749, %v1759
        %s1764 = sld [smem:[#allocation3 + $0xad]]
        %v1765 = vstv %s1764
        %v1766 = vmul.f32 %v1765, %v1728
        %v1767 = vmul.f32 %v1765, %v1729
        %1770 = vrot.lane.b32.xlu0 %v1766, 125
        %v1771 = vpop.permute.xlu0 %1770
        %1772 = vrot.lane.b32.xlu0 %v1767, 125
        %v1773 = vpop.permute.xlu0 %1772
        %v1776 = vadd.f32 %v1762, %v1771
        %v1777 = vadd.f32 %v1763, %v1773
        %s1778 = sld [smem:[#allocation3 + $0xae]]
        %v1779 = vstv %s1778
        %v1780 = vmul.f32 %v1779, %v1728
        %v1781 = vmul.f32 %v1779, %v1729
        %1784 = vrot.lane.b32.xlu0 %v1780, 124
        %v1785 = vpop.permute.xlu0 %1784
        %1786 = vrot.lane.b32.xlu0 %v1781, 124
        %v1787 = vpop.permute.xlu0 %1786
        %v1790 = vadd.f32 %v1776, %v1785
        %v1791 = vadd.f32 %v1777, %v1787
        %s1792 = sld [smem:[#allocation3 + $0xaf]]
        %v1793 = vstv %s1792
        %v1794 = vmul.f32 %v1793, %v1728
        %v1795 = vmul.f32 %v1793, %v1729
        %1798 = vrot.lane.b32.xlu0 %v1794, 123
        %v1799 = vpop.permute.xlu0 %1798
        %1800 = vrot.lane.b32.xlu0 %v1795, 123
        %v1801 = vpop.permute.xlu0 %1800
        %v1804 = vadd.f32 %v1790, %v1799
        %v1805 = vadd.f32 %v1791, %v1801
        %s1806 = sld [smem:[#allocation3 + $0xb0]]
        %v1807 = vstv %s1806
        %v1808 = vmul.f32 %v1807, %v1728
        %v1809 = vmul.f32 %v1807, %v1729
        %1812 = vrot.lane.b32.xlu0 %v1808, 122
        %v1813 = vpop.permute.xlu0 %1812
        %1814 = vrot.lane.b32.xlu0 %v1809, 122
        %v1815 = vpop.permute.xlu0 %1814
        %v1818 = vadd.f32 %v1804, %v1813
        %v1819 = vadd.f32 %v1805, %v1815
        %v1820 = vld [vmem:[%s529] sm:$0xff]
        %v1821 = vld [vmem:[%s529 + $0x8] sm:$0xff]
        %s1822 = sld [smem:[#allocation3 + $0x100]]
        %v1823 = vstv %s1822
        %v1824 = vmul.f32 %v1823, %v1820
        %v1825 = vmul.f32 %v1823, %v1821
        %v1826 = vadd.f32 %v1818, %v1824
        %v1827 = vadd.f32 %v1819, %v1825
        %s1828 = sld [smem:[#allocation3 + $0x101]]
        %v1829 = vstv %s1828
        %v1830 = vmul.f32 %v1829, %v1820
        %v1831 = vmul.f32 %v1829, %v1821
        %1834 = vrot.lane.b32.xlu0 %v1830, 127
        %v1835 = vpop.permute.xlu0 %1834
        %1836 = vrot.lane.b32.xlu0 %v1831, 127
        %v1837 = vpop.permute.xlu0 %1836
        %v1840 = vadd.f32 %v1826, %v1835
        %v1841 = vadd.f32 %v1827, %v1837
        %s1842 = sld [smem:[#allocation3 + $0x102]]
        %v1843 = vstv %s1842
        %v1844 = vmul.f32 %v1843, %v1820
        %v1845 = vmul.f32 %v1843, %v1821
        %1848 = vrot.lane.b32.xlu0 %v1844, 126
        %v1849 = vpop.permute.xlu0 %1848
        %1850 = vrot.lane.b32.xlu0 %v1845, 126
        %v1851 = vpop.permute.xlu0 %1850
        %v1854 = vadd.f32 %v1840, %v1849
        %v1855 = vadd.f32 %v1841, %v1851
        %s1856 = sld [smem:[#allocation3 + $0x103]]
        %v1857 = vstv %s1856
        %v1858 = vmul.f32 %v1857, %v1820
        %v1859 = vmul.f32 %v1857, %v1821
        %1862 = vrot.lane.b32.xlu0 %v1858, 125
        %v1863 = vpop.permute.xlu0 %1862
        %1864 = vrot.lane.b32.xlu0 %v1859, 125
        %v1865 = vpop.permute.xlu0 %1864
        %v1868 = vadd.f32 %v1854, %v1863
        %v1869 = vadd.f32 %v1855, %v1865
        %s1870 = sld [smem:[#allocation3 + $0x104]]
        %v1871 = vstv %s1870
        %v1872 = vmul.f32 %v1871, %v1820
        %v1873 = vmul.f32 %v1871, %v1821
        %1876 = vrot.lane.b32.xlu0 %v1872, 124
        %v1877 = vpop.permute.xlu0 %1876
        %1878 = vrot.lane.b32.xlu0 %v1873, 124
        %v1879 = vpop.permute.xlu0 %1878
        %v1882 = vadd.f32 %v1868, %v1877
        %v1883 = vadd.f32 %v1869, %v1879
        %s1884 = sld [smem:[#allocation3 + $0x105]]
        %v1885 = vstv %s1884
        %v1886 = vmul.f32 %v1885, %v1820
        %v1887 = vmul.f32 %v1885, %v1821
        %1890 = vrot.lane.b32.xlu0 %v1886, 123
        %v1891 = vpop.permute.xlu0 %1890
        %1892 = vrot.lane.b32.xlu0 %v1887, 123
        %v1893 = vpop.permute.xlu0 %1892
        %v1896 = vadd.f32 %v1882, %v1891
        %v1897 = vadd.f32 %v1883, %v1893
        %s1898 = sld [smem:[#allocation3 + $0x106]]
        %v1899 = vstv %s1898
        %v1900 = vmul.f32 %v1899, %v1820
        %v1901 = vmul.f32 %v1899, %v1821
        %1904 = vrot.lane.b32.xlu0 %v1900, 122
        %v1905 = vpop.permute.xlu0 %1904
        %1906 = vrot.lane.b32.xlu0 %v1901, 122
        %v1907 = vpop.permute.xlu0 %1906
        %v1910 = vadd.f32 %v1896, %v1905
        %v1911 = vadd.f32 %v1897, %v1907
        %v1912 = vld [vmem:[%s529 + $0x1] sm:$0xff]
        %v1913 = vld [vmem:[%s529 + $0x9] sm:$0xff]
        %s1914 = sld [smem:[#allocation3 + $0x107]]
        %v1915 = vstv %s1914
        %v1916 = vmul.f32 %v1915, %v1912
        %v1917 = vmul.f32 %v1915, %v1913
        %v1918 = vadd.f32 %v1910, %v1916
        %v1919 = vadd.f32 %v1911, %v1917
        %s1920 = sld [smem:[#allocation3 + $0x108]]
        %v1921 = vstv %s1920
        %v1922 = vmul.f32 %v1921, %v1912
        %v1923 = vmul.f32 %v1921, %v1913
        %1926 = vrot.lane.b32.xlu0 %v1922, 127
        %v1927 = vpop.permute.xlu0 %1926
        %1928 = vrot.lane.b32.xlu0 %v1923, 127
        %v1929 = vpop.permute.xlu0 %1928
        %v1932 = vadd.f32 %v1918, %v1927
        %v1933 = vadd.f32 %v1919, %v1929
        %s1934 = sld [smem:[#allocation3 + $0x109]]
        %v1935 = vstv %s1934
        %v1936 = vmul.f32 %v1935, %v1912
        %v1937 = vmul.f32 %v1935, %v1913
        %1940 = vrot.lane.b32.xlu0 %v1936, 126
        %v1941 = vpop.permute.xlu0 %1940
        %1942 = vrot.lane.b32.xlu0 %v1937, 126
        %v1943 = vpop.permute.xlu0 %1942
        %v1946 = vadd.f32 %v1932, %v1941
        %v1947 = vadd.f32 %v1933, %v1943
        %s1948 = sld [smem:[#allocation3 + $0x10a]]
        %v1949 = vstv %s1948
        %v1950 = vmul.f32 %v1949, %v1912
        %v1951 = vmul.f32 %v1949, %v1913
        %1954 = vrot.lane.b32.xlu0 %v1950, 125
        %v1955 = vpop.permute.xlu0 %1954
        %1956 = vrot.lane.b32.xlu0 %v1951, 125
        %v1957 = vpop.permute.xlu0 %1956
        %v1960 = vadd.f32 %v1946, %v1955
        %v1961 = vadd.f32 %v1947, %v1957
        %s1962 = sld [smem:[#allocation3 + $0x10b]]
        %v1963 = vstv %s1962
        %v1964 = vmul.f32 %v1963, %v1912
        %v1965 = vmul.f32 %v1963, %v1913
        %1968 = vrot.lane.b32.xlu0 %v1964, 124
        %v1969 = vpop.permute.xlu0 %1968
        %1970 = vrot.lane.b32.xlu0 %v1965, 124
        %v1971 = vpop.permute.xlu0 %1970
        %v1974 = vadd.f32 %v1960, %v1969
        %v1975 = vadd.f32 %v1961, %v1971
        %s1976 = sld [smem:[#allocation3 + $0x10c]]
        %v1977 = vstv %s1976
        %v1978 = vmul.f32 %v1977, %v1912
        %v1979 = vmul.f32 %v1977, %v1913
        %1982 = vrot.lane.b32.xlu0 %v1978, 123
        %v1983 = vpop.permute.xlu0 %1982
        %1984 = vrot.lane.b32.xlu0 %v1979, 123
        %v1985 = vpop.permute.xlu0 %1984
        %v1988 = vadd.f32 %v1974, %v1983
        %v1989 = vadd.f32 %v1975, %v1985
        %s1990 = sld [smem:[#allocation3 + $0x10d]]
        %v1991 = vstv %s1990
        %v1992 = vmul.f32 %v1991, %v1912
        %v1993 = vmul.f32 %v1991, %v1913
        %1996 = vrot.lane.b32.xlu0 %v1992, 122
        %v1997 = vpop.permute.xlu0 %1996
        %1998 = vrot.lane.b32.xlu0 %v1993, 122
        %v1999 = vpop.permute.xlu0 %1998
        %v2002 = vadd.f32 %v1988, %v1997
        %v2003 = vadd.f32 %v1989, %v1999
        %v2004 = vld [vmem:[%s529 + $0x2] sm:$0xff]
        %v2005 = vld [vmem:[%s529 + $0xa] sm:$0xff]
        %s2006 = sld [smem:[#allocation3 + $0x10e]]
        %v2007 = vstv %s2006
        %v2008 = vmul.f32 %v2007, %v2004
        %v2009 = vmul.f32 %v2007, %v2005
        %v2010 = vadd.f32 %v2002, %v2008
        %v2011 = vadd.f32 %v2003, %v2009
        %s2012 = sld [smem:[#allocation3 + $0x10f]]
        %v2013 = vstv %s2012
        %v2014 = vmul.f32 %v2013, %v2004
        %v2015 = vmul.f32 %v2013, %v2005
        %2018 = vrot.lane.b32.xlu0 %v2014, 127
        %v2019 = vpop.permute.xlu0 %2018
        %2020 = vrot.lane.b32.xlu0 %v2015, 127
        %v2021 = vpop.permute.xlu0 %2020
        %v2024 = vadd.f32 %v2010, %v2019
        %v2025 = vadd.f32 %v2011, %v2021
        %s2026 = sld [smem:[#allocation3 + $0x110]]
        %v2027 = vstv %s2026
        %v2028 = vmul.f32 %v2027, %v2004
        %v2029 = vmul.f32 %v2027, %v2005
        %2032 = vrot.lane.b32.xlu0 %v2028, 126
        %v2033 = vpop.permute.xlu0 %2032
        %2034 = vrot.lane.b32.xlu0 %v2029, 126
        %v2035 = vpop.permute.xlu0 %2034
        %v2038 = vadd.f32 %v2024, %v2033
        %v2039 = vadd.f32 %v2025, %v2035
        %s2040 = sld [smem:[#allocation3 + $0x111]]
        %v2041 = vstv %s2040
        %v2042 = vmul.f32 %v2041, %v2004
        %v2043 = vmul.f32 %v2041, %v2005
        %2046 = vrot.lane.b32.xlu0 %v2042, 125
        %v2047 = vpop.permute.xlu0 %2046
        %2048 = vrot.lane.b32.xlu0 %v2043, 125
        %v2049 = vpop.permute.xlu0 %2048
        %v2052 = vadd.f32 %v2038, %v2047
        %v2053 = vadd.f32 %v2039, %v2049
        %s2054 = sld [smem:[#allocation3 + $0x112]]
        %v2055 = vstv %s2054
        %v2056 = vmul.f32 %v2055, %v2004
        %v2057 = vmul.f32 %v2055, %v2005
        %2060 = vrot.lane.b32.xlu0 %v2056, 124
        %v2061 = vpop.permute.xlu0 %2060
        %2062 = vrot.lane.b32.xlu0 %v2057, 124
        %v2063 = vpop.permute.xlu0 %2062
        %v2066 = vadd.f32 %v2052, %v2061
        %v2067 = vadd.f32 %v2053, %v2063
        %s2068 = sld [smem:[#allocation3 + $0x113]]
        %v2069 = vstv %s2068
        %v2070 = vmul.f32 %v2069, %v2004
        %v2071 = vmul.f32 %v2069, %v2005
        %2074 = vrot.lane.b32.xlu0 %v2070, 123
        %v2075 = vpop.permute.xlu0 %2074
        %2076 = vrot.lane.b32.xlu0 %v2071, 123
        %v2077 = vpop.permute.xlu0 %2076
        %v2080 = vadd.f32 %v2066, %v2075
        %v2081 = vadd.f32 %v2067, %v2077
        %s2082 = sld [smem:[#allocation3 + $0x114]]
        %v2083 = vstv %s2082
        %v2084 = vmul.f32 %v2083, %v2004
        %v2085 = vmul.f32 %v2083, %v2005
        %2088 = vrot.lane.b32.xlu0 %v2084, 122
        %v2089 = vpop.permute.xlu0 %2088
        %2090 = vrot.lane.b32.xlu0 %v2085, 122
        %v2091 = vpop.permute.xlu0 %2090
        %v2094 = vadd.f32 %v2080, %v2089
        %v2095 = vadd.f32 %v2081, %v2091
        %v2096 = vld [vmem:[%s529 + $0x3] sm:$0xff]
        %v2097 = vld [vmem:[%s529 + $0xb] sm:$0xff]
        %s2098 = sld [smem:[#allocation3 + $0x115]]
        %v2099 = vstv %s2098
        %v2100 = vmul.f32 %v2099, %v2096
        %v2101 = vmul.f32 %v2099, %v2097
        %v2102 = vadd.f32 %v2094, %v2100
        %v2103 = vadd.f32 %v2095, %v2101
        %s2104 = sld [smem:[#allocation3 + $0x116]]
        %v2105 = vstv %s2104
        %v2106 = vmul.f32 %v2105, %v2096
        %v2107 = vmul.f32 %v2105, %v2097
        %2110 = vrot.lane.b32.xlu0 %v2106, 127
        %v2111 = vpop.permute.xlu0 %2110
        %2112 = vrot.lane.b32.xlu0 %v2107, 127
        %v2113 = vpop.permute.xlu0 %2112
        %v2116 = vadd.f32 %v2102, %v2111
        %v2117 = vadd.f32 %v2103, %v2113
        %s2118 = sld [smem:[#allocation3 + $0x117]]
        %v2119 = vstv %s2118
        %v2120 = vmul.f32 %v2119, %v2096
        %v2121 = vmul.f32 %v2119, %v2097
        %2124 = vrot.lane.b32.xlu0 %v2120, 126
        %v2125 = vpop.permute.xlu0 %2124
        %2126 = vrot.lane.b32.xlu0 %v2121, 126
        %v2127 = vpop.permute.xlu0 %2126
        %v2130 = vadd.f32 %v2116, %v2125
        %v2131 = vadd.f32 %v2117, %v2127
        %s2132 = sld [smem:[#allocation3 + $0x118]]
        %v2133 = vstv %s2132
        %v2134 = vmul.f32 %v2133, %v2096
        %v2135 = vmul.f32 %v2133, %v2097
        %2138 = vrot.lane.b32.xlu0 %v2134, 125
        %v2139 = vpop.permute.xlu0 %2138
        %2140 = vrot.lane.b32.xlu0 %v2135, 125
        %v2141 = vpop.permute.xlu0 %2140
        %v2144 = vadd.f32 %v2130, %v2139
        %v2145 = vadd.f32 %v2131, %v2141
        %s2146 = sld [smem:[#allocation3 + $0x119]]
        %v2147 = vstv %s2146
        %v2148 = vmul.f32 %v2147, %v2096
        %v2149 = vmul.f32 %v2147, %v2097
        %2152 = vrot.lane.b32.xlu0 %v2148, 124
        %v2153 = vpop.permute.xlu0 %2152
        %2154 = vrot.lane.b32.xlu0 %v2149, 124
        %v2155 = vpop.permute.xlu0 %2154
        %v2158 = vadd.f32 %v2144, %v2153
        %v2159 = vadd.f32 %v2145, %v2155
        %s2160 = sld [smem:[#allocation3 + $0x11a]]
        %v2161 = vstv %s2160
        %v2162 = vmul.f32 %v2161, %v2096
        %v2163 = vmul.f32 %v2161, %v2097
        %2166 = vrot.lane.b32.xlu0 %v2162, 123
        %v2167 = vpop.permute.xlu0 %2166
        %2168 = vrot.lane.b32.xlu0 %v2163, 123
        %v2169 = vpop.permute.xlu0 %2168
        %v2172 = vadd.f32 %v2158, %v2167
        %v2173 = vadd.f32 %v2159, %v2169
        %s2174 = sld [smem:[#allocation3 + $0x11b]]
        %v2175 = vstv %s2174
        %v2176 = vmul.f32 %v2175, %v2096
        %v2177 = vmul.f32 %v2175, %v2097
        %2180 = vrot.lane.b32.xlu0 %v2176, 122
        %v2181 = vpop.permute.xlu0 %2180
        %2182 = vrot.lane.b32.xlu0 %v2177, 122
        %v2183 = vpop.permute.xlu0 %2182
        %v2186 = vadd.f32 %v2172, %v2181
        %v2187 = vadd.f32 %v2173, %v2183
        %v2188 = vld [vmem:[%s529 + $0x4] sm:$0xff]
        %v2189 = vld [vmem:[%s529 + $0xc] sm:$0xff]
        %s2190 = sld [smem:[#allocation3 + $0x11c]]
        %v2191 = vstv %s2190
        %v2192 = vmul.f32 %v2191, %v2188
        %v2193 = vmul.f32 %v2191, %v2189
        %v2194 = vadd.f32 %v2186, %v2192
        %v2195 = vadd.f32 %v2187, %v2193
        %s2196 = sld [smem:[#allocation3 + $0x11d]]
        %v2197 = vstv %s2196
        %v2198 = vmul.f32 %v2197, %v2188
        %v2199 = vmul.f32 %v2197, %v2189
        %2202 = vrot.lane.b32.xlu0 %v2198, 127
        %v2203 = vpop.permute.xlu0 %2202
        %2204 = vrot.lane.b32.xlu0 %v2199, 127
        %v2205 = vpop.permute.xlu0 %2204
        %v2208 = vadd.f32 %v2194, %v2203
        %v2209 = vadd.f32 %v2195, %v2205
        %s2210 = sld [smem:[#allocation3 + $0x11e]]
        %v2211 = vstv %s2210
        %v2212 = vmul.f32 %v2211, %v2188
        %v2213 = vmul.f32 %v2211, %v2189
        %2216 = vrot.lane.b32.xlu0 %v2212, 126
        %v2217 = vpop.permute.xlu0 %2216
        %2218 = vrot.lane.b32.xlu0 %v2213, 126
        %v2219 = vpop.permute.xlu0 %2218
        %v2222 = vadd.f32 %v2208, %v2217
        %v2223 = vadd.f32 %v2209, %v2219
        %s2224 = sld [smem:[#allocation3 + $0x11f]]
        %v2225 = vstv %s2224
        %v2226 = vmul.f32 %v2225, %v2188
        %v2227 = vmul.f32 %v2225, %v2189
        %2230 = vrot.lane.b32.xlu0 %v2226, 125
        %v2231 = vpop.permute.xlu0 %2230
        %2232 = vrot.lane.b32.xlu0 %v2227, 125
        %v2233 = vpop.permute.xlu0 %2232
        %v2236 = vadd.f32 %v2222, %v2231
        %v2237 = vadd.f32 %v2223, %v2233
        %s2238 = sld [smem:[#allocation3 + $0x120]]
        %v2239 = vstv %s2238
        %v2240 = vmul.f32 %v2239, %v2188
        %v2241 = vmul.f32 %v2239, %v2189
        %2244 = vrot.lane.b32.xlu0 %v2240, 124
        %v2245 = vpop.permute.xlu0 %2244
        %2246 = vrot.lane.b32.xlu0 %v2241, 124
        %v2247 = vpop.permute.xlu0 %2246
        %v2250 = vadd.f32 %v2236, %v2245
        %v2251 = vadd.f32 %v2237, %v2247
        %s2252 = sld [smem:[#allocation3 + $0x121]]
        %v2253 = vstv %s2252
        %v2254 = vmul.f32 %v2253, %v2188
        %v2255 = vmul.f32 %v2253, %v2189
        %2258 = vrot.lane.b32.xlu0 %v2254, 123
        %v2259 = vpop.permute.xlu0 %2258
        %2260 = vrot.lane.b32.xlu0 %v2255, 123
        %v2261 = vpop.permute.xlu0 %2260
        %v2264 = vadd.f32 %v2250, %v2259
        %v2265 = vadd.f32 %v2251, %v2261
        %s2266 = sld [smem:[#allocation3 + $0x122]]
        %v2267 = vstv %s2266
        %v2268 = vmul.f32 %v2267, %v2188
        %v2269 = vmul.f32 %v2267, %v2189
        %2272 = vrot.lane.b32.xlu0 %v2268, 122
        %v2273 = vpop.permute.xlu0 %2272
        %2274 = vrot.lane.b32.xlu0 %v2269, 122
        %v2275 = vpop.permute.xlu0 %2274
        %v2278 = vadd.f32 %v2264, %v2273
        %v2279 = vadd.f32 %v2265, %v2275
        %v2280 = vld [vmem:[%s529 + $0x5] sm:$0xff]
        %v2281 = vld [vmem:[%s529 + $0xd] sm:$0xff]
        %s2282 = sld [smem:[#allocation3 + $0x123]]
        %v2283 = vstv %s2282
        %v2284 = vmul.f32 %v2283, %v2280
        %v2285 = vmul.f32 %v2283, %v2281
        %v2286 = vadd.f32 %v2278, %v2284
        %v2287 = vadd.f32 %v2279, %v2285
        %s2288 = sld [smem:[#allocation3 + $0x124]]
        %v2289 = vstv %s2288
        %v2290 = vmul.f32 %v2289, %v2280
        %v2291 = vmul.f32 %v2289, %v2281
        %2294 = vrot.lane.b32.xlu0 %v2290, 127
        %v2295 = vpop.permute.xlu0 %2294
        %2296 = vrot.lane.b32.xlu0 %v2291, 127
        %v2297 = vpop.permute.xlu0 %2296
        %v2300 = vadd.f32 %v2286, %v2295
        %v2301 = vadd.f32 %v2287, %v2297
        %s2302 = sld [smem:[#allocation3 + $0x125]]
        %v2303 = vstv %s2302
        %v2304 = vmul.f32 %v2303, %v2280
        %v2305 = vmul.f32 %v2303, %v2281
        %2308 = vrot.lane.b32.xlu0 %v2304, 126
        %v2309 = vpop.permute.xlu0 %2308
        %2310 = vrot.lane.b32.xlu0 %v2305, 126
        %v2311 = vpop.permute.xlu0 %2310
        %v2314 = vadd.f32 %v2300, %v2309
        %v2315 = vadd.f32 %v2301, %v2311
        %s2316 = sld [smem:[#allocation3 + $0x126]]
        %v2317 = vstv %s2316
        %v2318 = vmul.f32 %v2317, %v2280
        %v2319 = vmul.f32 %v2317, %v2281
        %2322 = vrot.lane.b32.xlu0 %v2318, 125
        %v2323 = vpop.permute.xlu0 %2322
        %2324 = vrot.lane.b32.xlu0 %v2319, 125
        %v2325 = vpop.permute.xlu0 %2324
        %v2328 = vadd.f32 %v2314, %v2323
        %v2329 = vadd.f32 %v2315, %v2325
        %s2330 = sld [smem:[#allocation3 + $0x127]]
        %v2331 = vstv %s2330
        %v2332 = vmul.f32 %v2331, %v2280
        %v2333 = vmul.f32 %v2331, %v2281
        %2336 = vrot.lane.b32.xlu0 %v2332, 124
        %v2337 = vpop.permute.xlu0 %2336
        %2338 = vrot.lane.b32.xlu0 %v2333, 124
        %v2339 = vpop.permute.xlu0 %2338
        %v2342 = vadd.f32 %v2328, %v2337
        %v2343 = vadd.f32 %v2329, %v2339
        %s2344 = sld [smem:[#allocation3 + $0x128]]
        %v2345 = vstv %s2344
        %v2346 = vmul.f32 %v2345, %v2280
        %v2347 = vmul.f32 %v2345, %v2281
        %2350 = vrot.lane.b32.xlu0 %v2346, 123
        %v2351 = vpop.permute.xlu0 %2350
        %2352 = vrot.lane.b32.xlu0 %v2347, 123
        %v2353 = vpop.permute.xlu0 %2352
        %v2356 = vadd.f32 %v2342, %v2351
        %v2357 = vadd.f32 %v2343, %v2353
        %s2358 = sld [smem:[#allocation3 + $0x129]]
        %v2359 = vstv %s2358
        %v2360 = vmul.f32 %v2359, %v2280
        %v2361 = vmul.f32 %v2359, %v2281
        %2364 = vrot.lane.b32.xlu0 %v2360, 122
        %v2365 = vpop.permute.xlu0 %2364
        %2366 = vrot.lane.b32.xlu0 %v2361, 122
        %v2367 = vpop.permute.xlu0 %2366
        %v2370 = vadd.f32 %v2356, %v2365
        %v2371 = vadd.f32 %v2357, %v2367
        %v2372 = vld [vmem:[%s529 + $0x6] sm:$0xff]
        %v2373 = vld [vmem:[%s529 + $0xe] sm:$0xff]
        %s2374 = sld [smem:[#allocation3 + $0x12a]]
        %v2375 = vstv %s2374
        %v2376 = vmul.f32 %v2375, %v2372
        %v2377 = vmul.f32 %v2375, %v2373
        %v2378 = vadd.f32 %v2370, %v2376
        %v2379 = vadd.f32 %v2371, %v2377
        %s2380 = sld [smem:[#allocation3 + $0x12b]]
        %v2381 = vstv %s2380
        %v2382 = vmul.f32 %v2381, %v2372
        %v2383 = vmul.f32 %v2381, %v2373
        %2386 = vrot.lane.b32.xlu0 %v2382, 127
        %v2387 = vpop.permute.xlu0 %2386
        %2388 = vrot.lane.b32.xlu0 %v2383, 127
        %v2389 = vpop.permute.xlu0 %2388
        %v2392 = vadd.f32 %v2378, %v2387
        %v2393 = vadd.f32 %v2379, %v2389
        %s2394 = sld [smem:[#allocation3 + $0x12c]]
        %v2395 = vstv %s2394
        %v2396 = vmul.f32 %v2395, %v2372
        %v2397 = vmul.f32 %v2395, %v2373
        %2400 = vrot.lane.b32.xlu0 %v2396, 126
        %v2401 = vpop.permute.xlu0 %2400
        %2402 = vrot.lane.b32.xlu0 %v2397, 126
        %v2403 = vpop.permute.xlu0 %2402
        %v2406 = vadd.f32 %v2392, %v2401
        %v2407 = vadd.f32 %v2393, %v2403
        %s2408 = sld [smem:[#allocation3 + $0x12d]]
        %v2409 = vstv %s2408
        %v2410 = vmul.f32 %v2409, %v2372
        %v2411 = vmul.f32 %v2409, %v2373
        %2414 = vrot.lane.b32.xlu0 %v2410, 125
        %v2415 = vpop.permute.xlu0 %2414
        %2416 = vrot.lane.b32.xlu0 %v2411, 125
        %v2417 = vpop.permute.xlu0 %2416
        %v2420 = vadd.f32 %v2406, %v2415
        %v2421 = vadd.f32 %v2407, %v2417
        %s2422 = sld [smem:[#allocation3 + $0x12e]]
        %v2423 = vstv %s2422
        %v2424 = vmul.f32 %v2423, %v2372
        %v2425 = vmul.f32 %v2423, %v2373
        %2428 = vrot.lane.b32.xlu0 %v2424, 124
        %v2429 = vpop.permute.xlu0 %2428
        %2430 = vrot.lane.b32.xlu0 %v2425, 124
        %v2431 = vpop.permute.xlu0 %2430
        %v2434 = vadd.f32 %v2420, %v2429
        %v2435 = vadd.f32 %v2421, %v2431
        %s2436 = sld [smem:[#allocation3 + $0x12f]]
        %v2437 = vstv %s2436
        %v2438 = vmul.f32 %v2437, %v2372
        %v2439 = vmul.f32 %v2437, %v2373
        %2442 = vrot.lane.b32.xlu0 %v2438, 123
        %v2443 = vpop.permute.xlu0 %2442
        %2444 = vrot.lane.b32.xlu0 %v2439, 123
        %v2445 = vpop.permute.xlu0 %2444
        %v2448 = vadd.f32 %v2434, %v2443
        %v2449 = vadd.f32 %v2435, %v2445
        %s2450 = sld [smem:[#allocation3 + $0x130]]
        %v2451 = vstv %s2450
        %v2452 = vmul.f32 %v2451, %v2372
        %v2453 = vmul.f32 %v2451, %v2373
        %2456 = vrot.lane.b32.xlu0 %v2452, 122
        %v2457 = vpop.permute.xlu0 %2456
        %2458 = vrot.lane.b32.xlu0 %v2453, 122
        %v2459 = vpop.permute.xlu0 %2458
        %v2462 = vadd.f32 %v2448, %v2457
        %v2463 = vadd.f32 %v2449, %v2459
        %v2464 = vsub.f32 0.0, %v2462
        %v2465 = vsub.f32 0.0, %v2463
        %v2466 = vmul.f32 %v2464, 1.442695
        %v2467 = vpow.pop %v2466
        %v2468 = vmul.f32 %v2465, 1.442695
        %v2469 = vpow.pop %v2468
        %v2470 = vadd.f32 %v2467, 1.0
        %v2471 = vadd.f32 %v2469, 1.0
        %v2472 = vrcp.pop %v2470
        %v2473 = vmul.f32 1.0, %v2472
        %v2474 = vrcp.pop %v2471
        %v2475 = vmul.f32 1.0, %v2474
        %v2476 = vmul.f32 %v203, %v2473
        %v2477 = vmul.f32 %v204, %v2475
        %v2478 = vmul.f32 %v205, %v2473
        %v2479 = vmul.f32 %v206, %v2475
        %v2480 = vmul.f32 %v207, %v2473
        %v2481 = vmul.f32 %v208, %v2475
        %v2482 = vmul.f32 %v209, %v2473
        %v2483 = vmul.f32 %v210, %v2475
        %2484 = vst.msk [vmem:[%s192] sm:$0xff] %vm211, %v2476
        %2485 = vst.msk [vmem:[%s192 + $0x8] sm:$0xff] %vm211, %v2477
        %2486 = vst.msk [vmem:[%s192 + $0x10] sm:$0xff] %vm211, %v2478
        %2487 = vst.msk [vmem:[%s192 + $0x18] sm:$0xff] %vm211, %v2479
        %2488 = vst.msk [vmem:[%s192 + $0x20] sm:$0xff] %vm211, %v2480
        %2489 = vst.msk [vmem:[%s192 + $0x28] sm:$0xff] %vm211, %v2481
        %2490 = vst.msk [vmem:[%s192 + $0x30] sm:$0xff] %vm211, %v2482
        %2491 = vst.msk [vmem:[%s192 + $0x38] sm:$0xff] %vm211, %v2483
        %s2492 = sand.u32 %s99, 1
        %s2493 = scalar_lea.sflag [#allocation4], %s2492
        %s2494 = sand.u32 %s99, 1
        %s2495 = smul.addr %s2494, 64
        %s2496 = scalar_lea.vmem [#allocation6], %s2495
        // Predicated region
        $region37: #{_spatial_attention_forward.1} parent=31 // pred_check
          %p2497 = pneg %p109
        $region38: #{_spatial_attention_forward.1} parent=31 // pred_check_branch
          %2499 = sbr.rel (%p2497) target = $region40
        $region39: #{_spatial_attention_forward.1} parent=31 // pred_region
          %s2501 = ssub.s32 1024, 1024
          %2502 = vsyncadd %s2493, %s2501
          %s2503 = smul.addr %s18, 8
          %s2504 = smul.addr %s2503, 128
          %s2505 = scalar_lea.hbm %s3, %s2504
          %s2506 = sshll.u32 %s2496, 4
          %s2507 = int_to_ptr.vmem [resolvable:$true] %s2506
          %2512 = dma.vmem_to_hbm [thread:$0]  %s2507, 1024, %s2505, %s2493, 128, 128, 8
        $region40: #{_spatial_attention_forward.1} parent=31 // pred_fallthru
          _
      $region32: #{_spatial_attention_forward.1} parent=5 // pred_fallthru
        _
      %p2513 = scmp.le.s32.totalorder 2, %s13
      // Predicated region
      $region41: #{_spatial_attention_forward.1} parent=5 // pred_check
        %p2514 = pneg %p2513
      $region42: #{_spatial_attention_forward.1} parent=5 // pred_check_branch
        %2516 = sbr.rel (%p2514) target = $region44
      $region43: #{_spatial_attention_forward.1} parent=5 // pred_region
        %s2517 = ssub.s32 %s13, 2
        // Predicated region
        $region45: #{_spatial_attention_forward.1} parent=43 // pred_check
          %p2518 = pneg %p115
        $region46: #{_spatial_attention_forward.1} parent=43 // pred_check_branch
          %2520 = sbr.rel (%p2518) target = $region48
        $region47: #{_spatial_attention_forward.1} parent=43 // pred_region
          %s2521 = sand.u32 %s100, 1
          %s2522 = scalar_lea.sflag [#allocation4], %s2521
          %s2523 = sand.u32 %s100, 1
          %s2524 = smul.addr %s2523, 64
          %s2525 = scalar_lea.vmem [#allocation6], %s2524
          %2526 = dma.done %s2522, 1024
        $region48: #{_spatial_attention_forward.1} parent=43 // pred_fallthru
          _
      $region44: #{_spatial_attention_forward.1} parent=5 // pred_fallthru
        _
    $region6: #{_spatial_attention_forward.1} parent=1 // loop_footer
      %s17 = sadd.s32 1, %s13
    $region7: #{_spatial_attention_forward.1} parent=1 // loop_footer_branch
      %12 = sbr.rel target = $region3
    $region8: #{_spatial_attention_forward.1} parent=1 // loop_exit
      _
    %2527 = vsyncpa [#allocation4], 1
    %s2528 = scalar_lea.sflag [#allocation4], 1
    %2529 = vsyncpa %s2528, 1
    %2530 = vsyncpa [#allocation5], 1
    %s2531 = scalar_lea.sflag [#allocation5], 1
    %2532 = vsyncpa %s2531, 1

</llo_original>
